<compile_context>
chip_gen: v7x
topology: tpu7x:2x2x1
jax: 0.10.0
libtpu: 0.0.40
codegen_flags: <defaults>
</compile_context>

<pallas_src>
import functools

import jax
import jax.numpy as jnp
from jax.experimental import pallas as pl
from jax.experimental.pallas import tpu as pltpu

AMBIENT = 0.3
LIGHT_DIR = (0.3, 0.3, -1.0)   # fixed directional light for the flat shader
COEFFS_PER_FACE = 24           # 9 edge coeffs + 3 z + 3 dist factors + 9 shaded colors
NUM_PLANES = 9                 # R, G, B, A, bary0, bary1, bary2, zbuf, dists


def _render_kernel(pxy_ref, fc_ref, flt_ref, p2f_ref, *, num_faces, rows):
    BR = rows                              # fused slab rows = B * (H*W // 128)
    px = pxy_ref[0:BR, :]                  # (BR, 128)
    py = pxy_ref[BR:2 * BR, :]             # (BR, 128)

    big = jnp.float32(1e10)
    zbuf = jnp.full((BR, 128), big, jnp.float32)
    fid = jnp.full((BR, 128), -1, jnp.int32)
    l0c = jnp.full((BR, 128), -1.0, jnp.float32)
    l1c = jnp.full((BR, 128), -1.0, jnp.float32)
    l2c = jnp.full((BR, 128), -1.0, jnp.float32)

    # ---- pass 1: rasterizer (z-buffer visibility), 5 carry planes only -----
    # Static Python loop: every fc_ref slice below has a compile-time offset.
    # Coefficients are (BR,1) columns loaded through the vector-load slots and
    # lane-broadcast into the fused (BR,128) math (no SMEM scalar loads).
    for f in range(num_faces):
        col = lambda k: fc_ref[f, :, k:k + 1]          # (BR, 1)
        a0, b0, c0 = col(0), col(1), col(2)
        a1, b1, c1 = col(3), col(4), col(5)
        a2, b2, c2 = col(6), col(7), col(8)
        z0, z1, z2 = col(9), col(10), col(11)

        # normalized edge functions (1/area already folded into coefficients)
        l0 = a0 * px + b0 * py + c0
        l1 = a1 * px + b1 * py + c1
        l2 = a2 * px + b2 * py + c2
        inside = (l0 >= 0.0) & (l1 >= 0.0) & (l2 >= 0.0)

        z = l0 * z0 + l1 * z1 + l2 * z2
        hit = inside & (z > 0.0) & (z < zbuf)

        zbuf = jnp.where(hit, z, zbuf)
        fid = jnp.where(hit, f, fid)
        l0c = jnp.where(hit, l0, l0c)
        l1c = jnp.where(hit, l1, l1c)
        l2c = jnp.where(hit, l2, l2c)

    hit_any = fid >= 0

    # ---- pass 2 (slim): gather the winning face's 12 shading coefficients --
    # One select per coefficient per face; interpolation / distance math runs
    # once after the loop.
    zero = jnp.zeros((BR, 128), jnp.float32)
    d0 = d1 = d2 = zero
    c0r = c0g = c0b = zero
    c1r = c1g = c1b = zero
    c2r = c2g = c2b = zero
    for f in range(num_faces):
        mf = fid == f
        sel = lambda k, acc: jnp.where(mf, fc_ref[f, :, k:k + 1], acc)
        d0, d1, d2 = sel(12, d0), sel(13, d1), sel(14, d2)
        c0r, c0g, c0b = sel(15, c0r), sel(16, c0g), sel(17, c0b)
        c1r, c1g, c1b = sel(18, c1r), sel(19, c1g), sel(20, c1b)
        c2r, c2g, c2b = sel(21, c2r), sel(22, c2g), sel(23, c2b)

    # barycentric-interpolated, pre-shaded vertex colors (9 FMAs, once)
    red = l0c * c0r + l1c * c1r + l2c * c2r
    grn = l0c * c0g + l1c * c1g + l2c * c2g
    blu = l0c * c0b + l1c * c1b + l2c * c2b

    # TODO(synk): point-to-edge-LINE distance (exact for interior pixels);
    # PyTorch3D's rasterizer uses point-to-edge-SEGMENT distance.
    pdist = jnp.minimum(jnp.minimum(jnp.abs(l0c) * d0, jnp.abs(l1c) * d1),
                        jnp.abs(l2c) * d2)

    # TODO(synk): alpha is the coverage mask; PyTorch3D's hard_rgb_blend would
    # return alpha == 1 everywhere — match the actually injected shader.
    alpha = hit_any.astype(jnp.float32)
    red = jnp.where(hit_any, red, 1.0)                   # white background
    grn = jnp.where(hit_any, grn, 1.0)
    blu = jnp.where(hit_any, blu, 1.0)
    dists = jnp.where(hit_any, -(pdist * pdist), -1.0)   # PyTorch3D empty-pixel convention
    zout = jnp.where(hit_any, zbuf, jnp.float32(-1.0))

    # Single fused float output slab -> one dense HBM writeback.  Stores are
    # static-offset row windows of the same (9*BR, 128) block.
    planes = (red, grn, blu, alpha, l0c, l1c, l2c, zout, dists)
    for i, plane in enumerate(planes):
        flt_ref[i * BR:(i + 1) * BR, :] = plane
    p2f_ref[...] = fid


def _build_pixel_planes(B, H, W):
    """px/py NDC pixel-center planes, tiled per batch: (2*B*H*W/128, 128)."""
    R = (H * W) // 128
    lin = jnp.arange(H * W, dtype=jnp.int32)
    yy = (lin // W).astype(jnp.float32)
    xx = (lin % W).astype(jnp.float32)
    px = ((xx + 0.5) * (2.0 / W) - 1.0).reshape(R, 128)
    py = ((yy + 0.5) * (2.0 / H) - 1.0).reshape(R, 128)
    px = jnp.tile(px, (B, 1))
    py = jnp.tile(py, (B, 1))
    return jnp.concatenate([px, py], axis=0).astype(jnp.float32)


def _build_face_columns(verts, faces, verts_rgb, rows_per_batch):
    """Per-face coefficients, one row per (batch, pixel-row): (F, B*R, 24)."""
    B = verts.shape[0]
    F = faces.shape[0]
    eps = jnp.float32(1e-9)

    face_verts = verts[:, faces]        # (B, F, 3, 3)
    face_cols = verts_rgb[:, faces]     # (B, F, 3, 3)
    v0, v1, v2 = face_verts[:, :, 0], face_verts[:, :, 1], face_verts[:, :, 2]
    x0, y0, z0 = v0[..., 0], v0[..., 1], v0[..., 2]
    x1, y1, z1 = v1[..., 0], v1[..., 1], v1[..., 2]
    x2, y2, z2 = v2[..., 0], v2[..., 1], v2[..., 2]

    area = (x1 - x0) * (y2 - y0) - (x2 - x0) * (y1 - y0)
    valid = jnp.abs(area) > 1e-9
    denom = jnp.where(valid, area, jnp.float32(1e-9))
    inv_area = 1.0 / denom

    # edge-function coefficients with 1/area folded in: l_i = A_i*px + B_i*py + C_i
    A0 = -(y2 - y1) * inv_area
    B0 = (x2 - x1) * inv_area
    C0 = ((y2 - y1) * x1 - (x2 - x1) * y1) * inv_area
    A1 = -(y0 - y2) * inv_area
    B1 = (x0 - x2) * inv_area
    C1 = ((y0 - y2) * x2 - (x0 - x2) * y2) * inv_area
    A2 = -(y1 - y0) * inv_area
    B2 = (x1 - x0) * inv_area
    C2 = ((y1 - y0) * x0 - (x1 - x0) * y0) * inv_area

    # degenerate faces: force the inside-test to always fail
    def kill(a, b_, c):
        return (jnp.where(valid, a, 0.0), jnp.where(valid, b_, 0.0),
                jnp.where(valid, c, -1.0))
    A0, B0, C0 = kill(A0, B0, C0)
    A1, B1, C1 = kill(A1, B1, C1)
    A2, B2, C2 = kill(A2, B2, C2)

    # |w_i| / len_jk == |l_i| * |area| / len_jk  ->  dist factors d_i
    len12 = jnp.sqrt((x2 - x1) ** 2 + (y2 - y1) ** 2) + eps
    len20 = jnp.sqrt((x0 - x2) ** 2 + (y0 - y2) ** 2) + eps
    len01 = jnp.sqrt((x1 - x0) ** 2 + (y1 - y0) ** 2) + eps
    abs_area = jnp.abs(denom)
    d0 = abs_area / len12
    d1 = abs_area / len20
    d2 = abs_area / len01

    # flat diffuse shade, folded into the vertex colors
    lvec = jnp.asarray(LIGHT_DIR, jnp.float32)
    lvec = lvec / jnp.sqrt(jnp.sum(lvec * lvec))
    e1 = v1 - v0
    e2 = v2 - v0
    n = jnp.cross(e1, e2)
    nlen = jnp.sqrt(jnp.sum(n * n, axis=-1)) + eps
    ndotl = jnp.abs(jnp.einsum("bfk,k->bf", n, lvec)) / nlen
    shade = AMBIENT + (1.0 - AMBIENT) * ndotl            # (B, F)

    cols = face_cols * shade[:, :, None, None]           # (B, F, 3, 3)
    c0 = cols[:, :, 0]
    c1 = cols[:, :, 1]
    c2 = cols[:, :, 2]

    fc = jnp.stack(
        [A0, B0, C0, A1, B1, C1, A2, B2, C2,
         z0, z1, z2, d0, d1, d2,
         c0[..., 0], c0[..., 1], c0[..., 2],
         c1[..., 0], c1[..., 1], c1[..., 2],
         c2[..., 0], c2[..., 1], c2[..., 2]], axis=-1)   # (B, F, 24)
    fc = jnp.transpose(fc, (1, 0, 2))                    # (F, B, 24)
    fc = jnp.broadcast_to(fc[:, :, None, :],
                          (F, B, rows_per_batch, COEFFS_PER_FACE))
    return fc.reshape(F, B * rows_per_batch, COEFFS_PER_FACE).astype(jnp.float32)


def mesh_renderer_view_selection(verts, faces, verts_rgb, *, image_size=16):
    """verts: (B, V, 3) NDC positions; faces: (F, 3) int32; verts_rgb: (B, V, 3)."""
    B = verts.shape[0]
    F = faces.shape[0]
    H = W = image_size
    assert (H * W) % 128 == 0, "image_size**2 must be a multiple of 128"
    R = (H * W) // 128
    BR = B * R

    pxy = _build_pixel_planes(B, H, W)                           # (2*BR, 128)
    facecols = _build_face_columns(verts, faces, verts_rgb, R)   # (F, BR, 24)

    kernel = functools.partial(_render_kernel, num_faces=F, rows=BR)

    out_shapes = (
        jax.ShapeDtypeStruct((NUM_PLANES * BR, 128), jnp.float32),  # fused float slab
        jax.ShapeDtypeStruct((BR, 128), jnp.int32),                 # pix_to_face
    )

    grid_spec = pltpu.PrefetchScalarGridSpec(
        num_scalar_prefetch=0,
        grid=(1,),   # single step: batches are folded into the sublane dim
        in_specs=[
            pl.BlockSpec((2 * BR, 128), lambda i: (0, 0)),
            pl.BlockSpec((F, BR, COEFFS_PER_FACE), lambda i: (0, 0, 0)),
        ],
        out_specs=[
            pl.BlockSpec((NUM_PLANES * BR, 128), lambda i: (0, 0)),
            pl.BlockSpec((BR, 128), lambda i: (0, 0)),
        ],
    )

    flt, p2f = pl.pallas_call(
        kernel,
        out_shape=out_shapes,
        grid_spec=grid_spec,
        compiler_params=pltpu.CompilerParams(
            dimension_semantics=("arbitrary",)),
    )(pxy, facecols)

    # Layout plumbing back to PyTorch3D conventions.
    flt4 = flt.reshape(NUM_PLANES, B, H, W)
    images = jnp.transpose(flt4[0:4], (1, 2, 3, 0))              # (B, H, W, 4)
    fragments = {
        "pix_to_face": p2f.reshape(B, H, W)[..., None],          # (B, H, W, 1)
        "zbuf": flt4[7][..., None],                              # (B, H, W, 1)
        "bary_coords": jnp.transpose(
            flt4[4:7], (1, 2, 3, 0))[:, :, :, None, :],          # (B, H, W, 1, 3)
        "dists": flt4[8][..., None],                             # (B, H, W, 1)
    }
    return images, fragments


if __name__ == "__main__":
    key = jax.random.PRNGKey(0)
    B, F = 2, 8
    V = 3 * F
    H = W = 16

    k1, k2, k3 = jax.random.split(key, 3)
    xy = jax.random.uniform(k1, (B, V, 2), minval=-0.9, maxval=0.9)
    zz = jax.random.uniform(k2, (B, V, 1), minval=0.2, maxval=0.9)
    verts = jnp.concatenate([xy, zz], axis=-1).astype(jnp.float32)
    faces = jnp.arange(V, dtype=jnp.int32).reshape(F, 3)
    verts_rgb = jax.random.uniform(k3, (B, V, 3)).astype(jnp.float32)

    images, fragments = mesh_renderer_view_selection(
        verts, faces, verts_rgb, image_size=H)
    jax.block_until_ready((images, fragments))

    assert images.shape == (B, H, W, 4)
    assert fragments["pix_to_face"].shape == (B, H, W, 1)
    assert fragments["zbuf"].shape == (B, H, W, 1)
    assert fragments["bary_coords"].shape == (B, H, W, 1, 3)
    assert fragments["dists"].shape == (B, H, W, 1)
    print("KERNEL_OK")
</pallas_src>

<mosaic_0001>
module attributes {stable_mosaic.version = 11 : i64} {
  func.func @_render_kernel(%arg0: i32, %arg1: memref<8x128xf32, #tpu.memory_space<vmem>>, %arg2: memref<8x4x24xf32, #tpu.memory_space<vmem>>, %arg3: memref<36x128xf32, #tpu.memory_space<vmem>>, %arg4: memref<4x128xi32, #tpu.memory_space<vmem>>) attributes {dimension_semantics = [#tpu.dimension_semantics<arbitrary>], iteration_bounds = array<i64: 1>, scalar_prefetch = 0 : i64, scratch_operands = 0 : i64, tpu.core_type = #tpu.core_type<tc>, window_params = [{pipeline_mode = #tpu.pipeline_mode<synchronous>, transform_indices = @transform_0, window_bounds = array<i64: 8, 128>}, {pipeline_mode = #tpu.pipeline_mode<synchronous>, transform_indices = @transform_1, window_bounds = array<i64: 8, 4, 24>}, {pipeline_mode = #tpu.pipeline_mode<synchronous>, transform_indices = @transform_2, window_bounds = array<i64: 36, 128>}, {pipeline_mode = #tpu.pipeline_mode<synchronous>, transform_indices = @transform_3, window_bounds = array<i64: 4, 128>}]} {
    %c0 = arith.constant 0 : index
    %c0_0 = arith.constant 0 : index
    %0 = vector.load %arg1[%c0, %c0_0] : memref<8x128xf32, #tpu.memory_space<vmem>>, vector<4x128xf32>
    %c4 = arith.constant 4 : index
    %c0_1 = arith.constant 0 : index
    %1 = vector.load %arg1[%c4, %c0_1] : memref<8x128xf32, #tpu.memory_space<vmem>>, vector<4x128xf32>
    %cst = arith.constant 1.000000e+10 : f32
    %2 = vector.broadcast %cst : f32 to vector<4x128xf32>
    %c-1_i32 = arith.constant -1 : i32
    %3 = vector.broadcast %c-1_i32 : i32 to vector<4x128xi32>
    %cst_2 = arith.constant -1.000000e+00 : f32
    %4 = vector.broadcast %cst_2 : f32 to vector<4x128xf32>
    %cst_3 = arith.constant -1.000000e+00 : f32
    %5 = vector.broadcast %cst_3 : f32 to vector<4x128xf32>
    %cst_4 = arith.constant -1.000000e+00 : f32
    %6 = vector.broadcast %cst_4 : f32 to vector<4x128xf32>
    %c0_5 = arith.constant 0 : index
    %c0_6 = arith.constant 0 : index
    %c0_7 = arith.constant 0 : index
    %7 = vector.load %arg2[%c0_5, %c0_6, %c0_7] : memref<8x4x24xf32, #tpu.memory_space<vmem>>, vector<1x4x1xf32>
    %8 = vector.shape_cast %7 : vector<1x4x1xf32> to vector<4x1xf32>
    %c0_8 = arith.constant 0 : index
    %c0_9 = arith.constant 0 : index
    %c1 = arith.constant 1 : index
    %9 = vector.load %arg2[%c0_8, %c0_9, %c1] : memref<8x4x24xf32, #tpu.memory_space<vmem>>, vector<1x4x1xf32>
    %10 = vector.shape_cast %9 : vector<1x4x1xf32> to vector<4x1xf32>
    %c0_10 = arith.constant 0 : index
    %c0_11 = arith.constant 0 : index
    %c2 = arith.constant 2 : index
    %11 = vector.load %arg2[%c0_10, %c0_11, %c2] : memref<8x4x24xf32, #tpu.memory_space<vmem>>, vector<1x4x1xf32>
    %12 = vector.shape_cast %11 : vector<1x4x1xf32> to vector<4x1xf32>
    %c0_12 = arith.constant 0 : index
    %c0_13 = arith.constant 0 : index
    %c3 = arith.constant 3 : index
    %13 = vector.load %arg2[%c0_12, %c0_13, %c3] : memref<8x4x24xf32, #tpu.memory_space<vmem>>, vector<1x4x1xf32>
    %14 = vector.shape_cast %13 : vector<1x4x1xf32> to vector<4x1xf32>
    %c0_14 = arith.constant 0 : index
    %c0_15 = arith.constant 0 : index
    %c4_16 = arith.constant 4 : index
    %15 = vector.load %arg2[%c0_14, %c0_15, %c4_16] : memref<8x4x24xf32, #tpu.memory_space<vmem>>, vector<1x4x1xf32>
    %16 = vector.shape_cast %15 : vector<1x4x1xf32> to vector<4x1xf32>
    %c0_17 = arith.constant 0 : index
    %c0_18 = arith.constant 0 : index
    %c5 = arith.constant 5 : index
    %17 = vector.load %arg2[%c0_17, %c0_18, %c5] : memref<8x4x24xf32, #tpu.memory_space<vmem>>, vector<1x4x1xf32>
    %18 = vector.shape_cast %17 : vector<1x4x1xf32> to vector<4x1xf32>
    %c0_19 = arith.constant 0 : index
    %c0_20 = arith.constant 0 : index
    %c6 = arith.constant 6 : index
    %19 = vector.load %arg2[%c0_19, %c0_20, %c6] : memref<8x4x24xf32, #tpu.memory_space<vmem>>, vector<1x4x1xf32>
    %20 = vector.shape_cast %19 : vector<1x4x1xf32> to vector<4x1xf32>
    %c0_21 = arith.constant 0 : index
    %c0_22 = arith.constant 0 : index
    %c7 = arith.constant 7 : index
    %21 = vector.load %arg2[%c0_21, %c0_22, %c7] : memref<8x4x24xf32, #tpu.memory_space<vmem>>, vector<1x4x1xf32>
    %22 = vector.shape_cast %21 : vector<1x4x1xf32> to vector<4x1xf32>
    %c0_23 = arith.constant 0 : index
    %c0_24 = arith.constant 0 : index
    %c8 = arith.constant 8 : index
    %23 = vector.load %arg2[%c0_23, %c0_24, %c8] : memref<8x4x24xf32, #tpu.memory_space<vmem>>, vector<1x4x1xf32>
    %24 = vector.shape_cast %23 : vector<1x4x1xf32> to vector<4x1xf32>
    %c0_25 = arith.constant 0 : index
    %c0_26 = arith.constant 0 : index
    %c9 = arith.constant 9 : index
    %25 = vector.load %arg2[%c0_25, %c0_26, %c9] : memref<8x4x24xf32, #tpu.memory_space<vmem>>, vector<1x4x1xf32>
    %26 = vector.shape_cast %25 : vector<1x4x1xf32> to vector<4x1xf32>
    %c0_27 = arith.constant 0 : index
    %c0_28 = arith.constant 0 : index
    %c10 = arith.constant 10 : index
    %27 = vector.load %arg2[%c0_27, %c0_28, %c10] : memref<8x4x24xf32, #tpu.memory_space<vmem>>, vector<1x4x1xf32>
    %28 = vector.shape_cast %27 : vector<1x4x1xf32> to vector<4x1xf32>
    %c0_29 = arith.constant 0 : index
    %c0_30 = arith.constant 0 : index
    %c11 = arith.constant 11 : index
    %29 = vector.load %arg2[%c0_29, %c0_30, %c11] : memref<8x4x24xf32, #tpu.memory_space<vmem>>, vector<1x4x1xf32>
    %30 = vector.shape_cast %29 : vector<1x4x1xf32> to vector<4x1xf32>
    %31 = vector.broadcast %8 : vector<4x1xf32> to vector<4x128xf32>
    %32 = arith.mulf %31, %0 : vector<4x128xf32>
    %33 = vector.broadcast %10 : vector<4x1xf32> to vector<4x128xf32>
    %34 = arith.mulf %33, %1 : vector<4x128xf32>
    %35 = arith.addf %32, %34 : vector<4x128xf32>
    %36 = vector.broadcast %12 : vector<4x1xf32> to vector<4x128xf32>
    %37 = arith.addf %35, %36 : vector<4x128xf32>
    %38 = vector.broadcast %14 : vector<4x1xf32> to vector<4x128xf32>
    %39 = arith.mulf %38, %0 : vector<4x128xf32>
    %40 = vector.broadcast %16 : vector<4x1xf32> to vector<4x128xf32>
    %41 = arith.mulf %40, %1 : vector<4x128xf32>
    %42 = arith.addf %39, %41 : vector<4x128xf32>
    %43 = vector.broadcast %18 : vector<4x1xf32> to vector<4x128xf32>
    %44 = arith.addf %42, %43 : vector<4x128xf32>
    %45 = vector.broadcast %20 : vector<4x1xf32> to vector<4x128xf32>
    %46 = arith.mulf %45, %0 : vector<4x128xf32>
    %47 = vector.broadcast %22 : vector<4x1xf32> to vector<4x128xf32>
    %48 = arith.mulf %47, %1 : vector<4x128xf32>
    %49 = arith.addf %46, %48 : vector<4x128xf32>
    %50 = vector.broadcast %24 : vector<4x1xf32> to vector<4x128xf32>
    %51 = arith.addf %49, %50 : vector<4x128xf32>
    %cst_31 = arith.constant 0.000000e+00 : f32
    %52 = vector.broadcast %cst_31 : f32 to vector<4x128xf32>
    %53 = arith.cmpf oge, %37, %52 : vector<4x128xf32>
    %cst_32 = arith.constant 0.000000e+00 : f32
    %54 = vector.broadcast %cst_32 : f32 to vector<4x128xf32>
    %55 = arith.cmpf oge, %44, %54 : vector<4x128xf32>
    %56 = arith.andi %53, %55 : vector<4x128xi1>
    %cst_33 = arith.constant 0.000000e+00 : f32
    %57 = vector.broadcast %cst_33 : f32 to vector<4x128xf32>
    %58 = arith.cmpf oge, %51, %57 : vector<4x128xf32>
    %59 = arith.andi %56, %58 : vector<4x128xi1>
    %60 = vector.broadcast %26 : vector<4x1xf32> to vector<4x128xf32>
    %61 = arith.mulf %37, %60 : vector<4x128xf32>
    %62 = vector.broadcast %28 : vector<4x1xf32> to vector<4x128xf32>
    %63 = arith.mulf %44, %62 : vector<4x128xf32>
    %64 = arith.addf %61, %63 : vector<4x128xf32>
    %65 = vector.broadcast %30 : vector<4x1xf32> to vector<4x128xf32>
    %66 = arith.mulf %51, %65 : vector<4x128xf32>
    %67 = arith.addf %64, %66 : vector<4x128xf32>
    %cst_34 = arith.constant 0.000000e+00 : f32
    %68 = vector.broadcast %cst_34 : f32 to vector<4x128xf32>
    %69 = arith.cmpf ogt, %67, %68 : vector<4x128xf32>
    %70 = arith.andi %59, %69 : vector<4x128xi1>
    %71 = arith.cmpf olt, %67, %2 : vector<4x128xf32>
    %72 = arith.andi %70, %71 : vector<4x128xi1>
    %73 = arith.select %72, %67, %2 : vector<4x128xi1>, vector<4x128xf32>
    %c0_i32 = arith.constant 0 : i32
    %74 = vector.broadcast %c0_i32 : i32 to vector<4x128xi32>
    %75 = arith.select %72, %74, %3 : vector<4x128xi1>, vector<4x128xi32>
    %76 = arith.select %72, %37, %4 : vector<4x128xi1>, vector<4x128xf32>
    %77 = arith.select %72, %44, %5 : vector<4x128xi1>, vector<4x128xf32>
    %78 = arith.select %72, %51, %6 : vector<4x128xi1>, vector<4x128xf32>
    %c1_35 = arith.constant 1 : index
    %c0_36 = arith.constant 0 : index
    %c0_37 = arith.constant 0 : index
    %79 = vector.load %arg2[%c1_35, %c0_36, %c0_37] : memref<8x4x24xf32, #tpu.memory_space<vmem>>, vector<1x4x1xf32>
    %80 = vector.shape_cast %79 : vector<1x4x1xf32> to vector<4x1xf32>
    %c1_38 = arith.constant 1 : index
    %c0_39 = arith.constant 0 : index
    %c1_40 = arith.constant 1 : index
    %81 = vector.load %arg2[%c1_38, %c0_39, %c1_40] : memref<8x4x24xf32, #tpu.memory_space<vmem>>, vector<1x4x1xf32>
    %82 = vector.shape_cast %81 : vector<1x4x1xf32> to vector<4x1xf32>
    %c1_41 = arith.constant 1 : index
    %c0_42 = arith.constant 0 : index
    %c2_43 = arith.constant 2 : index
    %83 = vector.load %arg2[%c1_41, %c0_42, %c2_43] : memref<8x4x24xf32, #tpu.memory_space<vmem>>, vector<1x4x1xf32>
    %84 = vector.shape_cast %83 : vector<1x4x1xf32> to vector<4x1xf32>
    %c1_44 = arith.constant 1 : index
    %c0_45 = arith.constant 0 : index
    %c3_46 = arith.constant 3 : index
    %85 = vector.load %arg2[%c1_44, %c0_45, %c3_46] : memref<8x4x24xf32, #tpu.memory_space<vmem>>, vector<1x4x1xf32>
    %86 = vector.shape_cast %85 : vector<1x4x1xf32> to vector<4x1xf32>
    %c1_47 = arith.constant 1 : index
    %c0_48 = arith.constant 0 : index
    %c4_49 = arith.constant 4 : index
    %87 = vector.load %arg2[%c1_47, %c0_48, %c4_49] : memref<8x4x24xf32, #tpu.memory_space<vmem>>, vector<1x4x1xf32>
    %88 = vector.shape_cast %87 : vector<1x4x1xf32> to vector<4x1xf32>
    %c1_50 = arith.constant 1 : index
    %c0_51 = arith.constant 0 : index
    %c5_52 = arith.constant 5 : index
    %89 = vector.load %arg2[%c1_50, %c0_51, %c5_52] : memref<8x4x24xf32, #tpu.memory_space<vmem>>, vector<1x4x1xf32>
    %90 = vector.shape_cast %89 : vector<1x4x1xf32> to vector<4x1xf32>
    %c1_53 = arith.constant 1 : index
    %c0_54 = arith.constant 0 : index
    %c6_55 = arith.constant 6 : index
    %91 = vector.load %arg2[%c1_53, %c0_54, %c6_55] : memref<8x4x24xf32, #tpu.memory_space<vmem>>, vector<1x4x1xf32>
    %92 = vector.shape_cast %91 : vector<1x4x1xf32> to vector<4x1xf32>
    %c1_56 = arith.constant 1 : index
    %c0_57 = arith.constant 0 : index
    %c7_58 = arith.constant 7 : index
    %93 = vector.load %arg2[%c1_56, %c0_57, %c7_58] : memref<8x4x24xf32, #tpu.memory_space<vmem>>, vector<1x4x1xf32>
    %94 = vector.shape_cast %93 : vector<1x4x1xf32> to vector<4x1xf32>
    %c1_59 = arith.constant 1 : index
    %c0_60 = arith.constant 0 : index
    %c8_61 = arith.constant 8 : index
    %95 = vector.load %arg2[%c1_59, %c0_60, %c8_61] : memref<8x4x24xf32, #tpu.memory_space<vmem>>, vector<1x4x1xf32>
    %96 = vector.shape_cast %95 : vector<1x4x1xf32> to vector<4x1xf32>
    %c1_62 = arith.constant 1 : index
    %c0_63 = arith.constant 0 : index
    %c9_64 = arith.constant 9 : index
    %97 = vector.load %arg2[%c1_62, %c0_63, %c9_64] : memref<8x4x24xf32, #tpu.memory_space<vmem>>, vector<1x4x1xf32>
    %98 = vector.shape_cast %97 : vector<1x4x1xf32> to vector<4x1xf32>
    %c1_65 = arith.constant 1 : index
    %c0_66 = arith.constant 0 : index
    %c10_67 = arith.constant 10 : index
    %99 = vector.load %arg2[%c1_65, %c0_66, %c10_67] : memref<8x4x24xf32, #tpu.memory_space<vmem>>, vector<1x4x1xf32>
    %100 = vector.shape_cast %99 : vector<1x4x1xf32> to vector<4x1xf32>
    %c1_68 = arith.constant 1 : index
    %c0_69 = arith.constant 0 : index
    %c11_70 = arith.constant 11 : index
    %101 = vector.load %arg2[%c1_68, %c0_69, %c11_70] : memref<8x4x24xf32, #tpu.memory_space<vmem>>, vector<1x4x1xf32>
    %102 = vector.shape_cast %101 : vector<1x4x1xf32> to vector<4x1xf32>
    %103 = vector.broadcast %80 : vector<4x1xf32> to vector<4x128xf32>
    %104 = arith.mulf %103, %0 : vector<4x128xf32>
    %105 = vector.broadcast %82 : vector<4x1xf32> to vector<4x128xf32>
    %106 = arith.mulf %105, %1 : vector<4x128xf32>
    %107 = arith.addf %104, %106 : vector<4x128xf32>
    %108 = vector.broadcast %84 : vector<4x1xf32> to vector<4x128xf32>
    %109 = arith.addf %107, %108 : vector<4x128xf32>
    %110 = vector.broadcast %86 : vector<4x1xf32> to vector<4x128xf32>
    %111 = arith.mulf %110, %0 : vector<4x128xf32>
    %112 = vector.broadcast %88 : vector<4x1xf32> to vector<4x128xf32>
    %113 = arith.mulf %112, %1 : vector<4x128xf32>
    %114 = arith.addf %111, %113 : vector<4x128xf32>
    %115 = vector.broadcast %90 : vector<4x1xf32> to vector<4x128xf32>
    %116 = arith.addf %114, %115 : vector<4x128xf32>
    %117 = vector.broadcast %92 : vector<4x1xf32> to vector<4x128xf32>
    %118 = arith.mulf %117, %0 : vector<4x128xf32>
    %119 = vector.broadcast %94 : vector<4x1xf32> to vector<4x128xf32>
    %120 = arith.mulf %119, %1 : vector<4x128xf32>
    %121 = arith.addf %118, %120 : vector<4x128xf32>
    %122 = vector.broadcast %96 : vector<4x1xf32> to vector<4x128xf32>
    %123 = arith.addf %121, %122 : vector<4x128xf32>
    %cst_71 = arith.constant 0.000000e+00 : f32
    %124 = vector.broadcast %cst_71 : f32 to vector<4x128xf32>
    %125 = arith.cmpf oge, %109, %124 : vector<4x128xf32>
    %cst_72 = arith.constant 0.000000e+00 : f32
    %126 = vector.broadcast %cst_72 : f32 to vector<4x128xf32>
    %127 = arith.cmpf oge, %116, %126 : vector<4x128xf32>
    %128 = arith.andi %125, %127 : vector<4x128xi1>
    %cst_73 = arith.constant 0.000000e+00 : f32
    %129 = vector.broadcast %cst_73 : f32 to vector<4x128xf32>
    %130 = arith.cmpf oge, %123, %129 : vector<4x128xf32>
    %131 = arith.andi %128, %130 : vector<4x128xi1>
    %132 = vector.broadcast %98 : vector<4x1xf32> to vector<4x128xf32>
    %133 = arith.mulf %109, %132 : vector<4x128xf32>
    %134 = vector.broadcast %100 : vector<4x1xf32> to vector<4x128xf32>
    %135 = arith.mulf %116, %134 : vector<4x128xf32>
    %136 = arith.addf %133, %135 : vector<4x128xf32>
    %137 = vector.broadcast %102 : vector<4x1xf32> to vector<4x128xf32>
    %138 = arith.mulf %123, %137 : vector<4x128xf32>
    %139 = arith.addf %136, %138 : vector<4x128xf32>
    %cst_74 = arith.constant 0.000000e+00 : f32
    %140 = vector.broadcast %cst_74 : f32 to vector<4x128xf32>
    %141 = arith.cmpf ogt, %139, %140 : vector<4x128xf32>
    %142 = arith.andi %131, %141 : vector<4x128xi1>
    %143 = arith.cmpf olt, %139, %73 : vector<4x128xf32>
    %144 = arith.andi %142, %143 : vector<4x128xi1>
    %145 = arith.select %144, %139, %73 : vector<4x128xi1>, vector<4x128xf32>
    %c1_i32 = arith.constant 1 : i32
    %146 = vector.broadcast %c1_i32 : i32 to vector<4x128xi32>
    %147 = arith.select %144, %146, %75 : vector<4x128xi1>, vector<4x128xi32>
    %148 = arith.select %144, %109, %76 : vector<4x128xi1>, vector<4x128xf32>
    %149 = arith.select %144, %116, %77 : vector<4x128xi1>, vector<4x128xf32>
    %150 = arith.select %144, %123, %78 : vector<4x128xi1>, vector<4x128xf32>
    %c2_75 = arith.constant 2 : index
    %c0_76 = arith.constant 0 : index
    %c0_77 = arith.constant 0 : index
    %151 = vector.load %arg2[%c2_75, %c0_76, %c0_77] : memref<8x4x24xf32, #tpu.memory_space<vmem>>, vector<1x4x1xf32>
    %152 = vector.shape_cast %151 : vector<1x4x1xf32> to vector<4x1xf32>
    %c2_78 = arith.constant 2 : index
    %c0_79 = arith.constant 0 : index
    %c1_80 = arith.constant 1 : index
    %153 = vector.load %arg2[%c2_78, %c0_79, %c1_80] : memref<8x4x24xf32, #tpu.memory_space<vmem>>, vector<1x4x1xf32>
    %154 = vector.shape_cast %153 : vector<1x4x1xf32> to vector<4x1xf32>
    %c2_81 = arith.constant 2 : index
    %c0_82 = arith.constant 0 : index
    %c2_83 = arith.constant 2 : index
    %155 = vector.load %arg2[%c2_81, %c0_82, %c2_83] : memref<8x4x24xf32, #tpu.memory_space<vmem>>, vector<1x4x1xf32>
    %156 = vector.shape_cast %155 : vector<1x4x1xf32> to vector<4x1xf32>
    %c2_84 = arith.constant 2 : index
    %c0_85 = arith.constant 0 : index
    %c3_86 = arith.constant 3 : index
    %157 = vector.load %arg2[%c2_84, %c0_85, %c3_86] : memref<8x4x24xf32, #tpu.memory_space<vmem>>, vector<1x4x1xf32>
    %158 = vector.shape_cast %157 : vector<1x4x1xf32> to vector<4x1xf32>
    %c2_87 = arith.constant 2 : index
    %c0_88 = arith.constant 0 : index
    %c4_89 = arith.constant 4 : index
    %159 = vector.load %arg2[%c2_87, %c0_88, %c4_89] : memref<8x4x24xf32, #tpu.memory_space<vmem>>, vector<1x4x1xf32>
    %160 = vector.shape_cast %159 : vector<1x4x1xf32> to vector<4x1xf32>
    %c2_90 = arith.constant 2 : index
    %c0_91 = arith.constant 0 : index
    %c5_92 = arith.constant 5 : index
    %161 = vector.load %arg2[%c2_90, %c0_91, %c5_92] : memref<8x4x24xf32, #tpu.memory_space<vmem>>, vector<1x4x1xf32>
    %162 = vector.shape_cast %161 : vector<1x4x1xf32> to vector<4x1xf32>
    %c2_93 = arith.constant 2 : index
    %c0_94 = arith.constant 0 : index
    %c6_95 = arith.constant 6 : index
    %163 = vector.load %arg2[%c2_93, %c0_94, %c6_95] : memref<8x4x24xf32, #tpu.memory_space<vmem>>, vector<1x4x1xf32>
    %164 = vector.shape_cast %163 : vector<1x4x1xf32> to vector<4x1xf32>
    %c2_96 = arith.constant 2 : index
    %c0_97 = arith.constant 0 : index
    %c7_98 = arith.constant 7 : index
    %165 = vector.load %arg2[%c2_96, %c0_97, %c7_98] : memref<8x4x24xf32, #tpu.memory_space<vmem>>, vector<1x4x1xf32>
    %166 = vector.shape_cast %165 : vector<1x4x1xf32> to vector<4x1xf32>
    %c2_99 = arith.constant 2 : index
    %c0_100 = arith.constant 0 : index
    %c8_101 = arith.constant 8 : index
    %167 = vector.load %arg2[%c2_99, %c0_100, %c8_101] : memref<8x4x24xf32, #tpu.memory_space<vmem>>, vector<1x4x1xf32>
    %168 = vector.shape_cast %167 : vector<1x4x1xf32> to vector<4x1xf32>
    %c2_102 = arith.constant 2 : index
    %c0_103 = arith.constant 0 : index
    %c9_104 = arith.constant 9 : index
    %169 = vector.load %arg2[%c2_102, %c0_103, %c9_104] : memref<8x4x24xf32, #tpu.memory_space<vmem>>, vector<1x4x1xf32>
    %170 = vector.shape_cast %169 : vector<1x4x1xf32> to vector<4x1xf32>
    %c2_105 = arith.constant 2 : index
    %c0_106 = arith.constant 0 : index
    %c10_107 = arith.constant 10 : index
    %171 = vector.load %arg2[%c2_105, %c0_106, %c10_107] : memref<8x4x24xf32, #tpu.memory_space<vmem>>, vector<1x4x1xf32>
    %172 = vector.shape_cast %171 : vector<1x4x1xf32> to vector<4x1xf32>
    %c2_108 = arith.constant 2 : index
    %c0_109 = arith.constant 0 : index
    %c11_110 = arith.constant 11 : index
    %173 = vector.load %arg2[%c2_108, %c0_109, %c11_110] : memref<8x4x24xf32, #tpu.memory_space<vmem>>, vector<1x4x1xf32>
    %174 = vector.shape_cast %173 : vector<1x4x1xf32> to vector<4x1xf32>
    %175 = vector.broadcast %152 : vector<4x1xf32> to vector<4x128xf32>
    %176 = arith.mulf %175, %0 : vector<4x128xf32>
    %177 = vector.broadcast %154 : vector<4x1xf32> to vector<4x128xf32>
    %178 = arith.mulf %177, %1 : vector<4x128xf32>
    %179 = arith.addf %176, %178 : vector<4x128xf32>
    %180 = vector.broadcast %156 : vector<4x1xf32> to vector<4x128xf32>
    %181 = arith.addf %179, %180 : vector<4x128xf32>
    %182 = vector.broadcast %158 : vector<4x1xf32> to vector<4x128xf32>
    %183 = arith.mulf %182, %0 : vector<4x128xf32>
    %184 = vector.broadcast %160 : vector<4x1xf32> to vector<4x128xf32>
    %185 = arith.mulf %184, %1 : vector<4x128xf32>
    %186 = arith.addf %183, %185 : vector<4x128xf32>
    %187 = vector.broadcast %162 : vector<4x1xf32> to vector<4x128xf32>
    %188 = arith.addf %186, %187 : vector<4x128xf32>
    %189 = vector.broadcast %164 : vector<4x1xf32> to vector<4x128xf32>
    %190 = arith.mulf %189, %0 : vector<4x128xf32>
    %191 = vector.broadcast %166 : vector<4x1xf32> to vector<4x128xf32>
    %192 = arith.mulf %191, %1 : vector<4x128xf32>
    %193 = arith.addf %190, %192 : vector<4x128xf32>
    %194 = vector.broadcast %168 : vector<4x1xf32> to vector<4x128xf32>
    %195 = arith.addf %193, %194 : vector<4x128xf32>
    %cst_111 = arith.constant 0.000000e+00 : f32
    %196 = vector.broadcast %cst_111 : f32 to vector<4x128xf32>
    %197 = arith.cmpf oge, %181, %196 : vector<4x128xf32>
    %cst_112 = arith.constant 0.000000e+00 : f32
    %198 = vector.broadcast %cst_112 : f32 to vector<4x128xf32>
    %199 = arith.cmpf oge, %188, %198 : vector<4x128xf32>
    %200 = arith.andi %197, %199 : vector<4x128xi1>
    %cst_113 = arith.constant 0.000000e+00 : f32
    %201 = vector.broadcast %cst_113 : f32 to vector<4x128xf32>
    %202 = arith.cmpf oge, %195, %201 : vector<4x128xf32>
    %203 = arith.andi %200, %202 : vector<4x128xi1>
    %204 = vector.broadcast %170 : vector<4x1xf32> to vector<4x128xf32>
    %205 = arith.mulf %181, %204 : vector<4x128xf32>
    %206 = vector.broadcast %172 : vector<4x1xf32> to vector<4x128xf32>
    %207 = arith.mulf %188, %206 : vector<4x128xf32>
    %208 = arith.addf %205, %207 : vector<4x128xf32>
    %209 = vector.broadcast %174 : vector<4x1xf32> to vector<4x128xf32>
    %210 = arith.mulf %195, %209 : vector<4x128xf32>
    %211 = arith.addf %208, %210 : vector<4x128xf32>
    %cst_114 = arith.constant 0.000000e+00 : f32
    %212 = vector.broadcast %cst_114 : f32 to vector<4x128xf32>
    %213 = arith.cmpf ogt, %211, %212 : vector<4x128xf32>
    %214 = arith.andi %203, %213 : vector<4x128xi1>
    %215 = arith.cmpf olt, %211, %145 : vector<4x128xf32>
    %216 = arith.andi %214, %215 : vector<4x128xi1>
    %217 = arith.select %216, %211, %145 : vector<4x128xi1>, vector<4x128xf32>
    %c2_i32 = arith.constant 2 : i32
    %218 = vector.broadcast %c2_i32 : i32 to vector<4x128xi32>
    %219 = arith.select %216, %218, %147 : vector<4x128xi1>, vector<4x128xi32>
    %220 = arith.select %216, %181, %148 : vector<4x128xi1>, vector<4x128xf32>
    %221 = arith.select %216, %188, %149 : vector<4x128xi1>, vector<4x128xf32>
    %222 = arith.select %216, %195, %150 : vector<4x128xi1>, vector<4x128xf32>
    %c3_115 = arith.constant 3 : index
    %c0_116 = arith.constant 0 : index
    %c0_117 = arith.constant 0 : index
    %223 = vector.load %arg2[%c3_115, %c0_116, %c0_117] : memref<8x4x24xf32, #tpu.memory_space<vmem>>, vector<1x4x1xf32>
    %224 = vector.shape_cast %223 : vector<1x4x1xf32> to vector<4x1xf32>
    %c3_118 = arith.constant 3 : index
    %c0_119 = arith.constant 0 : index
    %c1_120 = arith.constant 1 : index
    %225 = vector.load %arg2[%c3_118, %c0_119, %c1_120] : memref<8x4x24xf32, #tpu.memory_space<vmem>>, vector<1x4x1xf32>
    %226 = vector.shape_cast %225 : vector<1x4x1xf32> to vector<4x1xf32>
    %c3_121 = arith.constant 3 : index
    %c0_122 = arith.constant 0 : index
    %c2_123 = arith.constant 2 : index
    %227 = vector.load %arg2[%c3_121, %c0_122, %c2_123] : memref<8x4x24xf32, #tpu.memory_space<vmem>>, vector<1x4x1xf32>
    %228 = vector.shape_cast %227 : vector<1x4x1xf32> to vector<4x1xf32>
    %c3_124 = arith.constant 3 : index
    %c0_125 = arith.constant 0 : index
    %c3_126 = arith.constant 3 : index
    %229 = vector.load %arg2[%c3_124, %c0_125, %c3_126] : memref<8x4x24xf32, #tpu.memory_space<vmem>>, vector<1x4x1xf32>
    %230 = vector.shape_cast %229 : vector<1x4x1xf32> to vector<4x1xf32>
    %c3_127 = arith.constant 3 : index
    %c0_128 = arith.constant 0 : index
    %c4_129 = arith.constant 4 : index
    %231 = vector.load %arg2[%c3_127, %c0_128, %c4_129] : memref<8x4x24xf32, #tpu.memory_space<vmem>>, vector<1x4x1xf32>
    %232 = vector.shape_cast %231 : vector<1x4x1xf32> to vector<4x1xf32>
    %c3_130 = arith.constant 3 : index
    %c0_131 = arith.constant 0 : index
    %c5_132 = arith.constant 5 : index
    %233 = vector.load %arg2[%c3_130, %c0_131, %c5_132] : memref<8x4x24xf32, #tpu.memory_space<vmem>>, vector<1x4x1xf32>
    %234 = vector.shape_cast %233 : vector<1x4x1xf32> to vector<4x1xf32>
    %c3_133 = arith.constant 3 : index
    %c0_134 = arith.constant 0 : index
    %c6_135 = arith.constant 6 : index
    %235 = vector.load %arg2[%c3_133, %c0_134, %c6_135] : memref<8x4x24xf32, #tpu.memory_space<vmem>>, vector<1x4x1xf32>
    %236 = vector.shape_cast %235 : vector<1x4x1xf32> to vector<4x1xf32>
    %c3_136 = arith.constant 3 : index
    %c0_137 = arith.constant 0 : index
    %c7_138 = arith.constant 7 : index
    %237 = vector.load %arg2[%c3_136, %c0_137, %c7_138] : memref<8x4x24xf32, #tpu.memory_space<vmem>>, vector<1x4x1xf32>
    %238 = vector.shape_cast %237 : vector<1x4x1xf32> to vector<4x1xf32>
    %c3_139 = arith.constant 3 : index
    %c0_140 = arith.constant 0 : index
    %c8_141 = arith.constant 8 : index
    %239 = vector.load %arg2[%c3_139, %c0_140, %c8_141] : memref<8x4x24xf32, #tpu.memory_space<vmem>>, vector<1x4x1xf32>
    %240 = vector.shape_cast %239 : vector<1x4x1xf32> to vector<4x1xf32>
    %c3_142 = arith.constant 3 : index
    %c0_143 = arith.constant 0 : index
    %c9_144 = arith.constant 9 : index
    %241 = vector.load %arg2[%c3_142, %c0_143, %c9_144] : memref<8x4x24xf32, #tpu.memory_space<vmem>>, vector<1x4x1xf32>
    %242 = vector.shape_cast %241 : vector<1x4x1xf32> to vector<4x1xf32>
    %c3_145 = arith.constant 3 : index
    %c0_146 = arith.constant 0 : index
    %c10_147 = arith.constant 10 : index
    %243 = vector.load %arg2[%c3_145, %c0_146, %c10_147] : memref<8x4x24xf32, #tpu.memory_space<vmem>>, vector<1x4x1xf32>
    %244 = vector.shape_cast %243 : vector<1x4x1xf32> to vector<4x1xf32>
    %c3_148 = arith.constant 3 : index
    %c0_149 = arith.constant 0 : index
    %c11_150 = arith.constant 11 : index
    %245 = vector.load %arg2[%c3_148, %c0_149, %c11_150] : memref<8x4x24xf32, #tpu.memory_space<vmem>>, vector<1x4x1xf32>
    %246 = vector.shape_cast %245 : vector<1x4x1xf32> to vector<4x1xf32>
    %247 = vector.broadcast %224 : vector<4x1xf32> to vector<4x128xf32>
    %248 = arith.mulf %247, %0 : vector<4x128xf32>
    %249 = vector.broadcast %226 : vector<4x1xf32> to vector<4x128xf32>
    %250 = arith.mulf %249, %1 : vector<4x128xf32>
    %251 = arith.addf %248, %250 : vector<4x128xf32>
    %252 = vector.broadcast %228 : vector<4x1xf32> to vector<4x128xf32>
    %253 = arith.addf %251, %252 : vector<4x128xf32>
    %254 = vector.broadcast %230 : vector<4x1xf32> to vector<4x128xf32>
    %255 = arith.mulf %254, %0 : vector<4x128xf32>
    %256 = vector.broadcast %232 : vector<4x1xf32> to vector<4x128xf32>
    %257 = arith.mulf %256, %1 : vector<4x128xf32>
    %258 = arith.addf %255, %257 : vector<4x128xf32>
    %259 = vector.broadcast %234 : vector<4x1xf32> to vector<4x128xf32>
    %260 = arith.addf %258, %259 : vector<4x128xf32>
    %261 = vector.broadcast %236 : vector<4x1xf32> to vector<4x128xf32>
    %262 = arith.mulf %261, %0 : vector<4x128xf32>
    %263 = vector.broadcast %238 : vector<4x1xf32> to vector<4x128xf32>
    %264 = arith.mulf %263, %1 : vector<4x128xf32>
    %265 = arith.addf %262, %264 : vector<4x128xf32>
    %266 = vector.broadcast %240 : vector<4x1xf32> to vector<4x128xf32>
    %267 = arith.addf %265, %266 : vector<4x128xf32>
    %cst_151 = arith.constant 0.000000e+00 : f32
    %268 = vector.broadcast %cst_151 : f32 to vector<4x128xf32>
    %269 = arith.cmpf oge, %253, %268 : vector<4x128xf32>
    %cst_152 = arith.constant 0.000000e+00 : f32
    %270 = vector.broadcast %cst_152 : f32 to vector<4x128xf32>
    %271 = arith.cmpf oge, %260, %270 : vector<4x128xf32>
    %272 = arith.andi %269, %271 : vector<4x128xi1>
    %cst_153 = arith.constant 0.000000e+00 : f32
    %273 = vector.broadcast %cst_153 : f32 to vector<4x128xf32>
    %274 = arith.cmpf oge, %267, %273 : vector<4x128xf32>
    %275 = arith.andi %272, %274 : vector<4x128xi1>
    %276 = vector.broadcast %242 : vector<4x1xf32> to vector<4x128xf32>
    %277 = arith.mulf %253, %276 : vector<4x128xf32>
    %278 = vector.broadcast %244 : vector<4x1xf32> to vector<4x128xf32>
    %279 = arith.mulf %260, %278 : vector<4x128xf32>
    %280 = arith.addf %277, %279 : vector<4x128xf32>
    %281 = vector.broadcast %246 : vector<4x1xf32> to vector<4x128xf32>
    %282 = arith.mulf %267, %281 : vector<4x128xf32>
    %283 = arith.addf %280, %282 : vector<4x128xf32>
    %cst_154 = arith.constant 0.000000e+00 : f32
    %284 = vector.broadcast %cst_154 : f32 to vector<4x128xf32>
    %285 = arith.cmpf ogt, %283, %284 : vector<4x128xf32>
    %286 = arith.andi %275, %285 : vector<4x128xi1>
    %287 = arith.cmpf olt, %283, %217 : vector<4x128xf32>
    %288 = arith.andi %286, %287 : vector<4x128xi1>
    %289 = arith.select %288, %283, %217 : vector<4x128xi1>, vector<4x128xf32>
    %c3_i32 = arith.constant 3 : i32
    %290 = vector.broadcast %c3_i32 : i32 to vector<4x128xi32>
    %291 = arith.select %288, %290, %219 : vector<4x128xi1>, vector<4x128xi32>
    %292 = arith.select %288, %253, %220 : vector<4x128xi1>, vector<4x128xf32>
    %293 = arith.select %288, %260, %221 : vector<4x128xi1>, vector<4x128xf32>
    %294 = arith.select %288, %267, %222 : vector<4x128xi1>, vector<4x128xf32>
    %c4_155 = arith.constant 4 : index
    %c0_156 = arith.constant 0 : index
    %c0_157 = arith.constant 0 : index
    %295 = vector.load %arg2[%c4_155, %c0_156, %c0_157] : memref<8x4x24xf32, #tpu.memory_space<vmem>>, vector<1x4x1xf32>
    %296 = vector.shape_cast %295 : vector<1x4x1xf32> to vector<4x1xf32>
    %c4_158 = arith.constant 4 : index
    %c0_159 = arith.constant 0 : index
    %c1_160 = arith.constant 1 : index
    %297 = vector.load %arg2[%c4_158, %c0_159, %c1_160] : memref<8x4x24xf32, #tpu.memory_space<vmem>>, vector<1x4x1xf32>
    %298 = vector.shape_cast %297 : vector<1x4x1xf32> to vector<4x1xf32>
    %c4_161 = arith.constant 4 : index
    %c0_162 = arith.constant 0 : index
    %c2_163 = arith.constant 2 : index
    %299 = vector.load %arg2[%c4_161, %c0_162, %c2_163] : memref<8x4x24xf32, #tpu.memory_space<vmem>>, vector<1x4x1xf32>
    %300 = vector.shape_cast %299 : vector<1x4x1xf32> to vector<4x1xf32>
    %c4_164 = arith.constant 4 : index
    %c0_165 = arith.constant 0 : index
    %c3_166 = arith.constant 3 : index
    %301 = vector.load %arg2[%c4_164, %c0_165, %c3_166] : memref<8x4x24xf32, #tpu.memory_space<vmem>>, vector<1x4x1xf32>
    %302 = vector.shape_cast %301 : vector<1x4x1xf32> to vector<4x1xf32>
    %c4_167 = arith.constant 4 : index
    %c0_168 = arith.constant 0 : index
    %c4_169 = arith.constant 4 : index
    %303 = vector.load %arg2[%c4_167, %c0_168, %c4_169] : memref<8x4x24xf32, #tpu.memory_space<vmem>>, vector<1x4x1xf32>
    %304 = vector.shape_cast %303 : vector<1x4x1xf32> to vector<4x1xf32>
    %c4_170 = arith.constant 4 : index
    %c0_171 = arith.constant 0 : index
    %c5_172 = arith.constant 5 : index
    %305 = vector.load %arg2[%c4_170, %c0_171, %c5_172] : memref<8x4x24xf32, #tpu.memory_space<vmem>>, vector<1x4x1xf32>
    %306 = vector.shape_cast %305 : vector<1x4x1xf32> to vector<4x1xf32>
    %c4_173 = arith.constant 4 : index
    %c0_174 = arith.constant 0 : index
    %c6_175 = arith.constant 6 : index
    %307 = vector.load %arg2[%c4_173, %c0_174, %c6_175] : memref<8x4x24xf32, #tpu.memory_space<vmem>>, vector<1x4x1xf32>
    %308 = vector.shape_cast %307 : vector<1x4x1xf32> to vector<4x1xf32>
    %c4_176 = arith.constant 4 : index
    %c0_177 = arith.constant 0 : index
    %c7_178 = arith.constant 7 : index
    %309 = vector.load %arg2[%c4_176, %c0_177, %c7_178] : memref<8x4x24xf32, #tpu.memory_space<vmem>>, vector<1x4x1xf32>
    %310 = vector.shape_cast %309 : vector<1x4x1xf32> to vector<4x1xf32>
    %c4_179 = arith.constant 4 : index
    %c0_180 = arith.constant 0 : index
    %c8_181 = arith.constant 8 : index
    %311 = vector.load %arg2[%c4_179, %c0_180, %c8_181] : memref<8x4x24xf32, #tpu.memory_space<vmem>>, vector<1x4x1xf32>
    %312 = vector.shape_cast %311 : vector<1x4x1xf32> to vector<4x1xf32>
    %c4_182 = arith.constant 4 : index
    %c0_183 = arith.constant 0 : index
    %c9_184 = arith.constant 9 : index
    %313 = vector.load %arg2[%c4_182, %c0_183, %c9_184] : memref<8x4x24xf32, #tpu.memory_space<vmem>>, vector<1x4x1xf32>
    %314 = vector.shape_cast %313 : vector<1x4x1xf32> to vector<4x1xf32>
    %c4_185 = arith.constant 4 : index
    %c0_186 = arith.constant 0 : index
    %c10_187 = arith.constant 10 : index
    %315 = vector.load %arg2[%c4_185, %c0_186, %c10_187] : memref<8x4x24xf32, #tpu.memory_space<vmem>>, vector<1x4x1xf32>
    %316 = vector.shape_cast %315 : vector<1x4x1xf32> to vector<4x1xf32>
    %c4_188 = arith.constant 4 : index
    %c0_189 = arith.constant 0 : index
    %c11_190 = arith.constant 11 : index
    %317 = vector.load %arg2[%c4_188, %c0_189, %c11_190] : memref<8x4x24xf32, #tpu.memory_space<vmem>>, vector<1x4x1xf32>
    %318 = vector.shape_cast %317 : vector<1x4x1xf32> to vector<4x1xf32>
    %319 = vector.broadcast %296 : vector<4x1xf32> to vector<4x128xf32>
    %320 = arith.mulf %319, %0 : vector<4x128xf32>
    %321 = vector.broadcast %298 : vector<4x1xf32> to vector<4x128xf32>
    %322 = arith.mulf %321, %1 : vector<4x128xf32>
    %323 = arith.addf %320, %322 : vector<4x128xf32>
    %324 = vector.broadcast %300 : vector<4x1xf32> to vector<4x128xf32>
    %325 = arith.addf %323, %324 : vector<4x128xf32>
    %326 = vector.broadcast %302 : vector<4x1xf32> to vector<4x128xf32>
    %327 = arith.mulf %326, %0 : vector<4x128xf32>
    %328 = vector.broadcast %304 : vector<4x1xf32> to vector<4x128xf32>
    %329 = arith.mulf %328, %1 : vector<4x128xf32>
    %330 = arith.addf %327, %329 : vector<4x128xf32>
    %331 = vector.broadcast %306 : vector<4x1xf32> to vector<4x128xf32>
    %332 = arith.addf %330, %331 : vector<4x128xf32>
    %333 = vector.broadcast %308 : vector<4x1xf32> to vector<4x128xf32>
    %334 = arith.mulf %333, %0 : vector<4x128xf32>
    %335 = vector.broadcast %310 : vector<4x1xf32> to vector<4x128xf32>
    %336 = arith.mulf %335, %1 : vector<4x128xf32>
    %337 = arith.addf %334, %336 : vector<4x128xf32>
    %338 = vector.broadcast %312 : vector<4x1xf32> to vector<4x128xf32>
    %339 = arith.addf %337, %338 : vector<4x128xf32>
    %cst_191 = arith.constant 0.000000e+00 : f32
    %340 = vector.broadcast %cst_191 : f32 to vector<4x128xf32>
    %341 = arith.cmpf oge, %325, %340 : vector<4x128xf32>
    %cst_192 = arith.constant 0.000000e+00 : f32
    %342 = vector.broadcast %cst_192 : f32 to vector<4x128xf32>
    %343 = arith.cmpf oge, %332, %342 : vector<4x128xf32>
    %344 = arith.andi %341, %343 : vector<4x128xi1>
    %cst_193 = arith.constant 0.000000e+00 : f32
    %345 = vector.broadcast %cst_193 : f32 to vector<4x128xf32>
    %346 = arith.cmpf oge, %339, %345 : vector<4x128xf32>
    %347 = arith.andi %344, %346 : vector<4x128xi1>
    %348 = vector.broadcast %314 : vector<4x1xf32> to vector<4x128xf32>
    %349 = arith.mulf %325, %348 : vector<4x128xf32>
    %350 = vector.broadcast %316 : vector<4x1xf32> to vector<4x128xf32>
    %351 = arith.mulf %332, %350 : vector<4x128xf32>
    %352 = arith.addf %349, %351 : vector<4x128xf32>
    %353 = vector.broadcast %318 : vector<4x1xf32> to vector<4x128xf32>
    %354 = arith.mulf %339, %353 : vector<4x128xf32>
    %355 = arith.addf %352, %354 : vector<4x128xf32>
    %cst_194 = arith.constant 0.000000e+00 : f32
    %356 = vector.broadcast %cst_194 : f32 to vector<4x128xf32>
    %357 = arith.cmpf ogt, %355, %356 : vector<4x128xf32>
    %358 = arith.andi %347, %357 : vector<4x128xi1>
    %359 = arith.cmpf olt, %355, %289 : vector<4x128xf32>
    %360 = arith.andi %358, %359 : vector<4x128xi1>
    %361 = arith.select %360, %355, %289 : vector<4x128xi1>, vector<4x128xf32>
    %c4_i32 = arith.constant 4 : i32
    %362 = vector.broadcast %c4_i32 : i32 to vector<4x128xi32>
    %363 = arith.select %360, %362, %291 : vector<4x128xi1>, vector<4x128xi32>
    %364 = arith.select %360, %325, %292 : vector<4x128xi1>, vector<4x128xf32>
    %365 = arith.select %360, %332, %293 : vector<4x128xi1>, vector<4x128xf32>
    %366 = arith.select %360, %339, %294 : vector<4x128xi1>, vector<4x128xf32>
    %c5_195 = arith.constant 5 : index
    %c0_196 = arith.constant 0 : index
    %c0_197 = arith.constant 0 : index
    %367 = vector.load %arg2[%c5_195, %c0_196, %c0_197] : memref<8x4x24xf32, #tpu.memory_space<vmem>>, vector<1x4x1xf32>
    %368 = vector.shape_cast %367 : vector<1x4x1xf32> to vector<4x1xf32>
    %c5_198 = arith.constant 5 : index
    %c0_199 = arith.constant 0 : index
    %c1_200 = arith.constant 1 : index
    %369 = vector.load %arg2[%c5_198, %c0_199, %c1_200] : memref<8x4x24xf32, #tpu.memory_space<vmem>>, vector<1x4x1xf32>
    %370 = vector.shape_cast %369 : vector<1x4x1xf32> to vector<4x1xf32>
    %c5_201 = arith.constant 5 : index
    %c0_202 = arith.constant 0 : index
    %c2_203 = arith.constant 2 : index
    %371 = vector.load %arg2[%c5_201, %c0_202, %c2_203] : memref<8x4x24xf32, #tpu.memory_space<vmem>>, vector<1x4x1xf32>
    %372 = vector.shape_cast %371 : vector<1x4x1xf32> to vector<4x1xf32>
    %c5_204 = arith.constant 5 : index
    %c0_205 = arith.constant 0 : index
    %c3_206 = arith.constant 3 : index
    %373 = vector.load %arg2[%c5_204, %c0_205, %c3_206] : memref<8x4x24xf32, #tpu.memory_space<vmem>>, vector<1x4x1xf32>
    %374 = vector.shape_cast %373 : vector<1x4x1xf32> to vector<4x1xf32>
    %c5_207 = arith.constant 5 : index
    %c0_208 = arith.constant 0 : index
    %c4_209 = arith.constant 4 : index
    %375 = vector.load %arg2[%c5_207, %c0_208, %c4_209] : memref<8x4x24xf32, #tpu.memory_space<vmem>>, vector<1x4x1xf32>
    %376 = vector.shape_cast %375 : vector<1x4x1xf32> to vector<4x1xf32>
    %c5_210 = arith.constant 5 : index
    %c0_211 = arith.constant 0 : index
    %c5_212 = arith.constant 5 : index
    %377 = vector.load %arg2[%c5_210, %c0_211, %c5_212] : memref<8x4x24xf32, #tpu.memory_space<vmem>>, vector<1x4x1xf32>
    %378 = vector.shape_cast %377 : vector<1x4x1xf32> to vector<4x1xf32>
    %c5_213 = arith.constant 5 : index
    %c0_214 = arith.constant 0 : index
    %c6_215 = arith.constant 6 : index
    %379 = vector.load %arg2[%c5_213, %c0_214, %c6_215] : memref<8x4x24xf32, #tpu.memory_space<vmem>>, vector<1x4x1xf32>
    %380 = vector.shape_cast %379 : vector<1x4x1xf32> to vector<4x1xf32>
    %c5_216 = arith.constant 5 : index
    %c0_217 = arith.constant 0 : index
    %c7_218 = arith.constant 7 : index
    %381 = vector.load %arg2[%c5_216, %c0_217, %c7_218] : memref<8x4x24xf32, #tpu.memory_space<vmem>>, vector<1x4x1xf32>
    %382 = vector.shape_cast %381 : vector<1x4x1xf32> to vector<4x1xf32>
    %c5_219 = arith.constant 5 : index
    %c0_220 = arith.constant 0 : index
    %c8_221 = arith.constant 8 : index
    %383 = vector.load %arg2[%c5_219, %c0_220, %c8_221] : memref<8x4x24xf32, #tpu.memory_space<vmem>>, vector<1x4x1xf32>
    %384 = vector.shape_cast %383 : vector<1x4x1xf32> to vector<4x1xf32>
    %c5_222 = arith.constant 5 : index
    %c0_223 = arith.constant 0 : index
    %c9_224 = arith.constant 9 : index
    %385 = vector.load %arg2[%c5_222, %c0_223, %c9_224] : memref<8x4x24xf32, #tpu.memory_space<vmem>>, vector<1x4x1xf32>
    %386 = vector.shape_cast %385 : vector<1x4x1xf32> to vector<4x1xf32>
    %c5_225 = arith.constant 5 : index
    %c0_226 = arith.constant 0 : index
    %c10_227 = arith.constant 10 : index
    %387 = vector.load %arg2[%c5_225, %c0_226, %c10_227] : memref<8x4x24xf32, #tpu.memory_space<vmem>>, vector<1x4x1xf32>
    %388 = vector.shape_cast %387 : vector<1x4x1xf32> to vector<4x1xf32>
    %c5_228 = arith.constant 5 : index
    %c0_229 = arith.constant 0 : index
    %c11_230 = arith.constant 11 : index
    %389 = vector.load %arg2[%c5_228, %c0_229, %c11_230] : memref<8x4x24xf32, #tpu.memory_space<vmem>>, vector<1x4x1xf32>
    %390 = vector.shape_cast %389 : vector<1x4x1xf32> to vector<4x1xf32>
    %391 = vector.broadcast %368 : vector<4x1xf32> to vector<4x128xf32>
    %392 = arith.mulf %391, %0 : vector<4x128xf32>
    %393 = vector.broadcast %370 : vector<4x1xf32> to vector<4x128xf32>
    %394 = arith.mulf %393, %1 : vector<4x128xf32>
    %395 = arith.addf %392, %394 : vector<4x128xf32>
    %396 = vector.broadcast %372 : vector<4x1xf32> to vector<4x128xf32>
    %397 = arith.addf %395, %396 : vector<4x128xf32>
    %398 = vector.broadcast %374 : vector<4x1xf32> to vector<4x128xf32>
    %399 = arith.mulf %398, %0 : vector<4x128xf32>
    %400 = vector.broadcast %376 : vector<4x1xf32> to vector<4x128xf32>
    %401 = arith.mulf %400, %1 : vector<4x128xf32>
    %402 = arith.addf %399, %401 : vector<4x128xf32>
    %403 = vector.broadcast %378 : vector<4x1xf32> to vector<4x128xf32>
    %404 = arith.addf %402, %403 : vector<4x128xf32>
    %405 = vector.broadcast %380 : vector<4x1xf32> to vector<4x128xf32>
    %406 = arith.mulf %405, %0 : vector<4x128xf32>
    %407 = vector.broadcast %382 : vector<4x1xf32> to vector<4x128xf32>
    %408 = arith.mulf %407, %1 : vector<4x128xf32>
    %409 = arith.addf %406, %408 : vector<4x128xf32>
    %410 = vector.broadcast %384 : vector<4x1xf32> to vector<4x128xf32>
    %411 = arith.addf %409, %410 : vector<4x128xf32>
    %cst_231 = arith.constant 0.000000e+00 : f32
    %412 = vector.broadcast %cst_231 : f32 to vector<4x128xf32>
    %413 = arith.cmpf oge, %397, %412 : vector<4x128xf32>
    %cst_232 = arith.constant 0.000000e+00 : f32
    %414 = vector.broadcast %cst_232 : f32 to vector<4x128xf32>
    %415 = arith.cmpf oge, %404, %414 : vector<4x128xf32>
    %416 = arith.andi %413, %415 : vector<4x128xi1>
    %cst_233 = arith.constant 0.000000e+00 : f32
    %417 = vector.broadcast %cst_233 : f32 to vector<4x128xf32>
    %418 = arith.cmpf oge, %411, %417 : vector<4x128xf32>
    %419 = arith.andi %416, %418 : vector<4x128xi1>
    %420 = vector.broadcast %386 : vector<4x1xf32> to vector<4x128xf32>
    %421 = arith.mulf %397, %420 : vector<4x128xf32>
    %422 = vector.broadcast %388 : vector<4x1xf32> to vector<4x128xf32>
    %423 = arith.mulf %404, %422 : vector<4x128xf32>
    %424 = arith.addf %421, %423 : vector<4x128xf32>
    %425 = vector.broadcast %390 : vector<4x1xf32> to vector<4x128xf32>
    %426 = arith.mulf %411, %425 : vector<4x128xf32>
    %427 = arith.addf %424, %426 : vector<4x128xf32>
    %cst_234 = arith.constant 0.000000e+00 : f32
    %428 = vector.broadcast %cst_234 : f32 to vector<4x128xf32>
    %429 = arith.cmpf ogt, %427, %428 : vector<4x128xf32>
    %430 = arith.andi %419, %429 : vector<4x128xi1>
    %431 = arith.cmpf olt, %427, %361 : vector<4x128xf32>
    %432 = arith.andi %430, %431 : vector<4x128xi1>
    %433 = arith.select %432, %427, %361 : vector<4x128xi1>, vector<4x128xf32>
    %c5_i32 = arith.constant 5 : i32
    %434 = vector.broadcast %c5_i32 : i32 to vector<4x128xi32>
    %435 = arith.select %432, %434, %363 : vector<4x128xi1>, vector<4x128xi32>
    %436 = arith.select %432, %397, %364 : vector<4x128xi1>, vector<4x128xf32>
    %437 = arith.select %432, %404, %365 : vector<4x128xi1>, vector<4x128xf32>
    %438 = arith.select %432, %411, %366 : vector<4x128xi1>, vector<4x128xf32>
    %c6_235 = arith.constant 6 : index
    %c0_236 = arith.constant 0 : index
    %c0_237 = arith.constant 0 : index
    %439 = vector.load %arg2[%c6_235, %c0_236, %c0_237] : memref<8x4x24xf32, #tpu.memory_space<vmem>>, vector<1x4x1xf32>
    %440 = vector.shape_cast %439 : vector<1x4x1xf32> to vector<4x1xf32>
    %c6_238 = arith.constant 6 : index
    %c0_239 = arith.constant 0 : index
    %c1_240 = arith.constant 1 : index
    %441 = vector.load %arg2[%c6_238, %c0_239, %c1_240] : memref<8x4x24xf32, #tpu.memory_space<vmem>>, vector<1x4x1xf32>
    %442 = vector.shape_cast %441 : vector<1x4x1xf32> to vector<4x1xf32>
    %c6_241 = arith.constant 6 : index
    %c0_242 = arith.constant 0 : index
    %c2_243 = arith.constant 2 : index
    %443 = vector.load %arg2[%c6_241, %c0_242, %c2_243] : memref<8x4x24xf32, #tpu.memory_space<vmem>>, vector<1x4x1xf32>
    %444 = vector.shape_cast %443 : vector<1x4x1xf32> to vector<4x1xf32>
    %c6_244 = arith.constant 6 : index
    %c0_245 = arith.constant 0 : index
    %c3_246 = arith.constant 3 : index
    %445 = vector.load %arg2[%c6_244, %c0_245, %c3_246] : memref<8x4x24xf32, #tpu.memory_space<vmem>>, vector<1x4x1xf32>
    %446 = vector.shape_cast %445 : vector<1x4x1xf32> to vector<4x1xf32>
    %c6_247 = arith.constant 6 : index
    %c0_248 = arith.constant 0 : index
    %c4_249 = arith.constant 4 : index
    %447 = vector.load %arg2[%c6_247, %c0_248, %c4_249] : memref<8x4x24xf32, #tpu.memory_space<vmem>>, vector<1x4x1xf32>
    %448 = vector.shape_cast %447 : vector<1x4x1xf32> to vector<4x1xf32>
    %c6_250 = arith.constant 6 : index
    %c0_251 = arith.constant 0 : index
    %c5_252 = arith.constant 5 : index
    %449 = vector.load %arg2[%c6_250, %c0_251, %c5_252] : memref<8x4x24xf32, #tpu.memory_space<vmem>>, vector<1x4x1xf32>
    %450 = vector.shape_cast %449 : vector<1x4x1xf32> to vector<4x1xf32>
    %c6_253 = arith.constant 6 : index
    %c0_254 = arith.constant 0 : index
    %c6_255 = arith.constant 6 : index
    %451 = vector.load %arg2[%c6_253, %c0_254, %c6_255] : memref<8x4x24xf32, #tpu.memory_space<vmem>>, vector<1x4x1xf32>
    %452 = vector.shape_cast %451 : vector<1x4x1xf32> to vector<4x1xf32>
    %c6_256 = arith.constant 6 : index
    %c0_257 = arith.constant 0 : index
    %c7_258 = arith.constant 7 : index
    %453 = vector.load %arg2[%c6_256, %c0_257, %c7_258] : memref<8x4x24xf32, #tpu.memory_space<vmem>>, vector<1x4x1xf32>
    %454 = vector.shape_cast %453 : vector<1x4x1xf32> to vector<4x1xf32>
    %c6_259 = arith.constant 6 : index
    %c0_260 = arith.constant 0 : index
    %c8_261 = arith.constant 8 : index
    %455 = vector.load %arg2[%c6_259, %c0_260, %c8_261] : memref<8x4x24xf32, #tpu.memory_space<vmem>>, vector<1x4x1xf32>
    %456 = vector.shape_cast %455 : vector<1x4x1xf32> to vector<4x1xf32>
    %c6_262 = arith.constant 6 : index
    %c0_263 = arith.constant 0 : index
    %c9_264 = arith.constant 9 : index
    %457 = vector.load %arg2[%c6_262, %c0_263, %c9_264] : memref<8x4x24xf32, #tpu.memory_space<vmem>>, vector<1x4x1xf32>
    %458 = vector.shape_cast %457 : vector<1x4x1xf32> to vector<4x1xf32>
    %c6_265 = arith.constant 6 : index
    %c0_266 = arith.constant 0 : index
    %c10_267 = arith.constant 10 : index
    %459 = vector.load %arg2[%c6_265, %c0_266, %c10_267] : memref<8x4x24xf32, #tpu.memory_space<vmem>>, vector<1x4x1xf32>
    %460 = vector.shape_cast %459 : vector<1x4x1xf32> to vector<4x1xf32>
    %c6_268 = arith.constant 6 : index
    %c0_269 = arith.constant 0 : index
    %c11_270 = arith.constant 11 : index
    %461 = vector.load %arg2[%c6_268, %c0_269, %c11_270] : memref<8x4x24xf32, #tpu.memory_space<vmem>>, vector<1x4x1xf32>
    %462 = vector.shape_cast %461 : vector<1x4x1xf32> to vector<4x1xf32>
    %463 = vector.broadcast %440 : vector<4x1xf32> to vector<4x128xf32>
    %464 = arith.mulf %463, %0 : vector<4x128xf32>
    %465 = vector.broadcast %442 : vector<4x1xf32> to vector<4x128xf32>
    %466 = arith.mulf %465, %1 : vector<4x128xf32>
    %467 = arith.addf %464, %466 : vector<4x128xf32>
    %468 = vector.broadcast %444 : vector<4x1xf32> to vector<4x128xf32>
    %469 = arith.addf %467, %468 : vector<4x128xf32>
    %470 = vector.broadcast %446 : vector<4x1xf32> to vector<4x128xf32>
    %471 = arith.mulf %470, %0 : vector<4x128xf32>
    %472 = vector.broadcast %448 : vector<4x1xf32> to vector<4x128xf32>
    %473 = arith.mulf %472, %1 : vector<4x128xf32>
    %474 = arith.addf %471, %473 : vector<4x128xf32>
    %475 = vector.broadcast %450 : vector<4x1xf32> to vector<4x128xf32>
    %476 = arith.addf %474, %475 : vector<4x128xf32>
    %477 = vector.broadcast %452 : vector<4x1xf32> to vector<4x128xf32>
    %478 = arith.mulf %477, %0 : vector<4x128xf32>
    %479 = vector.broadcast %454 : vector<4x1xf32> to vector<4x128xf32>
    %480 = arith.mulf %479, %1 : vector<4x128xf32>
    %481 = arith.addf %478, %480 : vector<4x128xf32>
    %482 = vector.broadcast %456 : vector<4x1xf32> to vector<4x128xf32>
    %483 = arith.addf %481, %482 : vector<4x128xf32>
    %cst_271 = arith.constant 0.000000e+00 : f32
    %484 = vector.broadcast %cst_271 : f32 to vector<4x128xf32>
    %485 = arith.cmpf oge, %469, %484 : vector<4x128xf32>
    %cst_272 = arith.constant 0.000000e+00 : f32
    %486 = vector.broadcast %cst_272 : f32 to vector<4x128xf32>
    %487 = arith.cmpf oge, %476, %486 : vector<4x128xf32>
    %488 = arith.andi %485, %487 : vector<4x128xi1>
    %cst_273 = arith.constant 0.000000e+00 : f32
    %489 = vector.broadcast %cst_273 : f32 to vector<4x128xf32>
    %490 = arith.cmpf oge, %483, %489 : vector<4x128xf32>
    %491 = arith.andi %488, %490 : vector<4x128xi1>
    %492 = vector.broadcast %458 : vector<4x1xf32> to vector<4x128xf32>
    %493 = arith.mulf %469, %492 : vector<4x128xf32>
    %494 = vector.broadcast %460 : vector<4x1xf32> to vector<4x128xf32>
    %495 = arith.mulf %476, %494 : vector<4x128xf32>
    %496 = arith.addf %493, %495 : vector<4x128xf32>
    %497 = vector.broadcast %462 : vector<4x1xf32> to vector<4x128xf32>
    %498 = arith.mulf %483, %497 : vector<4x128xf32>
    %499 = arith.addf %496, %498 : vector<4x128xf32>
    %cst_274 = arith.constant 0.000000e+00 : f32
    %500 = vector.broadcast %cst_274 : f32 to vector<4x128xf32>
    %501 = arith.cmpf ogt, %499, %500 : vector<4x128xf32>
    %502 = arith.andi %491, %501 : vector<4x128xi1>
    %503 = arith.cmpf olt, %499, %433 : vector<4x128xf32>
    %504 = arith.andi %502, %503 : vector<4x128xi1>
    %505 = arith.select %504, %499, %433 : vector<4x128xi1>, vector<4x128xf32>
    %c6_i32 = arith.constant 6 : i32
    %506 = vector.broadcast %c6_i32 : i32 to vector<4x128xi32>
    %507 = arith.select %504, %506, %435 : vector<4x128xi1>, vector<4x128xi32>
    %508 = arith.select %504, %469, %436 : vector<4x128xi1>, vector<4x128xf32>
    %509 = arith.select %504, %476, %437 : vector<4x128xi1>, vector<4x128xf32>
    %510 = arith.select %504, %483, %438 : vector<4x128xi1>, vector<4x128xf32>
    %c7_275 = arith.constant 7 : index
    %c0_276 = arith.constant 0 : index
    %c0_277 = arith.constant 0 : index
    %511 = vector.load %arg2[%c7_275, %c0_276, %c0_277] : memref<8x4x24xf32, #tpu.memory_space<vmem>>, vector<1x4x1xf32>
    %512 = vector.shape_cast %511 : vector<1x4x1xf32> to vector<4x1xf32>
    %c7_278 = arith.constant 7 : index
    %c0_279 = arith.constant 0 : index
    %c1_280 = arith.constant 1 : index
    %513 = vector.load %arg2[%c7_278, %c0_279, %c1_280] : memref<8x4x24xf32, #tpu.memory_space<vmem>>, vector<1x4x1xf32>
    %514 = vector.shape_cast %513 : vector<1x4x1xf32> to vector<4x1xf32>
    %c7_281 = arith.constant 7 : index
    %c0_282 = arith.constant 0 : index
    %c2_283 = arith.constant 2 : index
    %515 = vector.load %arg2[%c7_281, %c0_282, %c2_283] : memref<8x4x24xf32, #tpu.memory_space<vmem>>, vector<1x4x1xf32>
    %516 = vector.shape_cast %515 : vector<1x4x1xf32> to vector<4x1xf32>
    %c7_284 = arith.constant 7 : index
    %c0_285 = arith.constant 0 : index
    %c3_286 = arith.constant 3 : index
    %517 = vector.load %arg2[%c7_284, %c0_285, %c3_286] : memref<8x4x24xf32, #tpu.memory_space<vmem>>, vector<1x4x1xf32>
    %518 = vector.shape_cast %517 : vector<1x4x1xf32> to vector<4x1xf32>
    %c7_287 = arith.constant 7 : index
    %c0_288 = arith.constant 0 : index
    %c4_289 = arith.constant 4 : index
    %519 = vector.load %arg2[%c7_287, %c0_288, %c4_289] : memref<8x4x24xf32, #tpu.memory_space<vmem>>, vector<1x4x1xf32>
    %520 = vector.shape_cast %519 : vector<1x4x1xf32> to vector<4x1xf32>
    %c7_290 = arith.constant 7 : index
    %c0_291 = arith.constant 0 : index
    %c5_292 = arith.constant 5 : index
    %521 = vector.load %arg2[%c7_290, %c0_291, %c5_292] : memref<8x4x24xf32, #tpu.memory_space<vmem>>, vector<1x4x1xf32>
    %522 = vector.shape_cast %521 : vector<1x4x1xf32> to vector<4x1xf32>
    %c7_293 = arith.constant 7 : index
    %c0_294 = arith.constant 0 : index
    %c6_295 = arith.constant 6 : index
    %523 = vector.load %arg2[%c7_293, %c0_294, %c6_295] : memref<8x4x24xf32, #tpu.memory_space<vmem>>, vector<1x4x1xf32>
    %524 = vector.shape_cast %523 : vector<1x4x1xf32> to vector<4x1xf32>
    %c7_296 = arith.constant 7 : index
    %c0_297 = arith.constant 0 : index
    %c7_298 = arith.constant 7 : index
    %525 = vector.load %arg2[%c7_296, %c0_297, %c7_298] : memref<8x4x24xf32, #tpu.memory_space<vmem>>, vector<1x4x1xf32>
    %526 = vector.shape_cast %525 : vector<1x4x1xf32> to vector<4x1xf32>
    %c7_299 = arith.constant 7 : index
    %c0_300 = arith.constant 0 : index
    %c8_301 = arith.constant 8 : index
    %527 = vector.load %arg2[%c7_299, %c0_300, %c8_301] : memref<8x4x24xf32, #tpu.memory_space<vmem>>, vector<1x4x1xf32>
    %528 = vector.shape_cast %527 : vector<1x4x1xf32> to vector<4x1xf32>
    %c7_302 = arith.constant 7 : index
    %c0_303 = arith.constant 0 : index
    %c9_304 = arith.constant 9 : index
    %529 = vector.load %arg2[%c7_302, %c0_303, %c9_304] : memref<8x4x24xf32, #tpu.memory_space<vmem>>, vector<1x4x1xf32>
    %530 = vector.shape_cast %529 : vector<1x4x1xf32> to vector<4x1xf32>
    %c7_305 = arith.constant 7 : index
    %c0_306 = arith.constant 0 : index
    %c10_307 = arith.constant 10 : index
    %531 = vector.load %arg2[%c7_305, %c0_306, %c10_307] : memref<8x4x24xf32, #tpu.memory_space<vmem>>, vector<1x4x1xf32>
    %532 = vector.shape_cast %531 : vector<1x4x1xf32> to vector<4x1xf32>
    %c7_308 = arith.constant 7 : index
    %c0_309 = arith.constant 0 : index
    %c11_310 = arith.constant 11 : index
    %533 = vector.load %arg2[%c7_308, %c0_309, %c11_310] : memref<8x4x24xf32, #tpu.memory_space<vmem>>, vector<1x4x1xf32>
    %534 = vector.shape_cast %533 : vector<1x4x1xf32> to vector<4x1xf32>
    %535 = vector.broadcast %512 : vector<4x1xf32> to vector<4x128xf32>
    %536 = arith.mulf %535, %0 : vector<4x128xf32>
    %537 = vector.broadcast %514 : vector<4x1xf32> to vector<4x128xf32>
    %538 = arith.mulf %537, %1 : vector<4x128xf32>
    %539 = arith.addf %536, %538 : vector<4x128xf32>
    %540 = vector.broadcast %516 : vector<4x1xf32> to vector<4x128xf32>
    %541 = arith.addf %539, %540 : vector<4x128xf32>
    %542 = vector.broadcast %518 : vector<4x1xf32> to vector<4x128xf32>
    %543 = arith.mulf %542, %0 : vector<4x128xf32>
    %544 = vector.broadcast %520 : vector<4x1xf32> to vector<4x128xf32>
    %545 = arith.mulf %544, %1 : vector<4x128xf32>
    %546 = arith.addf %543, %545 : vector<4x128xf32>
    %547 = vector.broadcast %522 : vector<4x1xf32> to vector<4x128xf32>
    %548 = arith.addf %546, %547 : vector<4x128xf32>
    %549 = vector.broadcast %524 : vector<4x1xf32> to vector<4x128xf32>
    %550 = arith.mulf %549, %0 : vector<4x128xf32>
    %551 = vector.broadcast %526 : vector<4x1xf32> to vector<4x128xf32>
    %552 = arith.mulf %551, %1 : vector<4x128xf32>
    %553 = arith.addf %550, %552 : vector<4x128xf32>
    %554 = vector.broadcast %528 : vector<4x1xf32> to vector<4x128xf32>
    %555 = arith.addf %553, %554 : vector<4x128xf32>
    %cst_311 = arith.constant 0.000000e+00 : f32
    %556 = vector.broadcast %cst_311 : f32 to vector<4x128xf32>
    %557 = arith.cmpf oge, %541, %556 : vector<4x128xf32>
    %cst_312 = arith.constant 0.000000e+00 : f32
    %558 = vector.broadcast %cst_312 : f32 to vector<4x128xf32>
    %559 = arith.cmpf oge, %548, %558 : vector<4x128xf32>
    %560 = arith.andi %557, %559 : vector<4x128xi1>
    %cst_313 = arith.constant 0.000000e+00 : f32
    %561 = vector.broadcast %cst_313 : f32 to vector<4x128xf32>
    %562 = arith.cmpf oge, %555, %561 : vector<4x128xf32>
    %563 = arith.andi %560, %562 : vector<4x128xi1>
    %564 = vector.broadcast %530 : vector<4x1xf32> to vector<4x128xf32>
    %565 = arith.mulf %541, %564 : vector<4x128xf32>
    %566 = vector.broadcast %532 : vector<4x1xf32> to vector<4x128xf32>
    %567 = arith.mulf %548, %566 : vector<4x128xf32>
    %568 = arith.addf %565, %567 : vector<4x128xf32>
    %569 = vector.broadcast %534 : vector<4x1xf32> to vector<4x128xf32>
    %570 = arith.mulf %555, %569 : vector<4x128xf32>
    %571 = arith.addf %568, %570 : vector<4x128xf32>
    %cst_314 = arith.constant 0.000000e+00 : f32
    %572 = vector.broadcast %cst_314 : f32 to vector<4x128xf32>
    %573 = arith.cmpf ogt, %571, %572 : vector<4x128xf32>
    %574 = arith.andi %563, %573 : vector<4x128xi1>
    %575 = arith.cmpf olt, %571, %505 : vector<4x128xf32>
    %576 = arith.andi %574, %575 : vector<4x128xi1>
    %577 = arith.select %576, %571, %505 : vector<4x128xi1>, vector<4x128xf32>
    %c7_i32 = arith.constant 7 : i32
    %578 = vector.broadcast %c7_i32 : i32 to vector<4x128xi32>
    %579 = arith.select %576, %578, %507 : vector<4x128xi1>, vector<4x128xi32>
    %580 = arith.select %576, %541, %508 : vector<4x128xi1>, vector<4x128xf32>
    %581 = arith.select %576, %548, %509 : vector<4x128xi1>, vector<4x128xf32>
    %582 = arith.select %576, %555, %510 : vector<4x128xi1>, vector<4x128xf32>
    %c0_i32_315 = arith.constant 0 : i32
    %583 = vector.broadcast %c0_i32_315 : i32 to vector<4x128xi32>
    %584 = arith.cmpi sge, %579, %583 : vector<4x128xi32>
    %cst_316 = arith.constant 0.000000e+00 : f32
    %585 = vector.broadcast %cst_316 : f32 to vector<4x128xf32>
    %c0_i32_317 = arith.constant 0 : i32
    %586 = vector.broadcast %c0_i32_317 : i32 to vector<4x128xi32>
    %587 = arith.cmpi eq, %579, %586 : vector<4x128xi32>
    %c0_318 = arith.constant 0 : index
    %c0_319 = arith.constant 0 : index
    %c12 = arith.constant 12 : index
    %588 = vector.load %arg2[%c0_318, %c0_319, %c12] : memref<8x4x24xf32, #tpu.memory_space<vmem>>, vector<1x4x1xf32>
    %589 = vector.shape_cast %588 : vector<1x4x1xf32> to vector<4x1xf32>
    %590 = vector.shape_cast %589 : vector<4x1xf32> to vector<4x1xf32>
    %591 = vector.broadcast %590 : vector<4x1xf32> to vector<4x128xf32>
    %592 = arith.select %587, %591, %585 : vector<4x128xi1>, vector<4x128xf32>
    %c0_320 = arith.constant 0 : index
    %c0_321 = arith.constant 0 : index
    %c13 = arith.constant 13 : index
    %593 = vector.load %arg2[%c0_320, %c0_321, %c13] : memref<8x4x24xf32, #tpu.memory_space<vmem>>, vector<1x4x1xf32>
    %594 = vector.shape_cast %593 : vector<1x4x1xf32> to vector<4x1xf32>
    %595 = vector.shape_cast %594 : vector<4x1xf32> to vector<4x1xf32>
    %596 = vector.broadcast %595 : vector<4x1xf32> to vector<4x128xf32>
    %597 = arith.select %587, %596, %585 : vector<4x128xi1>, vector<4x128xf32>
    %c0_322 = arith.constant 0 : index
    %c0_323 = arith.constant 0 : index
    %c14 = arith.constant 14 : index
    %598 = vector.load %arg2[%c0_322, %c0_323, %c14] : memref<8x4x24xf32, #tpu.memory_space<vmem>>, vector<1x4x1xf32>
    %599 = vector.shape_cast %598 : vector<1x4x1xf32> to vector<4x1xf32>
    %600 = vector.shape_cast %599 : vector<4x1xf32> to vector<4x1xf32>
    %601 = vector.broadcast %600 : vector<4x1xf32> to vector<4x128xf32>
    %602 = arith.select %587, %601, %585 : vector<4x128xi1>, vector<4x128xf32>
    %c0_324 = arith.constant 0 : index
    %c0_325 = arith.constant 0 : index
    %c15 = arith.constant 15 : index
    %603 = vector.load %arg2[%c0_324, %c0_325, %c15] : memref<8x4x24xf32, #tpu.memory_space<vmem>>, vector<1x4x1xf32>
    %604 = vector.shape_cast %603 : vector<1x4x1xf32> to vector<4x1xf32>
    %605 = vector.shape_cast %604 : vector<4x1xf32> to vector<4x1xf32>
    %606 = vector.broadcast %605 : vector<4x1xf32> to vector<4x128xf32>
    %607 = arith.select %587, %606, %585 : vector<4x128xi1>, vector<4x128xf32>
    %c0_326 = arith.constant 0 : index
    %c0_327 = arith.constant 0 : index
    %c16 = arith.constant 16 : index
    %608 = vector.load %arg2[%c0_326, %c0_327, %c16] : memref<8x4x24xf32, #tpu.memory_space<vmem>>, vector<1x4x1xf32>
    %609 = vector.shape_cast %608 : vector<1x4x1xf32> to vector<4x1xf32>
    %610 = vector.shape_cast %609 : vector<4x1xf32> to vector<4x1xf32>
    %611 = vector.broadcast %610 : vector<4x1xf32> to vector<4x128xf32>
    %612 = arith.select %587, %611, %585 : vector<4x128xi1>, vector<4x128xf32>
    %c0_328 = arith.constant 0 : index
    %c0_329 = arith.constant 0 : index
    %c17 = arith.constant 17 : index
    %613 = vector.load %arg2[%c0_328, %c0_329, %c17] : memref<8x4x24xf32, #tpu.memory_space<vmem>>, vector<1x4x1xf32>
    %614 = vector.shape_cast %613 : vector<1x4x1xf32> to vector<4x1xf32>
    %615 = vector.shape_cast %614 : vector<4x1xf32> to vector<4x1xf32>
    %616 = vector.broadcast %615 : vector<4x1xf32> to vector<4x128xf32>
    %617 = arith.select %587, %616, %585 : vector<4x128xi1>, vector<4x128xf32>
    %c0_330 = arith.constant 0 : index
    %c0_331 = arith.constant 0 : index
    %c18 = arith.constant 18 : index
    %618 = vector.load %arg2[%c0_330, %c0_331, %c18] : memref<8x4x24xf32, #tpu.memory_space<vmem>>, vector<1x4x1xf32>
    %619 = vector.shape_cast %618 : vector<1x4x1xf32> to vector<4x1xf32>
    %620 = vector.shape_cast %619 : vector<4x1xf32> to vector<4x1xf32>
    %621 = vector.broadcast %620 : vector<4x1xf32> to vector<4x128xf32>
    %622 = arith.select %587, %621, %585 : vector<4x128xi1>, vector<4x128xf32>
    %c0_332 = arith.constant 0 : index
    %c0_333 = arith.constant 0 : index
    %c19 = arith.constant 19 : index
    %623 = vector.load %arg2[%c0_332, %c0_333, %c19] : memref<8x4x24xf32, #tpu.memory_space<vmem>>, vector<1x4x1xf32>
    %624 = vector.shape_cast %623 : vector<1x4x1xf32> to vector<4x1xf32>
    %625 = vector.shape_cast %624 : vector<4x1xf32> to vector<4x1xf32>
    %626 = vector.broadcast %625 : vector<4x1xf32> to vector<4x128xf32>
    %627 = arith.select %587, %626, %585 : vector<4x128xi1>, vector<4x128xf32>
    %c0_334 = arith.constant 0 : index
    %c0_335 = arith.constant 0 : index
    %c20 = arith.constant 20 : index
    %628 = vector.load %arg2[%c0_334, %c0_335, %c20] : memref<8x4x24xf32, #tpu.memory_space<vmem>>, vector<1x4x1xf32>
    %629 = vector.shape_cast %628 : vector<1x4x1xf32> to vector<4x1xf32>
    %630 = vector.shape_cast %629 : vector<4x1xf32> to vector<4x1xf32>
    %631 = vector.broadcast %630 : vector<4x1xf32> to vector<4x128xf32>
    %632 = arith.select %587, %631, %585 : vector<4x128xi1>, vector<4x128xf32>
    %c0_336 = arith.constant 0 : index
    %c0_337 = arith.constant 0 : index
    %c21 = arith.constant 21 : index
    %633 = vector.load %arg2[%c0_336, %c0_337, %c21] : memref<8x4x24xf32, #tpu.memory_space<vmem>>, vector<1x4x1xf32>
    %634 = vector.shape_cast %633 : vector<1x4x1xf32> to vector<4x1xf32>
    %635 = vector.shape_cast %634 : vector<4x1xf32> to vector<4x1xf32>
    %636 = vector.broadcast %635 : vector<4x1xf32> to vector<4x128xf32>
    %637 = arith.select %587, %636, %585 : vector<4x128xi1>, vector<4x128xf32>
    %c0_338 = arith.constant 0 : index
    %c0_339 = arith.constant 0 : index
    %c22 = arith.constant 22 : index
    %638 = vector.load %arg2[%c0_338, %c0_339, %c22] : memref<8x4x24xf32, #tpu.memory_space<vmem>>, vector<1x4x1xf32>
    %639 = vector.shape_cast %638 : vector<1x4x1xf32> to vector<4x1xf32>
    %640 = vector.shape_cast %639 : vector<4x1xf32> to vector<4x1xf32>
    %641 = vector.broadcast %640 : vector<4x1xf32> to vector<4x128xf32>
    %642 = arith.select %587, %641, %585 : vector<4x128xi1>, vector<4x128xf32>
    %c0_340 = arith.constant 0 : index
    %c0_341 = arith.constant 0 : index
    %c23 = arith.constant 23 : index
    %643 = vector.load %arg2[%c0_340, %c0_341, %c23] : memref<8x4x24xf32, #tpu.memory_space<vmem>>, vector<1x4x1xf32>
    %644 = vector.shape_cast %643 : vector<1x4x1xf32> to vector<4x1xf32>
    %645 = vector.shape_cast %644 : vector<4x1xf32> to vector<4x1xf32>
    %646 = vector.broadcast %645 : vector<4x1xf32> to vector<4x128xf32>
    %647 = arith.select %587, %646, %585 : vector<4x128xi1>, vector<4x128xf32>
    %c1_i32_342 = arith.constant 1 : i32
    %648 = vector.broadcast %c1_i32_342 : i32 to vector<4x128xi32>
    %649 = arith.cmpi eq, %579, %648 : vector<4x128xi32>
    %c1_343 = arith.constant 1 : index
    %c0_344 = arith.constant 0 : index
    %c12_345 = arith.constant 12 : index
    %650 = vector.load %arg2[%c1_343, %c0_344, %c12_345] : memref<8x4x24xf32, #tpu.memory_space<vmem>>, vector<1x4x1xf32>
    %651 = vector.shape_cast %650 : vector<1x4x1xf32> to vector<4x1xf32>
    %652 = vector.shape_cast %651 : vector<4x1xf32> to vector<4x1xf32>
    %653 = vector.broadcast %652 : vector<4x1xf32> to vector<4x128xf32>
    %654 = arith.select %649, %653, %592 : vector<4x128xi1>, vector<4x128xf32>
    %c1_346 = arith.constant 1 : index
    %c0_347 = arith.constant 0 : index
    %c13_348 = arith.constant 13 : index
    %655 = vector.load %arg2[%c1_346, %c0_347, %c13_348] : memref<8x4x24xf32, #tpu.memory_space<vmem>>, vector<1x4x1xf32>
    %656 = vector.shape_cast %655 : vector<1x4x1xf32> to vector<4x1xf32>
    %657 = vector.shape_cast %656 : vector<4x1xf32> to vector<4x1xf32>
    %658 = vector.broadcast %657 : vector<4x1xf32> to vector<4x128xf32>
    %659 = arith.select %649, %658, %597 : vector<4x128xi1>, vector<4x128xf32>
    %c1_349 = arith.constant 1 : index
    %c0_350 = arith.constant 0 : index
    %c14_351 = arith.constant 14 : index
    %660 = vector.load %arg2[%c1_349, %c0_350, %c14_351] : memref<8x4x24xf32, #tpu.memory_space<vmem>>, vector<1x4x1xf32>
    %661 = vector.shape_cast %660 : vector<1x4x1xf32> to vector<4x1xf32>
    %662 = vector.shape_cast %661 : vector<4x1xf32> to vector<4x1xf32>
    %663 = vector.broadcast %662 : vector<4x1xf32> to vector<4x128xf32>
    %664 = arith.select %649, %663, %602 : vector<4x128xi1>, vector<4x128xf32>
    %c1_352 = arith.constant 1 : index
    %c0_353 = arith.constant 0 : index
    %c15_354 = arith.constant 15 : index
    %665 = vector.load %arg2[%c1_352, %c0_353, %c15_354] : memref<8x4x24xf32, #tpu.memory_space<vmem>>, vector<1x4x1xf32>
    %666 = vector.shape_cast %665 : vector<1x4x1xf32> to vector<4x1xf32>
    %667 = vector.shape_cast %666 : vector<4x1xf32> to vector<4x1xf32>
    %668 = vector.broadcast %667 : vector<4x1xf32> to vector<4x128xf32>
    %669 = arith.select %649, %668, %607 : vector<4x128xi1>, vector<4x128xf32>
    %c1_355 = arith.constant 1 : index
    %c0_356 = arith.constant 0 : index
    %c16_357 = arith.constant 16 : index
    %670 = vector.load %arg2[%c1_355, %c0_356, %c16_357] : memref<8x4x24xf32, #tpu.memory_space<vmem>>, vector<1x4x1xf32>
    %671 = vector.shape_cast %670 : vector<1x4x1xf32> to vector<4x1xf32>
    %672 = vector.shape_cast %671 : vector<4x1xf32> to vector<4x1xf32>
    %673 = vector.broadcast %672 : vector<4x1xf32> to vector<4x128xf32>
    %674 = arith.select %649, %673, %612 : vector<4x128xi1>, vector<4x128xf32>
    %c1_358 = arith.constant 1 : index
    %c0_359 = arith.constant 0 : index
    %c17_360 = arith.constant 17 : index
    %675 = vector.load %arg2[%c1_358, %c0_359, %c17_360] : memref<8x4x24xf32, #tpu.memory_space<vmem>>, vector<1x4x1xf32>
    %676 = vector.shape_cast %675 : vector<1x4x1xf32> to vector<4x1xf32>
    %677 = vector.shape_cast %676 : vector<4x1xf32> to vector<4x1xf32>
    %678 = vector.broadcast %677 : vector<4x1xf32> to vector<4x128xf32>
    %679 = arith.select %649, %678, %617 : vector<4x128xi1>, vector<4x128xf32>
    %c1_361 = arith.constant 1 : index
    %c0_362 = arith.constant 0 : index
    %c18_363 = arith.constant 18 : index
    %680 = vector.load %arg2[%c1_361, %c0_362, %c18_363] : memref<8x4x24xf32, #tpu.memory_space<vmem>>, vector<1x4x1xf32>
    %681 = vector.shape_cast %680 : vector<1x4x1xf32> to vector<4x1xf32>
    %682 = vector.shape_cast %681 : vector<4x1xf32> to vector<4x1xf32>
    %683 = vector.broadcast %682 : vector<4x1xf32> to vector<4x128xf32>
    %684 = arith.select %649, %683, %622 : vector<4x128xi1>, vector<4x128xf32>
    %c1_364 = arith.constant 1 : index
    %c0_365 = arith.constant 0 : index
    %c19_366 = arith.constant 19 : index
    %685 = vector.load %arg2[%c1_364, %c0_365, %c19_366] : memref<8x4x24xf32, #tpu.memory_space<vmem>>, vector<1x4x1xf32>
    %686 = vector.shape_cast %685 : vector<1x4x1xf32> to vector<4x1xf32>
    %687 = vector.shape_cast %686 : vector<4x1xf32> to vector<4x1xf32>
    %688 = vector.broadcast %687 : vector<4x1xf32> to vector<4x128xf32>
    %689 = arith.select %649, %688, %627 : vector<4x128xi1>, vector<4x128xf32>
    %c1_367 = arith.constant 1 : index
    %c0_368 = arith.constant 0 : index
    %c20_369 = arith.constant 20 : index
    %690 = vector.load %arg2[%c1_367, %c0_368, %c20_369] : memref<8x4x24xf32, #tpu.memory_space<vmem>>, vector<1x4x1xf32>
    %691 = vector.shape_cast %690 : vector<1x4x1xf32> to vector<4x1xf32>
    %692 = vector.shape_cast %691 : vector<4x1xf32> to vector<4x1xf32>
    %693 = vector.broadcast %692 : vector<4x1xf32> to vector<4x128xf32>
    %694 = arith.select %649, %693, %632 : vector<4x128xi1>, vector<4x128xf32>
    %c1_370 = arith.constant 1 : index
    %c0_371 = arith.constant 0 : index
    %c21_372 = arith.constant 21 : index
    %695 = vector.load %arg2[%c1_370, %c0_371, %c21_372] : memref<8x4x24xf32, #tpu.memory_space<vmem>>, vector<1x4x1xf32>
    %696 = vector.shape_cast %695 : vector<1x4x1xf32> to vector<4x1xf32>
    %697 = vector.shape_cast %696 : vector<4x1xf32> to vector<4x1xf32>
    %698 = vector.broadcast %697 : vector<4x1xf32> to vector<4x128xf32>
    %699 = arith.select %649, %698, %637 : vector<4x128xi1>, vector<4x128xf32>
    %c1_373 = arith.constant 1 : index
    %c0_374 = arith.constant 0 : index
    %c22_375 = arith.constant 22 : index
    %700 = vector.load %arg2[%c1_373, %c0_374, %c22_375] : memref<8x4x24xf32, #tpu.memory_space<vmem>>, vector<1x4x1xf32>
    %701 = vector.shape_cast %700 : vector<1x4x1xf32> to vector<4x1xf32>
    %702 = vector.shape_cast %701 : vector<4x1xf32> to vector<4x1xf32>
    %703 = vector.broadcast %702 : vector<4x1xf32> to vector<4x128xf32>
    %704 = arith.select %649, %703, %642 : vector<4x128xi1>, vector<4x128xf32>
    %c1_376 = arith.constant 1 : index
    %c0_377 = arith.constant 0 : index
    %c23_378 = arith.constant 23 : index
    %705 = vector.load %arg2[%c1_376, %c0_377, %c23_378] : memref<8x4x24xf32, #tpu.memory_space<vmem>>, vector<1x4x1xf32>
    %706 = vector.shape_cast %705 : vector<1x4x1xf32> to vector<4x1xf32>
    %707 = vector.shape_cast %706 : vector<4x1xf32> to vector<4x1xf32>
    %708 = vector.broadcast %707 : vector<4x1xf32> to vector<4x128xf32>
    %709 = arith.select %649, %708, %647 : vector<4x128xi1>, vector<4x128xf32>
    %c2_i32_379 = arith.constant 2 : i32
    %710 = vector.broadcast %c2_i32_379 : i32 to vector<4x128xi32>
    %711 = arith.cmpi eq, %579, %710 : vector<4x128xi32>
    %c2_380 = arith.constant 2 : index
    %c0_381 = arith.constant 0 : index
    %c12_382 = arith.constant 12 : index
    %712 = vector.load %arg2[%c2_380, %c0_381, %c12_382] : memref<8x4x24xf32, #tpu.memory_space<vmem>>, vector<1x4x1xf32>
    %713 = vector.shape_cast %712 : vector<1x4x1xf32> to vector<4x1xf32>
    %714 = vector.shape_cast %713 : vector<4x1xf32> to vector<4x1xf32>
    %715 = vector.broadcast %714 : vector<4x1xf32> to vector<4x128xf32>
    %716 = arith.select %711, %715, %654 : vector<4x128xi1>, vector<4x128xf32>
    %c2_383 = arith.constant 2 : index
    %c0_384 = arith.constant 0 : index
    %c13_385 = arith.constant 13 : index
    %717 = vector.load %arg2[%c2_383, %c0_384, %c13_385] : memref<8x4x24xf32, #tpu.memory_space<vmem>>, vector<1x4x1xf32>
    %718 = vector.shape_cast %717 : vector<1x4x1xf32> to vector<4x1xf32>
    %719 = vector.shape_cast %718 : vector<4x1xf32> to vector<4x1xf32>
    %720 = vector.broadcast %719 : vector<4x1xf32> to vector<4x128xf32>
    %721 = arith.select %711, %720, %659 : vector<4x128xi1>, vector<4x128xf32>
    %c2_386 = arith.constant 2 : index
    %c0_387 = arith.constant 0 : index
    %c14_388 = arith.constant 14 : index
    %722 = vector.load %arg2[%c2_386, %c0_387, %c14_388] : memref<8x4x24xf32, #tpu.memory_space<vmem>>, vector<1x4x1xf32>
    %723 = vector.shape_cast %722 : vector<1x4x1xf32> to vector<4x1xf32>
    %724 = vector.shape_cast %723 : vector<4x1xf32> to vector<4x1xf32>
    %725 = vector.broadcast %724 : vector<4x1xf32> to vector<4x128xf32>
    %726 = arith.select %711, %725, %664 : vector<4x128xi1>, vector<4x128xf32>
    %c2_389 = arith.constant 2 : index
    %c0_390 = arith.constant 0 : index
    %c15_391 = arith.constant 15 : index
    %727 = vector.load %arg2[%c2_389, %c0_390, %c15_391] : memref<8x4x24xf32, #tpu.memory_space<vmem>>, vector<1x4x1xf32>
    %728 = vector.shape_cast %727 : vector<1x4x1xf32> to vector<4x1xf32>
    %729 = vector.shape_cast %728 : vector<4x1xf32> to vector<4x1xf32>
    %730 = vector.broadcast %729 : vector<4x1xf32> to vector<4x128xf32>
    %731 = arith.select %711, %730, %669 : vector<4x128xi1>, vector<4x128xf32>
    %c2_392 = arith.constant 2 : index
    %c0_393 = arith.constant 0 : index
    %c16_394 = arith.constant 16 : index
    %732 = vector.load %arg2[%c2_392, %c0_393, %c16_394] : memref<8x4x24xf32, #tpu.memory_space<vmem>>, vector<1x4x1xf32>
    %733 = vector.shape_cast %732 : vector<1x4x1xf32> to vector<4x1xf32>
    %734 = vector.shape_cast %733 : vector<4x1xf32> to vector<4x1xf32>
    %735 = vector.broadcast %734 : vector<4x1xf32> to vector<4x128xf32>
    %736 = arith.select %711, %735, %674 : vector<4x128xi1>, vector<4x128xf32>
    %c2_395 = arith.constant 2 : index
    %c0_396 = arith.constant 0 : index
    %c17_397 = arith.constant 17 : index
    %737 = vector.load %arg2[%c2_395, %c0_396, %c17_397] : memref<8x4x24xf32, #tpu.memory_space<vmem>>, vector<1x4x1xf32>
    %738 = vector.shape_cast %737 : vector<1x4x1xf32> to vector<4x1xf32>
    %739 = vector.shape_cast %738 : vector<4x1xf32> to vector<4x1xf32>
    %740 = vector.broadcast %739 : vector<4x1xf32> to vector<4x128xf32>
    %741 = arith.select %711, %740, %679 : vector<4x128xi1>, vector<4x128xf32>
    %c2_398 = arith.constant 2 : index
    %c0_399 = arith.constant 0 : index
    %c18_400 = arith.constant 18 : index
    %742 = vector.load %arg2[%c2_398, %c0_399, %c18_400] : memref<8x4x24xf32, #tpu.memory_space<vmem>>, vector<1x4x1xf32>
    %743 = vector.shape_cast %742 : vector<1x4x1xf32> to vector<4x1xf32>
    %744 = vector.shape_cast %743 : vector<4x1xf32> to vector<4x1xf32>
    %745 = vector.broadcast %744 : vector<4x1xf32> to vector<4x128xf32>
    %746 = arith.select %711, %745, %684 : vector<4x128xi1>, vector<4x128xf32>
    %c2_401 = arith.constant 2 : index
    %c0_402 = arith.constant 0 : index
    %c19_403 = arith.constant 19 : index
    %747 = vector.load %arg2[%c2_401, %c0_402, %c19_403] : memref<8x4x24xf32, #tpu.memory_space<vmem>>, vector<1x4x1xf32>
    %748 = vector.shape_cast %747 : vector<1x4x1xf32> to vector<4x1xf32>
    %749 = vector.shape_cast %748 : vector<4x1xf32> to vector<4x1xf32>
    %750 = vector.broadcast %749 : vector<4x1xf32> to vector<4x128xf32>
    %751 = arith.select %711, %750, %689 : vector<4x128xi1>, vector<4x128xf32>
    %c2_404 = arith.constant 2 : index
    %c0_405 = arith.constant 0 : index
    %c20_406 = arith.constant 20 : index
    %752 = vector.load %arg2[%c2_404, %c0_405, %c20_406] : memref<8x4x24xf32, #tpu.memory_space<vmem>>, vector<1x4x1xf32>
    %753 = vector.shape_cast %752 : vector<1x4x1xf32> to vector<4x1xf32>
    %754 = vector.shape_cast %753 : vector<4x1xf32> to vector<4x1xf32>
    %755 = vector.broadcast %754 : vector<4x1xf32> to vector<4x128xf32>
    %756 = arith.select %711, %755, %694 : vector<4x128xi1>, vector<4x128xf32>
    %c2_407 = arith.constant 2 : index
    %c0_408 = arith.constant 0 : index
    %c21_409 = arith.constant 21 : index
    %757 = vector.load %arg2[%c2_407, %c0_408, %c21_409] : memref<8x4x24xf32, #tpu.memory_space<vmem>>, vector<1x4x1xf32>
    %758 = vector.shape_cast %757 : vector<1x4x1xf32> to vector<4x1xf32>
    %759 = vector.shape_cast %758 : vector<4x1xf32> to vector<4x1xf32>
    %760 = vector.broadcast %759 : vector<4x1xf32> to vector<4x128xf32>
    %761 = arith.select %711, %760, %699 : vector<4x128xi1>, vector<4x128xf32>
    %c2_410 = arith.constant 2 : index
    %c0_411 = arith.constant 0 : index
    %c22_412 = arith.constant 22 : index
    %762 = vector.load %arg2[%c2_410, %c0_411, %c22_412] : memref<8x4x24xf32, #tpu.memory_space<vmem>>, vector<1x4x1xf32>
    %763 = vector.shape_cast %762 : vector<1x4x1xf32> to vector<4x1xf32>
    %764 = vector.shape_cast %763 : vector<4x1xf32> to vector<4x1xf32>
    %765 = vector.broadcast %764 : vector<4x1xf32> to vector<4x128xf32>
    %766 = arith.select %711, %765, %704 : vector<4x128xi1>, vector<4x128xf32>
    %c2_413 = arith.constant 2 : index
    %c0_414 = arith.constant 0 : index
    %c23_415 = arith.constant 23 : index
    %767 = vector.load %arg2[%c2_413, %c0_414, %c23_415] : memref<8x4x24xf32, #tpu.memory_space<vmem>>, vector<1x4x1xf32>
    %768 = vector.shape_cast %767 : vector<1x4x1xf32> to vector<4x1xf32>
    %769 = vector.shape_cast %768 : vector<4x1xf32> to vector<4x1xf32>
    %770 = vector.broadcast %769 : vector<4x1xf32> to vector<4x128xf32>
    %771 = arith.select %711, %770, %709 : vector<4x128xi1>, vector<4x128xf32>
    %c3_i32_416 = arith.constant 3 : i32
    %772 = vector.broadcast %c3_i32_416 : i32 to vector<4x128xi32>
    %773 = arith.cmpi eq, %579, %772 : vector<4x128xi32>
    %c3_417 = arith.constant 3 : index
    %c0_418 = arith.constant 0 : index
    %c12_419 = arith.constant 12 : index
    %774 = vector.load %arg2[%c3_417, %c0_418, %c12_419] : memref<8x4x24xf32, #tpu.memory_space<vmem>>, vector<1x4x1xf32>
    %775 = vector.shape_cast %774 : vector<1x4x1xf32> to vector<4x1xf32>
    %776 = vector.shape_cast %775 : vector<4x1xf32> to vector<4x1xf32>
    %777 = vector.broadcast %776 : vector<4x1xf32> to vector<4x128xf32>
    %778 = arith.select %773, %777, %716 : vector<4x128xi1>, vector<4x128xf32>
    %c3_420 = arith.constant 3 : index
    %c0_421 = arith.constant 0 : index
    %c13_422 = arith.constant 13 : index
    %779 = vector.load %arg2[%c3_420, %c0_421, %c13_422] : memref<8x4x24xf32, #tpu.memory_space<vmem>>, vector<1x4x1xf32>
    %780 = vector.shape_cast %779 : vector<1x4x1xf32> to vector<4x1xf32>
    %781 = vector.shape_cast %780 : vector<4x1xf32> to vector<4x1xf32>
    %782 = vector.broadcast %781 : vector<4x1xf32> to vector<4x128xf32>
    %783 = arith.select %773, %782, %721 : vector<4x128xi1>, vector<4x128xf32>
    %c3_423 = arith.constant 3 : index
    %c0_424 = arith.constant 0 : index
    %c14_425 = arith.constant 14 : index
    %784 = vector.load %arg2[%c3_423, %c0_424, %c14_425] : memref<8x4x24xf32, #tpu.memory_space<vmem>>, vector<1x4x1xf32>
    %785 = vector.shape_cast %784 : vector<1x4x1xf32> to vector<4x1xf32>
    %786 = vector.shape_cast %785 : vector<4x1xf32> to vector<4x1xf32>
    %787 = vector.broadcast %786 : vector<4x1xf32> to vector<4x128xf32>
    %788 = arith.select %773, %787, %726 : vector<4x128xi1>, vector<4x128xf32>
    %c3_426 = arith.constant 3 : index
    %c0_427 = arith.constant 0 : index
    %c15_428 = arith.constant 15 : index
    %789 = vector.load %arg2[%c3_426, %c0_427, %c15_428] : memref<8x4x24xf32, #tpu.memory_space<vmem>>, vector<1x4x1xf32>
    %790 = vector.shape_cast %789 : vector<1x4x1xf32> to vector<4x1xf32>
    %791 = vector.shape_cast %790 : vector<4x1xf32> to vector<4x1xf32>
    %792 = vector.broadcast %791 : vector<4x1xf32> to vector<4x128xf32>
    %793 = arith.select %773, %792, %731 : vector<4x128xi1>, vector<4x128xf32>
    %c3_429 = arith.constant 3 : index
    %c0_430 = arith.constant 0 : index
    %c16_431 = arith.constant 16 : index
    %794 = vector.load %arg2[%c3_429, %c0_430, %c16_431] : memref<8x4x24xf32, #tpu.memory_space<vmem>>, vector<1x4x1xf32>
    %795 = vector.shape_cast %794 : vector<1x4x1xf32> to vector<4x1xf32>
    %796 = vector.shape_cast %795 : vector<4x1xf32> to vector<4x1xf32>
    %797 = vector.broadcast %796 : vector<4x1xf32> to vector<4x128xf32>
    %798 = arith.select %773, %797, %736 : vector<4x128xi1>, vector<4x128xf32>
    %c3_432 = arith.constant 3 : index
    %c0_433 = arith.constant 0 : index
    %c17_434 = arith.constant 17 : index
    %799 = vector.load %arg2[%c3_432, %c0_433, %c17_434] : memref<8x4x24xf32, #tpu.memory_space<vmem>>, vector<1x4x1xf32>
    %800 = vector.shape_cast %799 : vector<1x4x1xf32> to vector<4x1xf32>
    %801 = vector.shape_cast %800 : vector<4x1xf32> to vector<4x1xf32>
    %802 = vector.broadcast %801 : vector<4x1xf32> to vector<4x128xf32>
    %803 = arith.select %773, %802, %741 : vector<4x128xi1>, vector<4x128xf32>
    %c3_435 = arith.constant 3 : index
    %c0_436 = arith.constant 0 : index
    %c18_437 = arith.constant 18 : index
    %804 = vector.load %arg2[%c3_435, %c0_436, %c18_437] : memref<8x4x24xf32, #tpu.memory_space<vmem>>, vector<1x4x1xf32>
    %805 = vector.shape_cast %804 : vector<1x4x1xf32> to vector<4x1xf32>
    %806 = vector.shape_cast %805 : vector<4x1xf32> to vector<4x1xf32>
    %807 = vector.broadcast %806 : vector<4x1xf32> to vector<4x128xf32>
    %808 = arith.select %773, %807, %746 : vector<4x128xi1>, vector<4x128xf32>
    %c3_438 = arith.constant 3 : index
    %c0_439 = arith.constant 0 : index
    %c19_440 = arith.constant 19 : index
    %809 = vector.load %arg2[%c3_438, %c0_439, %c19_440] : memref<8x4x24xf32, #tpu.memory_space<vmem>>, vector<1x4x1xf32>
    %810 = vector.shape_cast %809 : vector<1x4x1xf32> to vector<4x1xf32>
    %811 = vector.shape_cast %810 : vector<4x1xf32> to vector<4x1xf32>
    %812 = vector.broadcast %811 : vector<4x1xf32> to vector<4x128xf32>
    %813 = arith.select %773, %812, %751 : vector<4x128xi1>, vector<4x128xf32>
    %c3_441 = arith.constant 3 : index
    %c0_442 = arith.constant 0 : index
    %c20_443 = arith.constant 20 : index
    %814 = vector.load %arg2[%c3_441, %c0_442, %c20_443] : memref<8x4x24xf32, #tpu.memory_space<vmem>>, vector<1x4x1xf32>
    %815 = vector.shape_cast %814 : vector<1x4x1xf32> to vector<4x1xf32>
    %816 = vector.shape_cast %815 : vector<4x1xf32> to vector<4x1xf32>
    %817 = vector.broadcast %816 : vector<4x1xf32> to vector<4x128xf32>
    %818 = arith.select %773, %817, %756 : vector<4x128xi1>, vector<4x128xf32>
    %c3_444 = arith.constant 3 : index
    %c0_445 = arith.constant 0 : index
    %c21_446 = arith.constant 21 : index
    %819 = vector.load %arg2[%c3_444, %c0_445, %c21_446] : memref<8x4x24xf32, #tpu.memory_space<vmem>>, vector<1x4x1xf32>
    %820 = vector.shape_cast %819 : vector<1x4x1xf32> to vector<4x1xf32>
    %821 = vector.shape_cast %820 : vector<4x1xf32> to vector<4x1xf32>
    %822 = vector.broadcast %821 : vector<4x1xf32> to vector<4x128xf32>
    %823 = arith.select %773, %822, %761 : vector<4x128xi1>, vector<4x128xf32>
    %c3_447 = arith.constant 3 : index
    %c0_448 = arith.constant 0 : index
    %c22_449 = arith.constant 22 : index
    %824 = vector.load %arg2[%c3_447, %c0_448, %c22_449] : memref<8x4x24xf32, #tpu.memory_space<vmem>>, vector<1x4x1xf32>
    %825 = vector.shape_cast %824 : vector<1x4x1xf32> to vector<4x1xf32>
    %826 = vector.shape_cast %825 : vector<4x1xf32> to vector<4x1xf32>
    %827 = vector.broadcast %826 : vector<4x1xf32> to vector<4x128xf32>
    %828 = arith.select %773, %827, %766 : vector<4x128xi1>, vector<4x128xf32>
    %c3_450 = arith.constant 3 : index
    %c0_451 = arith.constant 0 : index
    %c23_452 = arith.constant 23 : index
    %829 = vector.load %arg2[%c3_450, %c0_451, %c23_452] : memref<8x4x24xf32, #tpu.memory_space<vmem>>, vector<1x4x1xf32>
    %830 = vector.shape_cast %829 : vector<1x4x1xf32> to vector<4x1xf32>
    %831 = vector.shape_cast %830 : vector<4x1xf32> to vector<4x1xf32>
    %832 = vector.broadcast %831 : vector<4x1xf32> to vector<4x128xf32>
    %833 = arith.select %773, %832, %771 : vector<4x128xi1>, vector<4x128xf32>
    %c4_i32_453 = arith.constant 4 : i32
    %834 = vector.broadcast %c4_i32_453 : i32 to vector<4x128xi32>
    %835 = arith.cmpi eq, %579, %834 : vector<4x128xi32>
    %c4_454 = arith.constant 4 : index
    %c0_455 = arith.constant 0 : index
    %c12_456 = arith.constant 12 : index
    %836 = vector.load %arg2[%c4_454, %c0_455, %c12_456] : memref<8x4x24xf32, #tpu.memory_space<vmem>>, vector<1x4x1xf32>
    %837 = vector.shape_cast %836 : vector<1x4x1xf32> to vector<4x1xf32>
    %838 = vector.shape_cast %837 : vector<4x1xf32> to vector<4x1xf32>
    %839 = vector.broadcast %838 : vector<4x1xf32> to vector<4x128xf32>
    %840 = arith.select %835, %839, %778 : vector<4x128xi1>, vector<4x128xf32>
    %c4_457 = arith.constant 4 : index
    %c0_458 = arith.constant 0 : index
    %c13_459 = arith.constant 13 : index
    %841 = vector.load %arg2[%c4_457, %c0_458, %c13_459] : memref<8x4x24xf32, #tpu.memory_space<vmem>>, vector<1x4x1xf32>
    %842 = vector.shape_cast %841 : vector<1x4x1xf32> to vector<4x1xf32>
    %843 = vector.shape_cast %842 : vector<4x1xf32> to vector<4x1xf32>
    %844 = vector.broadcast %843 : vector<4x1xf32> to vector<4x128xf32>
    %845 = arith.select %835, %844, %783 : vector<4x128xi1>, vector<4x128xf32>
    %c4_460 = arith.constant 4 : index
    %c0_461 = arith.constant 0 : index
    %c14_462 = arith.constant 14 : index
    %846 = vector.load %arg2[%c4_460, %c0_461, %c14_462] : memref<8x4x24xf32, #tpu.memory_space<vmem>>, vector<1x4x1xf32>
    %847 = vector.shape_cast %846 : vector<1x4x1xf32> to vector<4x1xf32>
    %848 = vector.shape_cast %847 : vector<4x1xf32> to vector<4x1xf32>
    %849 = vector.broadcast %848 : vector<4x1xf32> to vector<4x128xf32>
    %850 = arith.select %835, %849, %788 : vector<4x128xi1>, vector<4x128xf32>
    %c4_463 = arith.constant 4 : index
    %c0_464 = arith.constant 0 : index
    %c15_465 = arith.constant 15 : index
    %851 = vector.load %arg2[%c4_463, %c0_464, %c15_465] : memref<8x4x24xf32, #tpu.memory_space<vmem>>, vector<1x4x1xf32>
    %852 = vector.shape_cast %851 : vector<1x4x1xf32> to vector<4x1xf32>
    %853 = vector.shape_cast %852 : vector<4x1xf32> to vector<4x1xf32>
    %854 = vector.broadcast %853 : vector<4x1xf32> to vector<4x128xf32>
    %855 = arith.select %835, %854, %793 : vector<4x128xi1>, vector<4x128xf32>
    %c4_466 = arith.constant 4 : index
    %c0_467 = arith.constant 0 : index
    %c16_468 = arith.constant 16 : index
    %856 = vector.load %arg2[%c4_466, %c0_467, %c16_468] : memref<8x4x24xf32, #tpu.memory_space<vmem>>, vector<1x4x1xf32>
    %857 = vector.shape_cast %856 : vector<1x4x1xf32> to vector<4x1xf32>
    %858 = vector.shape_cast %857 : vector<4x1xf32> to vector<4x1xf32>
    %859 = vector.broadcast %858 : vector<4x1xf32> to vector<4x128xf32>
    %860 = arith.select %835, %859, %798 : vector<4x128xi1>, vector<4x128xf32>
    %c4_469 = arith.constant 4 : index
    %c0_470 = arith.constant 0 : index
    %c17_471 = arith.constant 17 : index
    %861 = vector.load %arg2[%c4_469, %c0_470, %c17_471] : memref<8x4x24xf32, #tpu.memory_space<vmem>>, vector<1x4x1xf32>
    %862 = vector.shape_cast %861 : vector<1x4x1xf32> to vector<4x1xf32>
    %863 = vector.shape_cast %862 : vector<4x1xf32> to vector<4x1xf32>
    %864 = vector.broadcast %863 : vector<4x1xf32> to vector<4x128xf32>
    %865 = arith.select %835, %864, %803 : vector<4x128xi1>, vector<4x128xf32>
    %c4_472 = arith.constant 4 : index
    %c0_473 = arith.constant 0 : index
    %c18_474 = arith.constant 18 : index
    %866 = vector.load %arg2[%c4_472, %c0_473, %c18_474] : memref<8x4x24xf32, #tpu.memory_space<vmem>>, vector<1x4x1xf32>
    %867 = vector.shape_cast %866 : vector<1x4x1xf32> to vector<4x1xf32>
    %868 = vector.shape_cast %867 : vector<4x1xf32> to vector<4x1xf32>
    %869 = vector.broadcast %868 : vector<4x1xf32> to vector<4x128xf32>
    %870 = arith.select %835, %869, %808 : vector<4x128xi1>, vector<4x128xf32>
    %c4_475 = arith.constant 4 : index
    %c0_476 = arith.constant 0 : index
    %c19_477 = arith.constant 19 : index
    %871 = vector.load %arg2[%c4_475, %c0_476, %c19_477] : memref<8x4x24xf32, #tpu.memory_space<vmem>>, vector<1x4x1xf32>
    %872 = vector.shape_cast %871 : vector<1x4x1xf32> to vector<4x1xf32>
    %873 = vector.shape_cast %872 : vector<4x1xf32> to vector<4x1xf32>
    %874 = vector.broadcast %873 : vector<4x1xf32> to vector<4x128xf32>
    %875 = arith.select %835, %874, %813 : vector<4x128xi1>, vector<4x128xf32>
    %c4_478 = arith.constant 4 : index
    %c0_479 = arith.constant 0 : index
    %c20_480 = arith.constant 20 : index
    %876 = vector.load %arg2[%c4_478, %c0_479, %c20_480] : memref<8x4x24xf32, #tpu.memory_space<vmem>>, vector<1x4x1xf32>
    %877 = vector.shape_cast %876 : vector<1x4x1xf32> to vector<4x1xf32>
    %878 = vector.shape_cast %877 : vector<4x1xf32> to vector<4x1xf32>
    %879 = vector.broadcast %878 : vector<4x1xf32> to vector<4x128xf32>
    %880 = arith.select %835, %879, %818 : vector<4x128xi1>, vector<4x128xf32>
    %c4_481 = arith.constant 4 : index
    %c0_482 = arith.constant 0 : index
    %c21_483 = arith.constant 21 : index
    %881 = vector.load %arg2[%c4_481, %c0_482, %c21_483] : memref<8x4x24xf32, #tpu.memory_space<vmem>>, vector<1x4x1xf32>
    %882 = vector.shape_cast %881 : vector<1x4x1xf32> to vector<4x1xf32>
    %883 = vector.shape_cast %882 : vector<4x1xf32> to vector<4x1xf32>
    %884 = vector.broadcast %883 : vector<4x1xf32> to vector<4x128xf32>
    %885 = arith.select %835, %884, %823 : vector<4x128xi1>, vector<4x128xf32>
    %c4_484 = arith.constant 4 : index
    %c0_485 = arith.constant 0 : index
    %c22_486 = arith.constant 22 : index
    %886 = vector.load %arg2[%c4_484, %c0_485, %c22_486] : memref<8x4x24xf32, #tpu.memory_space<vmem>>, vector<1x4x1xf32>
    %887 = vector.shape_cast %886 : vector<1x4x1xf32> to vector<4x1xf32>
    %888 = vector.shape_cast %887 : vector<4x1xf32> to vector<4x1xf32>
    %889 = vector.broadcast %888 : vector<4x1xf32> to vector<4x128xf32>
    %890 = arith.select %835, %889, %828 : vector<4x128xi1>, vector<4x128xf32>
    %c4_487 = arith.constant 4 : index
    %c0_488 = arith.constant 0 : index
    %c23_489 = arith.constant 23 : index
    %891 = vector.load %arg2[%c4_487, %c0_488, %c23_489] : memref<8x4x24xf32, #tpu.memory_space<vmem>>, vector<1x4x1xf32>
    %892 = vector.shape_cast %891 : vector<1x4x1xf32> to vector<4x1xf32>
    %893 = vector.shape_cast %892 : vector<4x1xf32> to vector<4x1xf32>
    %894 = vector.broadcast %893 : vector<4x1xf32> to vector<4x128xf32>
    %895 = arith.select %835, %894, %833 : vector<4x128xi1>, vector<4x128xf32>
    %c5_i32_490 = arith.constant 5 : i32
    %896 = vector.broadcast %c5_i32_490 : i32 to vector<4x128xi32>
    %897 = arith.cmpi eq, %579, %896 : vector<4x128xi32>
    %c5_491 = arith.constant 5 : index
    %c0_492 = arith.constant 0 : index
    %c12_493 = arith.constant 12 : index
    %898 = vector.load %arg2[%c5_491, %c0_492, %c12_493] : memref<8x4x24xf32, #tpu.memory_space<vmem>>, vector<1x4x1xf32>
    %899 = vector.shape_cast %898 : vector<1x4x1xf32> to vector<4x1xf32>
    %900 = vector.shape_cast %899 : vector<4x1xf32> to vector<4x1xf32>
    %901 = vector.broadcast %900 : vector<4x1xf32> to vector<4x128xf32>
    %902 = arith.select %897, %901, %840 : vector<4x128xi1>, vector<4x128xf32>
    %c5_494 = arith.constant 5 : index
    %c0_495 = arith.constant 0 : index
    %c13_496 = arith.constant 13 : index
    %903 = vector.load %arg2[%c5_494, %c0_495, %c13_496] : memref<8x4x24xf32, #tpu.memory_space<vmem>>, vector<1x4x1xf32>
    %904 = vector.shape_cast %903 : vector<1x4x1xf32> to vector<4x1xf32>
    %905 = vector.shape_cast %904 : vector<4x1xf32> to vector<4x1xf32>
    %906 = vector.broadcast %905 : vector<4x1xf32> to vector<4x128xf32>
    %907 = arith.select %897, %906, %845 : vector<4x128xi1>, vector<4x128xf32>
    %c5_497 = arith.constant 5 : index
    %c0_498 = arith.constant 0 : index
    %c14_499 = arith.constant 14 : index
    %908 = vector.load %arg2[%c5_497, %c0_498, %c14_499] : memref<8x4x24xf32, #tpu.memory_space<vmem>>, vector<1x4x1xf32>
    %909 = vector.shape_cast %908 : vector<1x4x1xf32> to vector<4x1xf32>
    %910 = vector.shape_cast %909 : vector<4x1xf32> to vector<4x1xf32>
    %911 = vector.broadcast %910 : vector<4x1xf32> to vector<4x128xf32>
    %912 = arith.select %897, %911, %850 : vector<4x128xi1>, vector<4x128xf32>
    %c5_500 = arith.constant 5 : index
    %c0_501 = arith.constant 0 : index
    %c15_502 = arith.constant 15 : index
    %913 = vector.load %arg2[%c5_500, %c0_501, %c15_502] : memref<8x4x24xf32, #tpu.memory_space<vmem>>, vector<1x4x1xf32>
    %914 = vector.shape_cast %913 : vector<1x4x1xf32> to vector<4x1xf32>
    %915 = vector.shape_cast %914 : vector<4x1xf32> to vector<4x1xf32>
    %916 = vector.broadcast %915 : vector<4x1xf32> to vector<4x128xf32>
    %917 = arith.select %897, %916, %855 : vector<4x128xi1>, vector<4x128xf32>
    %c5_503 = arith.constant 5 : index
    %c0_504 = arith.constant 0 : index
    %c16_505 = arith.constant 16 : index
    %918 = vector.load %arg2[%c5_503, %c0_504, %c16_505] : memref<8x4x24xf32, #tpu.memory_space<vmem>>, vector<1x4x1xf32>
    %919 = vector.shape_cast %918 : vector<1x4x1xf32> to vector<4x1xf32>
    %920 = vector.shape_cast %919 : vector<4x1xf32> to vector<4x1xf32>
    %921 = vector.broadcast %920 : vector<4x1xf32> to vector<4x128xf32>
    %922 = arith.select %897, %921, %860 : vector<4x128xi1>, vector<4x128xf32>
    %c5_506 = arith.constant 5 : index
    %c0_507 = arith.constant 0 : index
    %c17_508 = arith.constant 17 : index
    %923 = vector.load %arg2[%c5_506, %c0_507, %c17_508] : memref<8x4x24xf32, #tpu.memory_space<vmem>>, vector<1x4x1xf32>
    %924 = vector.shape_cast %923 : vector<1x4x1xf32> to vector<4x1xf32>
    %925 = vector.shape_cast %924 : vector<4x1xf32> to vector<4x1xf32>
    %926 = vector.broadcast %925 : vector<4x1xf32> to vector<4x128xf32>
    %927 = arith.select %897, %926, %865 : vector<4x128xi1>, vector<4x128xf32>
    %c5_509 = arith.constant 5 : index
    %c0_510 = arith.constant 0 : index
    %c18_511 = arith.constant 18 : index
    %928 = vector.load %arg2[%c5_509, %c0_510, %c18_511] : memref<8x4x24xf32, #tpu.memory_space<vmem>>, vector<1x4x1xf32>
    %929 = vector.shape_cast %928 : vector<1x4x1xf32> to vector<4x1xf32>
    %930 = vector.shape_cast %929 : vector<4x1xf32> to vector<4x1xf32>
    %931 = vector.broadcast %930 : vector<4x1xf32> to vector<4x128xf32>
    %932 = arith.select %897, %931, %870 : vector<4x128xi1>, vector<4x128xf32>
    %c5_512 = arith.constant 5 : index
    %c0_513 = arith.constant 0 : index
    %c19_514 = arith.constant 19 : index
    %933 = vector.load %arg2[%c5_512, %c0_513, %c19_514] : memref<8x4x24xf32, #tpu.memory_space<vmem>>, vector<1x4x1xf32>
    %934 = vector.shape_cast %933 : vector<1x4x1xf32> to vector<4x1xf32>
    %935 = vector.shape_cast %934 : vector<4x1xf32> to vector<4x1xf32>
    %936 = vector.broadcast %935 : vector<4x1xf32> to vector<4x128xf32>
    %937 = arith.select %897, %936, %875 : vector<4x128xi1>, vector<4x128xf32>
    %c5_515 = arith.constant 5 : index
    %c0_516 = arith.constant 0 : index
    %c20_517 = arith.constant 20 : index
    %938 = vector.load %arg2[%c5_515, %c0_516, %c20_517] : memref<8x4x24xf32, #tpu.memory_space<vmem>>, vector<1x4x1xf32>
    %939 = vector.shape_cast %938 : vector<1x4x1xf32> to vector<4x1xf32>
    %940 = vector.shape_cast %939 : vector<4x1xf32> to vector<4x1xf32>
    %941 = vector.broadcast %940 : vector<4x1xf32> to vector<4x128xf32>
    %942 = arith.select %897, %941, %880 : vector<4x128xi1>, vector<4x128xf32>
    %c5_518 = arith.constant 5 : index
    %c0_519 = arith.constant 0 : index
    %c21_520 = arith.constant 21 : index
    %943 = vector.load %arg2[%c5_518, %c0_519, %c21_520] : memref<8x4x24xf32, #tpu.memory_space<vmem>>, vector<1x4x1xf32>
    %944 = vector.shape_cast %943 : vector<1x4x1xf32> to vector<4x1xf32>
    %945 = vector.shape_cast %944 : vector<4x1xf32> to vector<4x1xf32>
    %946 = vector.broadcast %945 : vector<4x1xf32> to vector<4x128xf32>
    %947 = arith.select %897, %946, %885 : vector<4x128xi1>, vector<4x128xf32>
    %c5_521 = arith.constant 5 : index
    %c0_522 = arith.constant 0 : index
    %c22_523 = arith.constant 22 : index
    %948 = vector.load %arg2[%c5_521, %c0_522, %c22_523] : memref<8x4x24xf32, #tpu.memory_space<vmem>>, vector<1x4x1xf32>
    %949 = vector.shape_cast %948 : vector<1x4x1xf32> to vector<4x1xf32>
    %950 = vector.shape_cast %949 : vector<4x1xf32> to vector<4x1xf32>
    %951 = vector.broadcast %950 : vector<4x1xf32> to vector<4x128xf32>
    %952 = arith.select %897, %951, %890 : vector<4x128xi1>, vector<4x128xf32>
    %c5_524 = arith.constant 5 : index
    %c0_525 = arith.constant 0 : index
    %c23_526 = arith.constant 23 : index
    %953 = vector.load %arg2[%c5_524, %c0_525, %c23_526] : memref<8x4x24xf32, #tpu.memory_space<vmem>>, vector<1x4x1xf32>
    %954 = vector.shape_cast %953 : vector<1x4x1xf32> to vector<4x1xf32>
    %955 = vector.shape_cast %954 : vector<4x1xf32> to vector<4x1xf32>
    %956 = vector.broadcast %955 : vector<4x1xf32> to vector<4x128xf32>
    %957 = arith.select %897, %956, %895 : vector<4x128xi1>, vector<4x128xf32>
    %c6_i32_527 = arith.constant 6 : i32
    %958 = vector.broadcast %c6_i32_527 : i32 to vector<4x128xi32>
    %959 = arith.cmpi eq, %579, %958 : vector<4x128xi32>
    %c6_528 = arith.constant 6 : index
    %c0_529 = arith.constant 0 : index
    %c12_530 = arith.constant 12 : index
    %960 = vector.load %arg2[%c6_528, %c0_529, %c12_530] : memref<8x4x24xf32, #tpu.memory_space<vmem>>, vector<1x4x1xf32>
    %961 = vector.shape_cast %960 : vector<1x4x1xf32> to vector<4x1xf32>
    %962 = vector.shape_cast %961 : vector<4x1xf32> to vector<4x1xf32>
    %963 = vector.broadcast %962 : vector<4x1xf32> to vector<4x128xf32>
    %964 = arith.select %959, %963, %902 : vector<4x128xi1>, vector<4x128xf32>
    %c6_531 = arith.constant 6 : index
    %c0_532 = arith.constant 0 : index
    %c13_533 = arith.constant 13 : index
    %965 = vector.load %arg2[%c6_531, %c0_532, %c13_533] : memref<8x4x24xf32, #tpu.memory_space<vmem>>, vector<1x4x1xf32>
    %966 = vector.shape_cast %965 : vector<1x4x1xf32> to vector<4x1xf32>
    %967 = vector.shape_cast %966 : vector<4x1xf32> to vector<4x1xf32>
    %968 = vector.broadcast %967 : vector<4x1xf32> to vector<4x128xf32>
    %969 = arith.select %959, %968, %907 : vector<4x128xi1>, vector<4x128xf32>
    %c6_534 = arith.constant 6 : index
    %c0_535 = arith.constant 0 : index
    %c14_536 = arith.constant 14 : index
    %970 = vector.load %arg2[%c6_534, %c0_535, %c14_536] : memref<8x4x24xf32, #tpu.memory_space<vmem>>, vector<1x4x1xf32>
    %971 = vector.shape_cast %970 : vector<1x4x1xf32> to vector<4x1xf32>
    %972 = vector.shape_cast %971 : vector<4x1xf32> to vector<4x1xf32>
    %973 = vector.broadcast %972 : vector<4x1xf32> to vector<4x128xf32>
    %974 = arith.select %959, %973, %912 : vector<4x128xi1>, vector<4x128xf32>
    %c6_537 = arith.constant 6 : index
    %c0_538 = arith.constant 0 : index
    %c15_539 = arith.constant 15 : index
    %975 = vector.load %arg2[%c6_537, %c0_538, %c15_539] : memref<8x4x24xf32, #tpu.memory_space<vmem>>, vector<1x4x1xf32>
    %976 = vector.shape_cast %975 : vector<1x4x1xf32> to vector<4x1xf32>
    %977 = vector.shape_cast %976 : vector<4x1xf32> to vector<4x1xf32>
    %978 = vector.broadcast %977 : vector<4x1xf32> to vector<4x128xf32>
    %979 = arith.select %959, %978, %917 : vector<4x128xi1>, vector<4x128xf32>
    %c6_540 = arith.constant 6 : index
    %c0_541 = arith.constant 0 : index
    %c16_542 = arith.constant 16 : index
    %980 = vector.load %arg2[%c6_540, %c0_541, %c16_542] : memref<8x4x24xf32, #tpu.memory_space<vmem>>, vector<1x4x1xf32>
    %981 = vector.shape_cast %980 : vector<1x4x1xf32> to vector<4x1xf32>
    %982 = vector.shape_cast %981 : vector<4x1xf32> to vector<4x1xf32>
    %983 = vector.broadcast %982 : vector<4x1xf32> to vector<4x128xf32>
    %984 = arith.select %959, %983, %922 : vector<4x128xi1>, vector<4x128xf32>
    %c6_543 = arith.constant 6 : index
    %c0_544 = arith.constant 0 : index
    %c17_545 = arith.constant 17 : index
    %985 = vector.load %arg2[%c6_543, %c0_544, %c17_545] : memref<8x4x24xf32, #tpu.memory_space<vmem>>, vector<1x4x1xf32>
    %986 = vector.shape_cast %985 : vector<1x4x1xf32> to vector<4x1xf32>
    %987 = vector.shape_cast %986 : vector<4x1xf32> to vector<4x1xf32>
    %988 = vector.broadcast %987 : vector<4x1xf32> to vector<4x128xf32>
    %989 = arith.select %959, %988, %927 : vector<4x128xi1>, vector<4x128xf32>
    %c6_546 = arith.constant 6 : index
    %c0_547 = arith.constant 0 : index
    %c18_548 = arith.constant 18 : index
    %990 = vector.load %arg2[%c6_546, %c0_547, %c18_548] : memref<8x4x24xf32, #tpu.memory_space<vmem>>, vector<1x4x1xf32>
    %991 = vector.shape_cast %990 : vector<1x4x1xf32> to vector<4x1xf32>
    %992 = vector.shape_cast %991 : vector<4x1xf32> to vector<4x1xf32>
    %993 = vector.broadcast %992 : vector<4x1xf32> to vector<4x128xf32>
    %994 = arith.select %959, %993, %932 : vector<4x128xi1>, vector<4x128xf32>
    %c6_549 = arith.constant 6 : index
    %c0_550 = arith.constant 0 : index
    %c19_551 = arith.constant 19 : index
    %995 = vector.load %arg2[%c6_549, %c0_550, %c19_551] : memref<8x4x24xf32, #tpu.memory_space<vmem>>, vector<1x4x1xf32>
    %996 = vector.shape_cast %995 : vector<1x4x1xf32> to vector<4x1xf32>
    %997 = vector.shape_cast %996 : vector<4x1xf32> to vector<4x1xf32>
    %998 = vector.broadcast %997 : vector<4x1xf32> to vector<4x128xf32>
    %999 = arith.select %959, %998, %937 : vector<4x128xi1>, vector<4x128xf32>
    %c6_552 = arith.constant 6 : index
    %c0_553 = arith.constant 0 : index
    %c20_554 = arith.constant 20 : index
    %1000 = vector.load %arg2[%c6_552, %c0_553, %c20_554] : memref<8x4x24xf32, #tpu.memory_space<vmem>>, vector<1x4x1xf32>
    %1001 = vector.shape_cast %1000 : vector<1x4x1xf32> to vector<4x1xf32>
    %1002 = vector.shape_cast %1001 : vector<4x1xf32> to vector<4x1xf32>
    %1003 = vector.broadcast %1002 : vector<4x1xf32> to vector<4x128xf32>
    %1004 = arith.select %959, %1003, %942 : vector<4x128xi1>, vector<4x128xf32>
    %c6_555 = arith.constant 6 : index
    %c0_556 = arith.constant 0 : index
    %c21_557 = arith.constant 21 : index
    %1005 = vector.load %arg2[%c6_555, %c0_556, %c21_557] : memref<8x4x24xf32, #tpu.memory_space<vmem>>, vector<1x4x1xf32>
    %1006 = vector.shape_cast %1005 : vector<1x4x1xf32> to vector<4x1xf32>
    %1007 = vector.shape_cast %1006 : vector<4x1xf32> to vector<4x1xf32>
    %1008 = vector.broadcast %1007 : vector<4x1xf32> to vector<4x128xf32>
    %1009 = arith.select %959, %1008, %947 : vector<4x128xi1>, vector<4x128xf32>
    %c6_558 = arith.constant 6 : index
    %c0_559 = arith.constant 0 : index
    %c22_560 = arith.constant 22 : index
    %1010 = vector.load %arg2[%c6_558, %c0_559, %c22_560] : memref<8x4x24xf32, #tpu.memory_space<vmem>>, vector<1x4x1xf32>
    %1011 = vector.shape_cast %1010 : vector<1x4x1xf32> to vector<4x1xf32>
    %1012 = vector.shape_cast %1011 : vector<4x1xf32> to vector<4x1xf32>
    %1013 = vector.broadcast %1012 : vector<4x1xf32> to vector<4x128xf32>
    %1014 = arith.select %959, %1013, %952 : vector<4x128xi1>, vector<4x128xf32>
    %c6_561 = arith.constant 6 : index
    %c0_562 = arith.constant 0 : index
    %c23_563 = arith.constant 23 : index
    %1015 = vector.load %arg2[%c6_561, %c0_562, %c23_563] : memref<8x4x24xf32, #tpu.memory_space<vmem>>, vector<1x4x1xf32>
    %1016 = vector.shape_cast %1015 : vector<1x4x1xf32> to vector<4x1xf32>
    %1017 = vector.shape_cast %1016 : vector<4x1xf32> to vector<4x1xf32>
    %1018 = vector.broadcast %1017 : vector<4x1xf32> to vector<4x128xf32>
    %1019 = arith.select %959, %1018, %957 : vector<4x128xi1>, vector<4x128xf32>
    %c7_i32_564 = arith.constant 7 : i32
    %1020 = vector.broadcast %c7_i32_564 : i32 to vector<4x128xi32>
    %1021 = arith.cmpi eq, %579, %1020 : vector<4x128xi32>
    %c7_565 = arith.constant 7 : index
    %c0_566 = arith.constant 0 : index
    %c12_567 = arith.constant 12 : index
    %1022 = vector.load %arg2[%c7_565, %c0_566, %c12_567] : memref<8x4x24xf32, #tpu.memory_space<vmem>>, vector<1x4x1xf32>
    %1023 = vector.shape_cast %1022 : vector<1x4x1xf32> to vector<4x1xf32>
    %1024 = vector.shape_cast %1023 : vector<4x1xf32> to vector<4x1xf32>
    %1025 = vector.broadcast %1024 : vector<4x1xf32> to vector<4x128xf32>
    %1026 = arith.select %1021, %1025, %964 : vector<4x128xi1>, vector<4x128xf32>
    %c7_568 = arith.constant 7 : index
    %c0_569 = arith.constant 0 : index
    %c13_570 = arith.constant 13 : index
    %1027 = vector.load %arg2[%c7_568, %c0_569, %c13_570] : memref<8x4x24xf32, #tpu.memory_space<vmem>>, vector<1x4x1xf32>
    %1028 = vector.shape_cast %1027 : vector<1x4x1xf32> to vector<4x1xf32>
    %1029 = vector.shape_cast %1028 : vector<4x1xf32> to vector<4x1xf32>
    %1030 = vector.broadcast %1029 : vector<4x1xf32> to vector<4x128xf32>
    %1031 = arith.select %1021, %1030, %969 : vector<4x128xi1>, vector<4x128xf32>
    %c7_571 = arith.constant 7 : index
    %c0_572 = arith.constant 0 : index
    %c14_573 = arith.constant 14 : index
    %1032 = vector.load %arg2[%c7_571, %c0_572, %c14_573] : memref<8x4x24xf32, #tpu.memory_space<vmem>>, vector<1x4x1xf32>
    %1033 = vector.shape_cast %1032 : vector<1x4x1xf32> to vector<4x1xf32>
    %1034 = vector.shape_cast %1033 : vector<4x1xf32> to vector<4x1xf32>
    %1035 = vector.broadcast %1034 : vector<4x1xf32> to vector<4x128xf32>
    %1036 = arith.select %1021, %1035, %974 : vector<4x128xi1>, vector<4x128xf32>
    %c7_574 = arith.constant 7 : index
    %c0_575 = arith.constant 0 : index
    %c15_576 = arith.constant 15 : index
    %1037 = vector.load %arg2[%c7_574, %c0_575, %c15_576] : memref<8x4x24xf32, #tpu.memory_space<vmem>>, vector<1x4x1xf32>
    %1038 = vector.shape_cast %1037 : vector<1x4x1xf32> to vector<4x1xf32>
    %1039 = vector.shape_cast %1038 : vector<4x1xf32> to vector<4x1xf32>
    %1040 = vector.broadcast %1039 : vector<4x1xf32> to vector<4x128xf32>
    %1041 = arith.select %1021, %1040, %979 : vector<4x128xi1>, vector<4x128xf32>
    %c7_577 = arith.constant 7 : index
    %c0_578 = arith.constant 0 : index
    %c16_579 = arith.constant 16 : index
    %1042 = vector.load %arg2[%c7_577, %c0_578, %c16_579] : memref<8x4x24xf32, #tpu.memory_space<vmem>>, vector<1x4x1xf32>
    %1043 = vector.shape_cast %1042 : vector<1x4x1xf32> to vector<4x1xf32>
    %1044 = vector.shape_cast %1043 : vector<4x1xf32> to vector<4x1xf32>
    %1045 = vector.broadcast %1044 : vector<4x1xf32> to vector<4x128xf32>
    %1046 = arith.select %1021, %1045, %984 : vector<4x128xi1>, vector<4x128xf32>
    %c7_580 = arith.constant 7 : index
    %c0_581 = arith.constant 0 : index
    %c17_582 = arith.constant 17 : index
    %1047 = vector.load %arg2[%c7_580, %c0_581, %c17_582] : memref<8x4x24xf32, #tpu.memory_space<vmem>>, vector<1x4x1xf32>
    %1048 = vector.shape_cast %1047 : vector<1x4x1xf32> to vector<4x1xf32>
    %1049 = vector.shape_cast %1048 : vector<4x1xf32> to vector<4x1xf32>
    %1050 = vector.broadcast %1049 : vector<4x1xf32> to vector<4x128xf32>
    %1051 = arith.select %1021, %1050, %989 : vector<4x128xi1>, vector<4x128xf32>
    %c7_583 = arith.constant 7 : index
    %c0_584 = arith.constant 0 : index
    %c18_585 = arith.constant 18 : index
    %1052 = vector.load %arg2[%c7_583, %c0_584, %c18_585] : memref<8x4x24xf32, #tpu.memory_space<vmem>>, vector<1x4x1xf32>
    %1053 = vector.shape_cast %1052 : vector<1x4x1xf32> to vector<4x1xf32>
    %1054 = vector.shape_cast %1053 : vector<4x1xf32> to vector<4x1xf32>
    %1055 = vector.broadcast %1054 : vector<4x1xf32> to vector<4x128xf32>
    %1056 = arith.select %1021, %1055, %994 : vector<4x128xi1>, vector<4x128xf32>
    %c7_586 = arith.constant 7 : index
    %c0_587 = arith.constant 0 : index
    %c19_588 = arith.constant 19 : index
    %1057 = vector.load %arg2[%c7_586, %c0_587, %c19_588] : memref<8x4x24xf32, #tpu.memory_space<vmem>>, vector<1x4x1xf32>
    %1058 = vector.shape_cast %1057 : vector<1x4x1xf32> to vector<4x1xf32>
    %1059 = vector.shape_cast %1058 : vector<4x1xf32> to vector<4x1xf32>
    %1060 = vector.broadcast %1059 : vector<4x1xf32> to vector<4x128xf32>
    %1061 = arith.select %1021, %1060, %999 : vector<4x128xi1>, vector<4x128xf32>
    %c7_589 = arith.constant 7 : index
    %c0_590 = arith.constant 0 : index
    %c20_591 = arith.constant 20 : index
    %1062 = vector.load %arg2[%c7_589, %c0_590, %c20_591] : memref<8x4x24xf32, #tpu.memory_space<vmem>>, vector<1x4x1xf32>
    %1063 = vector.shape_cast %1062 : vector<1x4x1xf32> to vector<4x1xf32>
    %1064 = vector.shape_cast %1063 : vector<4x1xf32> to vector<4x1xf32>
    %1065 = vector.broadcast %1064 : vector<4x1xf32> to vector<4x128xf32>
    %1066 = arith.select %1021, %1065, %1004 : vector<4x128xi1>, vector<4x128xf32>
    %c7_592 = arith.constant 7 : index
    %c0_593 = arith.constant 0 : index
    %c21_594 = arith.constant 21 : index
    %1067 = vector.load %arg2[%c7_592, %c0_593, %c21_594] : memref<8x4x24xf32, #tpu.memory_space<vmem>>, vector<1x4x1xf32>
    %1068 = vector.shape_cast %1067 : vector<1x4x1xf32> to vector<4x1xf32>
    %1069 = vector.shape_cast %1068 : vector<4x1xf32> to vector<4x1xf32>
    %1070 = vector.broadcast %1069 : vector<4x1xf32> to vector<4x128xf32>
    %1071 = arith.select %1021, %1070, %1009 : vector<4x128xi1>, vector<4x128xf32>
    %c7_595 = arith.constant 7 : index
    %c0_596 = arith.constant 0 : index
    %c22_597 = arith.constant 22 : index
    %1072 = vector.load %arg2[%c7_595, %c0_596, %c22_597] : memref<8x4x24xf32, #tpu.memory_space<vmem>>, vector<1x4x1xf32>
    %1073 = vector.shape_cast %1072 : vector<1x4x1xf32> to vector<4x1xf32>
    %1074 = vector.shape_cast %1073 : vector<4x1xf32> to vector<4x1xf32>
    %1075 = vector.broadcast %1074 : vector<4x1xf32> to vector<4x128xf32>
    %1076 = arith.select %1021, %1075, %1014 : vector<4x128xi1>, vector<4x128xf32>
    %c7_598 = arith.constant 7 : index
    %c0_599 = arith.constant 0 : index
    %c23_600 = arith.constant 23 : index
    %1077 = vector.load %arg2[%c7_598, %c0_599, %c23_600] : memref<8x4x24xf32, #tpu.memory_space<vmem>>, vector<1x4x1xf32>
    %1078 = vector.shape_cast %1077 : vector<1x4x1xf32> to vector<4x1xf32>
    %1079 = vector.shape_cast %1078 : vector<4x1xf32> to vector<4x1xf32>
    %1080 = vector.broadcast %1079 : vector<4x1xf32> to vector<4x128xf32>
    %1081 = arith.select %1021, %1080, %1019 : vector<4x128xi1>, vector<4x128xf32>
    %1082 = arith.mulf %580, %1041 : vector<4x128xf32>
    %1083 = arith.mulf %581, %1056 : vector<4x128xf32>
    %1084 = arith.addf %1082, %1083 : vector<4x128xf32>
    %1085 = arith.mulf %582, %1071 : vector<4x128xf32>
    %1086 = arith.addf %1084, %1085 : vector<4x128xf32>
    %1087 = arith.mulf %580, %1046 : vector<4x128xf32>
    %1088 = arith.mulf %581, %1061 : vector<4x128xf32>
    %1089 = arith.addf %1087, %1088 : vector<4x128xf32>
    %1090 = arith.mulf %582, %1076 : vector<4x128xf32>
    %1091 = arith.addf %1089, %1090 : vector<4x128xf32>
    %1092 = arith.mulf %580, %1051 : vector<4x128xf32>
    %1093 = arith.mulf %581, %1066 : vector<4x128xf32>
    %1094 = arith.addf %1092, %1093 : vector<4x128xf32>
    %1095 = arith.mulf %582, %1081 : vector<4x128xf32>
    %1096 = arith.addf %1094, %1095 : vector<4x128xf32>
    %1097 = math.absf %580 : vector<4x128xf32>
    %1098 = arith.mulf %1097, %1026 : vector<4x128xf32>
    %1099 = math.absf %581 : vector<4x128xf32>
    %1100 = arith.mulf %1099, %1031 : vector<4x128xf32>
    %1101 = arith.minimumf %1098, %1100 : vector<4x128xf32>
    %1102 = math.absf %582 : vector<4x128xf32>
    %1103 = arith.mulf %1102, %1036 : vector<4x128xf32>
    %1104 = arith.minimumf %1101, %1103 : vector<4x128xf32>
    %1105 = arith.extui %584 : vector<4x128xi1> to vector<4x128xi32>
    %1106 = arith.sitofp %1105 : vector<4x128xi32> to vector<4x128xf32>
    %cst_601 = arith.constant 1.000000e+00 : f32
    %1107 = vector.broadcast %cst_601 : f32 to vector<4x128xf32>
    %1108 = arith.select %584, %1086, %1107 : vector<4x128xi1>, vector<4x128xf32>
    %cst_602 = arith.constant 1.000000e+00 : f32
    %1109 = vector.broadcast %cst_602 : f32 to vector<4x128xf32>
    %1110 = arith.select %584, %1091, %1109 : vector<4x128xi1>, vector<4x128xf32>
    %cst_603 = arith.constant 1.000000e+00 : f32
    %1111 = vector.broadcast %cst_603 : f32 to vector<4x128xf32>
    %1112 = arith.select %584, %1096, %1111 : vector<4x128xi1>, vector<4x128xf32>
    %1113 = arith.mulf %1104, %1104 : vector<4x128xf32>
    %cst_604 = arith.constant 0.000000e+00 : f32
    %1114 = vector.broadcast %cst_604 : f32 to vector<4x128xf32>
    %1115 = arith.subf %1114, %1113 : vector<4x128xf32>
    %cst_605 = arith.constant -1.000000e+00 : f32
    %1116 = vector.broadcast %cst_605 : f32 to vector<4x128xf32>
    %1117 = arith.select %584, %1115, %1116 : vector<4x128xi1>, vector<4x128xf32>
    %cst_606 = arith.constant -1.000000e+00 : f32
    %1118 = vector.broadcast %cst_606 : f32 to vector<4x128xf32>
    %1119 = arith.select %584, %577, %1118 : vector<4x128xi1>, vector<4x128xf32>
    %c0_607 = arith.constant 0 : index
    %c0_608 = arith.constant 0 : index
    %1120 = vector.load %arg3[%c0_607, %c0_608] : memref<36x128xf32, #tpu.memory_space<vmem>>, vector<4x128xf32>
    tpu.vector_store %arg3[%c0_607, %c0_608], %1108 {strides = array<i32>} : memref<36x128xf32, #tpu.memory_space<vmem>>, vector<4x128xf32>,
    %c4_609 = arith.constant 4 : index
    %c0_610 = arith.constant 0 : index
    %1121 = vector.load %arg3[%c4_609, %c0_610] : memref<36x128xf32, #tpu.memory_space<vmem>>, vector<4x128xf32>
    tpu.vector_store %arg3[%c4_609, %c0_610], %1110 {strides = array<i32>} : memref<36x128xf32, #tpu.memory_space<vmem>>, vector<4x128xf32>,
    %c8_611 = arith.constant 8 : index
    %c0_612 = arith.constant 0 : index
    %1122 = vector.load %arg3[%c8_611, %c0_612] : memref<36x128xf32, #tpu.memory_space<vmem>>, vector<4x128xf32>
    tpu.vector_store %arg3[%c8_611, %c0_612], %1112 {strides = array<i32>} : memref<36x128xf32, #tpu.memory_space<vmem>>, vector<4x128xf32>,
    %c12_613 = arith.constant 12 : index
    %c0_614 = arith.constant 0 : index
    %1123 = vector.load %arg3[%c12_613, %c0_614] : memref<36x128xf32, #tpu.memory_space<vmem>>, vector<4x128xf32>
    tpu.vector_store %arg3[%c12_613, %c0_614], %1106 {strides = array<i32>} : memref<36x128xf32, #tpu.memory_space<vmem>>, vector<4x128xf32>,
    %c16_615 = arith.constant 16 : index
    %c0_616 = arith.constant 0 : index
    %1124 = vector.load %arg3[%c16_615, %c0_616] : memref<36x128xf32, #tpu.memory_space<vmem>>, vector<4x128xf32>
    tpu.vector_store %arg3[%c16_615, %c0_616], %580 {strides = array<i32>} : memref<36x128xf32, #tpu.memory_space<vmem>>, vector<4x128xf32>,
    %c20_617 = arith.constant 20 : index
    %c0_618 = arith.constant 0 : index
    %1125 = vector.load %arg3[%c20_617, %c0_618] : memref<36x128xf32, #tpu.memory_space<vmem>>, vector<4x128xf32>
    tpu.vector_store %arg3[%c20_617, %c0_618], %581 {strides = array<i32>} : memref<36x128xf32, #tpu.memory_space<vmem>>, vector<4x128xf32>,
    %c24 = arith.constant 24 : index
    %c0_619 = arith.constant 0 : index
    %1126 = vector.load %arg3[%c24, %c0_619] : memref<36x128xf32, #tpu.memory_space<vmem>>, vector<4x128xf32>
    tpu.vector_store %arg3[%c24, %c0_619], %582 {strides = array<i32>} : memref<36x128xf32, #tpu.memory_space<vmem>>, vector<4x128xf32>,
    %c28 = arith.constant 28 : index
    %c0_620 = arith.constant 0 : index
    %1127 = vector.load %arg3[%c28, %c0_620] : memref<36x128xf32, #tpu.memory_space<vmem>>, vector<4x128xf32>
    tpu.vector_store %arg3[%c28, %c0_620], %1119 {strides = array<i32>} : memref<36x128xf32, #tpu.memory_space<vmem>>, vector<4x128xf32>,
    %c32 = arith.constant 32 : index
    %c0_621 = arith.constant 0 : index
    %1128 = vector.load %arg3[%c32, %c0_621] : memref<36x128xf32, #tpu.memory_space<vmem>>, vector<4x128xf32>
    tpu.vector_store %arg3[%c32, %c0_621], %1117 {strides = array<i32>} : memref<36x128xf32, #tpu.memory_space<vmem>>, vector<4x128xf32>,
    %c0_622 = arith.constant 0 : index
    %c0_623 = arith.constant 0 : index
    %1129 = vector.load %arg4[%c0_622, %c0_623] : memref<4x128xi32, #tpu.memory_space<vmem>>, vector<4x128xi32>
    tpu.vector_store %arg4[%c0_622, %c0_623], %579 {strides = array<i32>} : memref<4x128xi32, #tpu.memory_space<vmem>>, vector<4x128xi32>,
    return
  }
  func.func @transform_0(%arg0: i32) -> (i32, i32) {
    %c0_i32 = arith.constant 0 : i32
    %c0_i32_0 = arith.constant 0 : i32
    %c0_i32_1 = arith.constant 0 : i32
    return %c0_i32, %c0_i32_0 : i32, i32
  }
  func.func @transform_1(%arg0: i32) -> (i32, i32, i32) {
    %c0_i32 = arith.constant 0 : i32
    %c0_i32_0 = arith.constant 0 : i32
    %c0_i32_1 = arith.constant 0 : i32
    %c0_i32_2 = arith.constant 0 : i32
    return %c0_i32, %c0_i32_0, %c0_i32_1 : i32, i32, i32
  }
  func.func @transform_2(%arg0: i32) -> (i32, i32) {
    %c0_i32 = arith.constant 0 : i32
    %c0_i32_0 = arith.constant 0 : i32
    %c0_i32_1 = arith.constant 0 : i32
    return %c0_i32, %c0_i32_0 : i32, i32
  }
  func.func @transform_3(%arg0: i32) -> (i32, i32) {
    %c0_i32 = arith.constant 0 : i32
    %c0_i32_0 = arith.constant 0 : i32
    %c0_i32_1 = arith.constant 0 : i32
    return %c0_i32, %c0_i32_0 : i32, i32
  }
}

</mosaic_0001>

<llo_original>
// kernel: tpu_custom_call.1
$region0: #{tpu_custom_call.1}
  #allocation0 [shape = 'u32[]', space=smem, size = 0x4, offset = 0x4, fixed_abs, tag = 'smem constant byte address 0x4 - core index']
  #allocation1 [shape = 'u32[144,128]{1,0:T(1,128)}', space=vmem, size = 0x12000, scoped, tag = 'internal scratch']
  %s0 = inlined_call_operand.hbm [shape: f32[8,128], index: 0, kind: input, shape index: {}]
  %s1 = inlined_call_operand.hbm [shape: f32[8,4,24], index: 1, kind: input, shape index: {}]
  %s2 = inlined_call_operand.hbm [shape: f32[36,128], index: 2, kind: output, shape index: {0}]
  %s3 = inlined_call_operand.hbm [shape: s32[4,128], index: 3, kind: output, shape index: {1}]
  %4 = xla_tuple %s2, %s3
  %s5 = sld [smem:[#allocation0]]
  $region34: #{tpu_custom_call.1} parent=0
    _
  %s7 = ssub.s32 1, %s5
  %s8 = scalar_select 0, %s7, %s5
  $region1: #{tpu_custom_call.1} parent=0
    #allocation2 [shape = 'u8[4096]{0}', space=vmem, size = 0x1000, scoped, tag = 'input window, operand 0, single buffered']
    #allocation3 [shape = 's32[1]{0}', space=sflag, size = 0x4, scoped, tag = 'scoped memory for tpu_custom_call.1']
    #allocation4 [shape = 's32[1]{0}', space=sflag, size = 0x4, scoped, tag = 'scoped memory for tpu_custom_call.1']
    #allocation5 [shape = 'u8[16384]{0}', space=vmem, size = 0x4000, scoped, tag = 'input window, operand 1, single buffered']
    #allocation6 [shape = 's32[1]{0}', space=sflag, size = 0x4, scoped, tag = 'scoped memory for tpu_custom_call.1']
    #allocation7 [shape = 'u8[20480]{0}', space=vmem, size = 0x5000, scoped, tag = 'output window, operand 0, single buffered']
    #allocation8 [shape = 'u8[2048]{0}', space=vmem, size = 0x800, scoped, tag = 'output window, operand 1, single buffered']
    #allocation9 [shape = 's32[1]{0}', space=sflag, size = 0x4, scoped, tag = 'scoped memory for tpu_custom_call.1']
    %9 = vsyncpa [#allocation3], 0
    %10 = vsyncpa [#allocation6], 0
    %11 = vsyncpa [#allocation4], 0
    %12 = vsyncpa [#allocation9], 0
    // Predicated region
    $region2: #{tpu_custom_call.1} parent=1 // pred_check
      _
    $region3: #{tpu_custom_call.1} parent=1 // pred_check_branch
      %14 = sbr.rel (0) target = $region5
    $region4: #{tpu_custom_call.1} parent=1 // pred_region
      %s16 = ssub.s32 128, 128
      %17 = vsyncadd [#allocation3], %s16
      %s19 = sshll.u32 [#allocation2], 4
      %s20 = int_to_ptr.vmem [resolvable:$true] %s19
      %22 = dma.hbm_to_vmem [thread:$0]  %s0, 128, %s20, [#allocation3]
    $region5: #{tpu_custom_call.1} parent=1 // pred_fallthru
      _
    // Predicated region
    $region6: #{tpu_custom_call.1} parent=1 // pred_check
      _
    $region7: #{tpu_custom_call.1} parent=1 // pred_check_branch
      %24 = sbr.rel (0) target = $region9
    $region8: #{tpu_custom_call.1} parent=1 // pred_region
      %s26 = ssub.s32 512, 512
      %27 = vsyncadd [#allocation6], %s26
      %s28 = sshll.u32 [#allocation5], 4
      %s29 = int_to_ptr.vmem [resolvable:$true] %s28
      %34 = dma.hbm_to_vmem [thread:$0]  %s1, 512, %s29, [#allocation6], 64, 64, 4
    $region9: #{tpu_custom_call.1} parent=1 // pred_fallthru
      _
    // Predicated region
    $region10: #{tpu_custom_call.1} parent=1 // pred_check
      _
    $region11: #{tpu_custom_call.1} parent=1 // pred_check_branch
      %36 = sbr.rel (0) target = $region13
    $region12: #{tpu_custom_call.1} parent=1 // pred_region
      %37 = dma.done [#allocation3], 128
    $region13: #{tpu_custom_call.1} parent=1 // pred_fallthru
      _
    // Predicated region
    $region14: #{tpu_custom_call.1} parent=1 // pred_check
      _
    $region15: #{tpu_custom_call.1} parent=1 // pred_check_branch
      %39 = sbr.rel (0) target = $region17
    $region16: #{tpu_custom_call.1} parent=1 // pred_region
      %40 = dma.done [#allocation6], 512
    $region17: #{tpu_custom_call.1} parent=1 // pred_fallthru
      _
    %v41 = vld [vmem:[#allocation2] sm:$0xf]
    %v42 = vld [vmem:[#allocation2 + $0x4] sm:$0xf]
    %v43 = vld [vmem:[#allocation5] sm:$0xf]
    %45 = vset.pattern.permute.xlu0 0
    %46 = vperm.xlu0 %45, %v43
    %v47 = vpop.permute.xlu0 %46
    %v49 = vmul.f32 %v47, %v41
    %50 = vset.pattern.permute.xlu0 1
    %51 = vperm.xlu0 %50, %v43
    %v52 = vpop.permute.xlu0 %51
    %v54 = vmul.f32 %v52, %v42
    %v55 = vadd.f32 %v49, %v54
    %56 = vset.pattern.permute.xlu0 2
    %57 = vperm.xlu0 %56, %v43
    %v58 = vpop.permute.xlu0 %57
    %v60 = vadd.f32 %v55, %v58
    %61 = vset.pattern.permute.xlu0 3
    %62 = vperm.xlu0 %61, %v43
    %v63 = vpop.permute.xlu0 %62
    %v65 = vmul.f32 %v63, %v41
    %66 = vset.pattern.permute.xlu0 4
    %67 = vperm.xlu0 %66, %v43
    %v68 = vpop.permute.xlu0 %67
    %v70 = vmul.f32 %v68, %v42
    %v71 = vadd.f32 %v65, %v70
    %72 = vset.pattern.permute.xlu0 5
    %73 = vperm.xlu0 %72, %v43
    %v74 = vpop.permute.xlu0 %73
    %v76 = vadd.f32 %v71, %v74
    %77 = vset.pattern.permute.xlu0 6
    %78 = vperm.xlu0 %77, %v43
    %v79 = vpop.permute.xlu0 %78
    %v81 = vmul.f32 %v79, %v41
    %82 = vset.pattern.permute.xlu0 7
    %83 = vperm.xlu0 %82, %v43
    %v84 = vpop.permute.xlu0 %83
    %v86 = vmul.f32 %v84, %v42
    %v87 = vadd.f32 %v81, %v86
    %88 = vset.pattern.permute.xlu0 8
    %89 = vperm.xlu0 %88, %v43
    %v90 = vpop.permute.xlu0 %89
    %v92 = vadd.f32 %v87, %v90
    %vm93 = vcmp.ge.f32.partialorder %v60, 0.0
    %vm94 = vcmp.ge.f32.partialorder %v76, 0.0
    %vm95 = vmand %vm93, %vm94
    %vm96 = vcmp.ge.f32.partialorder %v92, 0.0
    %vm97 = vmand %vm95, %vm96
    %98 = vset.pattern.permute.xlu0 9
    %99 = vperm.xlu0 %98, %v43
    %v100 = vpop.permute.xlu0 %99
    %v102 = vmul.f32 %v60, %v100
    %103 = vset.pattern.permute.xlu0 10
    %104 = vperm.xlu0 %103, %v43
    %v105 = vpop.permute.xlu0 %104
    %v107 = vmul.f32 %v76, %v105
    %v108 = vadd.f32 %v102, %v107
    %109 = vset.pattern.permute.xlu0 11
    %110 = vperm.xlu0 %109, %v43
    %v111 = vpop.permute.xlu0 %110
    %v113 = vmul.f32 %v92, %v111
    %v114 = vadd.f32 %v108, %v113
    %vm115 = vcmp.gt.f32.partialorder %v114, 0.0
    %vm116 = vmand %vm97, %vm115
    %vm117 = vcmp.lt.f32.partialorder %v114, 1e+10
    %vm118 = vmand %vm116, %vm117
    %v119 = vsel %vm118, %v114, 1e+10
    %v120 = vsel %vm118, 0, 4294967295
    %v121 = vsel %vm118, %v60, -1.0
    %v122 = vsel %vm118, %v76, -1.0
    %v123 = vsel %vm118, %v92, -1.0
    %s124 = scalar_lea.vmem [#allocation5], 4
    %v125 = vld [vmem:[%s124] sm:$0xf]
    %127 = vset.pattern.permute.xlu0 0
    %128 = vperm.xlu0 %127, %v125
    %v129 = vpop.permute.xlu0 %128
    %v131 = vmul.f32 %v129, %v41
    %132 = vset.pattern.permute.xlu0 1
    %133 = vperm.xlu0 %132, %v125
    %v134 = vpop.permute.xlu0 %133
    %v136 = vmul.f32 %v134, %v42
    %v137 = vadd.f32 %v131, %v136
    %138 = vset.pattern.permute.xlu0 2
    %139 = vperm.xlu0 %138, %v125
    %v140 = vpop.permute.xlu0 %139
    %v142 = vadd.f32 %v137, %v140
    %143 = vset.pattern.permute.xlu0 3
    %144 = vperm.xlu0 %143, %v125
    %v145 = vpop.permute.xlu0 %144
    %v147 = vmul.f32 %v145, %v41
    %148 = vset.pattern.permute.xlu0 4
    %149 = vperm.xlu0 %148, %v125
    %v150 = vpop.permute.xlu0 %149
    %v152 = vmul.f32 %v150, %v42
    %v153 = vadd.f32 %v147, %v152
    %154 = vset.pattern.permute.xlu0 5
    %155 = vperm.xlu0 %154, %v125
    %v156 = vpop.permute.xlu0 %155
    %v158 = vadd.f32 %v153, %v156
    %159 = vset.pattern.permute.xlu0 6
    %160 = vperm.xlu0 %159, %v125
    %v161 = vpop.permute.xlu0 %160
    %v163 = vmul.f32 %v161, %v41
    %164 = vset.pattern.permute.xlu0 7
    %165 = vperm.xlu0 %164, %v125
    %v166 = vpop.permute.xlu0 %165
    %v168 = vmul.f32 %v166, %v42
    %v169 = vadd.f32 %v163, %v168
    %170 = vset.pattern.permute.xlu0 8
    %171 = vperm.xlu0 %170, %v125
    %v172 = vpop.permute.xlu0 %171
    %v174 = vadd.f32 %v169, %v172
    %vm175 = vcmp.ge.f32.partialorder %v142, 0.0
    %vm176 = vcmp.ge.f32.partialorder %v158, 0.0
    %vm177 = vmand %vm175, %vm176
    %vm178 = vcmp.ge.f32.partialorder %v174, 0.0
    %vm179 = vmand %vm177, %vm178
    %180 = vset.pattern.permute.xlu0 9
    %181 = vperm.xlu0 %180, %v125
    %v182 = vpop.permute.xlu0 %181
    %v184 = vmul.f32 %v142, %v182
    %185 = vset.pattern.permute.xlu0 10
    %186 = vperm.xlu0 %185, %v125
    %v187 = vpop.permute.xlu0 %186
    %v189 = vmul.f32 %v158, %v187
    %v190 = vadd.f32 %v184, %v189
    %191 = vset.pattern.permute.xlu0 11
    %192 = vperm.xlu0 %191, %v125
    %v193 = vpop.permute.xlu0 %192
    %v195 = vmul.f32 %v174, %v193
    %v196 = vadd.f32 %v190, %v195
    %vm197 = vcmp.gt.f32.partialorder %v196, 0.0
    %vm198 = vmand %vm179, %vm197
    %vm199 = vcmp.lt.f32.partialorder %v196, %v119
    %vm200 = vmand %vm198, %vm199
    %v201 = vsel %vm200, %v196, %v119
    %v202 = vsel %vm200, 1, %v120
    %v203 = vsel %vm200, %v142, %v121
    %v204 = vsel %vm200, %v158, %v122
    %v205 = vsel %vm200, %v174, %v123
    %s206 = scalar_lea.vmem [#allocation5], 8
    %v207 = vld [vmem:[%s206] sm:$0xf]
    %209 = vset.pattern.permute.xlu0 0
    %210 = vperm.xlu0 %209, %v207
    %v211 = vpop.permute.xlu0 %210
    %v213 = vmul.f32 %v211, %v41
    %214 = vset.pattern.permute.xlu0 1
    %215 = vperm.xlu0 %214, %v207
    %v216 = vpop.permute.xlu0 %215
    %v218 = vmul.f32 %v216, %v42
    %v219 = vadd.f32 %v213, %v218
    %220 = vset.pattern.permute.xlu0 2
    %221 = vperm.xlu0 %220, %v207
    %v222 = vpop.permute.xlu0 %221
    %v224 = vadd.f32 %v219, %v222
    %225 = vset.pattern.permute.xlu0 3
    %226 = vperm.xlu0 %225, %v207
    %v227 = vpop.permute.xlu0 %226
    %v229 = vmul.f32 %v227, %v41
    %230 = vset.pattern.permute.xlu0 4
    %231 = vperm.xlu0 %230, %v207
    %v232 = vpop.permute.xlu0 %231
    %v234 = vmul.f32 %v232, %v42
    %v235 = vadd.f32 %v229, %v234
    %236 = vset.pattern.permute.xlu0 5
    %237 = vperm.xlu0 %236, %v207
    %v238 = vpop.permute.xlu0 %237
    %v240 = vadd.f32 %v235, %v238
    %241 = vset.pattern.permute.xlu0 6
    %242 = vperm.xlu0 %241, %v207
    %v243 = vpop.permute.xlu0 %242
    %v245 = vmul.f32 %v243, %v41
    %246 = vset.pattern.permute.xlu0 7
    %247 = vperm.xlu0 %246, %v207
    %v248 = vpop.permute.xlu0 %247
    %v250 = vmul.f32 %v248, %v42
    %v251 = vadd.f32 %v245, %v250
    %252 = vset.pattern.permute.xlu0 8
    %253 = vperm.xlu0 %252, %v207
    %v254 = vpop.permute.xlu0 %253
    %v256 = vadd.f32 %v251, %v254
    %vm257 = vcmp.ge.f32.partialorder %v224, 0.0
    %vm258 = vcmp.ge.f32.partialorder %v240, 0.0
    %vm259 = vmand %vm257, %vm258
    %vm260 = vcmp.ge.f32.partialorder %v256, 0.0
    %vm261 = vmand %vm259, %vm260
    %262 = vset.pattern.permute.xlu0 9
    %263 = vperm.xlu0 %262, %v207
    %v264 = vpop.permute.xlu0 %263
    %v266 = vmul.f32 %v224, %v264
    %267 = vset.pattern.permute.xlu0 10
    %268 = vperm.xlu0 %267, %v207
    %v269 = vpop.permute.xlu0 %268
    %v271 = vmul.f32 %v240, %v269
    %v272 = vadd.f32 %v266, %v271
    %273 = vset.pattern.permute.xlu0 11
    %274 = vperm.xlu0 %273, %v207
    %v275 = vpop.permute.xlu0 %274
    %v277 = vmul.f32 %v256, %v275
    %v278 = vadd.f32 %v272, %v277
    %vm279 = vcmp.gt.f32.partialorder %v278, 0.0
    %vm280 = vmand %vm261, %vm279
    %vm281 = vcmp.lt.f32.partialorder %v278, %v201
    %vm282 = vmand %vm280, %vm281
    %v283 = vsel %vm282, %v278, %v201
    %v284 = vsel %vm282, 2, %v202
    %v285 = vsel %vm282, %v224, %v203
    %v286 = vsel %vm282, %v240, %v204
    %v287 = vsel %vm282, %v256, %v205
    %s288 = scalar_lea.vmem [#allocation5], 12
    %v289 = vld [vmem:[%s288] sm:$0xf]
    %291 = vset.pattern.permute.xlu0 0
    %292 = vperm.xlu0 %291, %v289
    %v293 = vpop.permute.xlu0 %292
    %v295 = vmul.f32 %v293, %v41
    %296 = vset.pattern.permute.xlu0 1
    %297 = vperm.xlu0 %296, %v289
    %v298 = vpop.permute.xlu0 %297
    %v300 = vmul.f32 %v298, %v42
    %v301 = vadd.f32 %v295, %v300
    %302 = vset.pattern.permute.xlu0 2
    %303 = vperm.xlu0 %302, %v289
    %v304 = vpop.permute.xlu0 %303
    %v306 = vadd.f32 %v301, %v304
    %307 = vset.pattern.permute.xlu0 3
    %308 = vperm.xlu0 %307, %v289
    %v309 = vpop.permute.xlu0 %308
    %v311 = vmul.f32 %v309, %v41
    %312 = vset.pattern.permute.xlu0 4
    %313 = vperm.xlu0 %312, %v289
    %v314 = vpop.permute.xlu0 %313
    %v316 = vmul.f32 %v314, %v42
    %v317 = vadd.f32 %v311, %v316
    %318 = vset.pattern.permute.xlu0 5
    %319 = vperm.xlu0 %318, %v289
    %v320 = vpop.permute.xlu0 %319
    %v322 = vadd.f32 %v317, %v320
    %323 = vset.pattern.permute.xlu0 6
    %324 = vperm.xlu0 %323, %v289
    %v325 = vpop.permute.xlu0 %324
    %v327 = vmul.f32 %v325, %v41
    %328 = vset.pattern.permute.xlu0 7
    %329 = vperm.xlu0 %328, %v289
    %v330 = vpop.permute.xlu0 %329
    %v332 = vmul.f32 %v330, %v42
    %v333 = vadd.f32 %v327, %v332
    %334 = vset.pattern.permute.xlu0 8
    %335 = vperm.xlu0 %334, %v289
    %v336 = vpop.permute.xlu0 %335
    %v338 = vadd.f32 %v333, %v336
    %vm339 = vcmp.ge.f32.partialorder %v306, 0.0
    %vm340 = vcmp.ge.f32.partialorder %v322, 0.0
    %vm341 = vmand %vm339, %vm340
    %vm342 = vcmp.ge.f32.partialorder %v338, 0.0
    %vm343 = vmand %vm341, %vm342
    %344 = vset.pattern.permute.xlu0 9
    %345 = vperm.xlu0 %344, %v289
    %v346 = vpop.permute.xlu0 %345
    %v348 = vmul.f32 %v306, %v346
    %349 = vset.pattern.permute.xlu0 10
    %350 = vperm.xlu0 %349, %v289
    %v351 = vpop.permute.xlu0 %350
    %v353 = vmul.f32 %v322, %v351
    %v354 = vadd.f32 %v348, %v353
    %355 = vset.pattern.permute.xlu0 11
    %356 = vperm.xlu0 %355, %v289
    %v357 = vpop.permute.xlu0 %356
    %v359 = vmul.f32 %v338, %v357
    %v360 = vadd.f32 %v354, %v359
    %vm361 = vcmp.gt.f32.partialorder %v360, 0.0
    %vm362 = vmand %vm343, %vm361
    %vm363 = vcmp.lt.f32.partialorder %v360, %v283
    %vm364 = vmand %vm362, %vm363
    %v365 = vsel %vm364, %v360, %v283
    %v366 = vsel %vm364, 3, %v284
    %v367 = vsel %vm364, %v306, %v285
    %v368 = vsel %vm364, %v322, %v286
    %v369 = vsel %vm364, %v338, %v287
    %s370 = scalar_lea.vmem [#allocation5], 16
    %v371 = vld [vmem:[%s370] sm:$0xf]
    %373 = vset.pattern.permute.xlu0 0
    %374 = vperm.xlu0 %373, %v371
    %v375 = vpop.permute.xlu0 %374
    %v377 = vmul.f32 %v375, %v41
    %378 = vset.pattern.permute.xlu0 1
    %379 = vperm.xlu0 %378, %v371
    %v380 = vpop.permute.xlu0 %379
    %v382 = vmul.f32 %v380, %v42
    %v383 = vadd.f32 %v377, %v382
    %384 = vset.pattern.permute.xlu0 2
    %385 = vperm.xlu0 %384, %v371
    %v386 = vpop.permute.xlu0 %385
    %v388 = vadd.f32 %v383, %v386
    %389 = vset.pattern.permute.xlu0 3
    %390 = vperm.xlu0 %389, %v371
    %v391 = vpop.permute.xlu0 %390
    %v393 = vmul.f32 %v391, %v41
    %394 = vset.pattern.permute.xlu0 4
    %395 = vperm.xlu0 %394, %v371
    %v396 = vpop.permute.xlu0 %395
    %v398 = vmul.f32 %v396, %v42
    %v399 = vadd.f32 %v393, %v398
    %400 = vset.pattern.permute.xlu0 5
    %401 = vperm.xlu0 %400, %v371
    %v402 = vpop.permute.xlu0 %401
    %v404 = vadd.f32 %v399, %v402
    %405 = vset.pattern.permute.xlu0 6
    %406 = vperm.xlu0 %405, %v371
    %v407 = vpop.permute.xlu0 %406
    %v409 = vmul.f32 %v407, %v41
    %410 = vset.pattern.permute.xlu0 7
    %411 = vperm.xlu0 %410, %v371
    %v412 = vpop.permute.xlu0 %411
    %v414 = vmul.f32 %v412, %v42
    %v415 = vadd.f32 %v409, %v414
    %416 = vset.pattern.permute.xlu0 8
    %417 = vperm.xlu0 %416, %v371
    %v418 = vpop.permute.xlu0 %417
    %v420 = vadd.f32 %v415, %v418
    %vm421 = vcmp.ge.f32.partialorder %v388, 0.0
    %vm422 = vcmp.ge.f32.partialorder %v404, 0.0
    %vm423 = vmand %vm421, %vm422
    %vm424 = vcmp.ge.f32.partialorder %v420, 0.0
    %vm425 = vmand %vm423, %vm424
    %426 = vset.pattern.permute.xlu0 9
    %427 = vperm.xlu0 %426, %v371
    %v428 = vpop.permute.xlu0 %427
    %v430 = vmul.f32 %v388, %v428
    %431 = vset.pattern.permute.xlu0 10
    %432 = vperm.xlu0 %431, %v371
    %v433 = vpop.permute.xlu0 %432
    %v435 = vmul.f32 %v404, %v433
    %v436 = vadd.f32 %v430, %v435
    %437 = vset.pattern.permute.xlu0 11
    %438 = vperm.xlu0 %437, %v371
    %v439 = vpop.permute.xlu0 %438
    %v441 = vmul.f32 %v420, %v439
    %v442 = vadd.f32 %v436, %v441
    %vm443 = vcmp.gt.f32.partialorder %v442, 0.0
    %vm444 = vmand %vm425, %vm443
    %vm445 = vcmp.lt.f32.partialorder %v442, %v365
    %vm446 = vmand %vm444, %vm445
    %v447 = vsel %vm446, %v442, %v365
    %v448 = vsel %vm446, 4, %v366
    %v449 = vsel %vm446, %v388, %v367
    %v450 = vsel %vm446, %v404, %v368
    %v451 = vsel %vm446, %v420, %v369
    %s452 = scalar_lea.vmem [#allocation5], 20
    %v453 = vld [vmem:[%s452] sm:$0xf]
    %455 = vset.pattern.permute.xlu0 0
    %456 = vperm.xlu0 %455, %v453
    %v457 = vpop.permute.xlu0 %456
    %v459 = vmul.f32 %v457, %v41
    %460 = vset.pattern.permute.xlu0 1
    %461 = vperm.xlu0 %460, %v453
    %v462 = vpop.permute.xlu0 %461
    %v464 = vmul.f32 %v462, %v42
    %v465 = vadd.f32 %v459, %v464
    %466 = vset.pattern.permute.xlu0 2
    %467 = vperm.xlu0 %466, %v453
    %v468 = vpop.permute.xlu0 %467
    %v470 = vadd.f32 %v465, %v468
    %471 = vset.pattern.permute.xlu0 3
    %472 = vperm.xlu0 %471, %v453
    %v473 = vpop.permute.xlu0 %472
    %v475 = vmul.f32 %v473, %v41
    %476 = vset.pattern.permute.xlu0 4
    %477 = vperm.xlu0 %476, %v453
    %v478 = vpop.permute.xlu0 %477
    %v480 = vmul.f32 %v478, %v42
    %v481 = vadd.f32 %v475, %v480
    %482 = vset.pattern.permute.xlu0 5
    %483 = vperm.xlu0 %482, %v453
    %v484 = vpop.permute.xlu0 %483
    %v486 = vadd.f32 %v481, %v484
    %487 = vset.pattern.permute.xlu0 6
    %488 = vperm.xlu0 %487, %v453
    %v489 = vpop.permute.xlu0 %488
    %v491 = vmul.f32 %v489, %v41
    %492 = vset.pattern.permute.xlu0 7
    %493 = vperm.xlu0 %492, %v453
    %v494 = vpop.permute.xlu0 %493
    %v496 = vmul.f32 %v494, %v42
    %v497 = vadd.f32 %v491, %v496
    %498 = vset.pattern.permute.xlu0 8
    %499 = vperm.xlu0 %498, %v453
    %v500 = vpop.permute.xlu0 %499
    %v502 = vadd.f32 %v497, %v500
    %vm503 = vcmp.ge.f32.partialorder %v470, 0.0
    %vm504 = vcmp.ge.f32.partialorder %v486, 0.0
    %vm505 = vmand %vm503, %vm504
    %vm506 = vcmp.ge.f32.partialorder %v502, 0.0
    %vm507 = vmand %vm505, %vm506
    %508 = vset.pattern.permute.xlu0 9
    %509 = vperm.xlu0 %508, %v453
    %v510 = vpop.permute.xlu0 %509
    %v512 = vmul.f32 %v470, %v510
    %513 = vset.pattern.permute.xlu0 10
    %514 = vperm.xlu0 %513, %v453
    %v515 = vpop.permute.xlu0 %514
    %v517 = vmul.f32 %v486, %v515
    %v518 = vadd.f32 %v512, %v517
    %519 = vset.pattern.permute.xlu0 11
    %520 = vperm.xlu0 %519, %v453
    %v521 = vpop.permute.xlu0 %520
    %v523 = vmul.f32 %v502, %v521
    %v524 = vadd.f32 %v518, %v523
    %vm525 = vcmp.gt.f32.partialorder %v524, 0.0
    %vm526 = vmand %vm507, %vm525
    %vm527 = vcmp.lt.f32.partialorder %v524, %v447
    %vm528 = vmand %vm526, %vm527
    %v529 = vsel %vm528, %v524, %v447
    %v530 = vsel %vm528, 5, %v448
    %v531 = vsel %vm528, %v470, %v449
    %v532 = vsel %vm528, %v486, %v450
    %v533 = vsel %vm528, %v502, %v451
    %s534 = scalar_lea.vmem [#allocation5], 24
    %v535 = vld [vmem:[%s534] sm:$0xf]
    %537 = vset.pattern.permute.xlu0 0
    %538 = vperm.xlu0 %537, %v535
    %v539 = vpop.permute.xlu0 %538
    %v541 = vmul.f32 %v539, %v41
    %542 = vset.pattern.permute.xlu0 1
    %543 = vperm.xlu0 %542, %v535
    %v544 = vpop.permute.xlu0 %543
    %v546 = vmul.f32 %v544, %v42
    %v547 = vadd.f32 %v541, %v546
    %548 = vset.pattern.permute.xlu0 2
    %549 = vperm.xlu0 %548, %v535
    %v550 = vpop.permute.xlu0 %549
    %v552 = vadd.f32 %v547, %v550
    %553 = vset.pattern.permute.xlu0 3
    %554 = vperm.xlu0 %553, %v535
    %v555 = vpop.permute.xlu0 %554
    %v557 = vmul.f32 %v555, %v41
    %558 = vset.pattern.permute.xlu0 4
    %559 = vperm.xlu0 %558, %v535
    %v560 = vpop.permute.xlu0 %559
    %v562 = vmul.f32 %v560, %v42
    %v563 = vadd.f32 %v557, %v562
    %564 = vset.pattern.permute.xlu0 5
    %565 = vperm.xlu0 %564, %v535
    %v566 = vpop.permute.xlu0 %565
    %v568 = vadd.f32 %v563, %v566
    %569 = vset.pattern.permute.xlu0 6
    %570 = vperm.xlu0 %569, %v535
    %v571 = vpop.permute.xlu0 %570
    %v573 = vmul.f32 %v571, %v41
    %574 = vset.pattern.permute.xlu0 7
    %575 = vperm.xlu0 %574, %v535
    %v576 = vpop.permute.xlu0 %575
    %v578 = vmul.f32 %v576, %v42
    %v579 = vadd.f32 %v573, %v578
    %580 = vset.pattern.permute.xlu0 8
    %581 = vperm.xlu0 %580, %v535
    %v582 = vpop.permute.xlu0 %581
    %v584 = vadd.f32 %v579, %v582
    %vm585 = vcmp.ge.f32.partialorder %v552, 0.0
    %vm586 = vcmp.ge.f32.partialorder %v568, 0.0
    %vm587 = vmand %vm585, %vm586
    %vm588 = vcmp.ge.f32.partialorder %v584, 0.0
    %vm589 = vmand %vm587, %vm588
    %590 = vset.pattern.permute.xlu0 9
    %591 = vperm.xlu0 %590, %v535
    %v592 = vpop.permute.xlu0 %591
    %v594 = vmul.f32 %v552, %v592
    %595 = vset.pattern.permute.xlu0 10
    %596 = vperm.xlu0 %595, %v535
    %v597 = vpop.permute.xlu0 %596
    %v599 = vmul.f32 %v568, %v597
    %v600 = vadd.f32 %v594, %v599
    %601 = vset.pattern.permute.xlu0 11
    %602 = vperm.xlu0 %601, %v535
    %v603 = vpop.permute.xlu0 %602
    %v605 = vmul.f32 %v584, %v603
    %v606 = vadd.f32 %v600, %v605
    %vm607 = vcmp.gt.f32.partialorder %v606, 0.0
    %vm608 = vmand %vm589, %vm607
    %vm609 = vcmp.lt.f32.partialorder %v606, %v529
    %vm610 = vmand %vm608, %vm609
    %v611 = vsel %vm610, %v606, %v529
    %v612 = vsel %vm610, 6, %v530
    %v613 = vsel %vm610, %v552, %v531
    %v614 = vsel %vm610, %v568, %v532
    %v615 = vsel %vm610, %v584, %v533
    %s616 = scalar_lea.vmem [#allocation5], 28
    %v617 = vld [vmem:[%s616] sm:$0xf]
    %619 = vset.pattern.permute.xlu0 0
    %620 = vperm.xlu0 %619, %v617
    %v621 = vpop.permute.xlu0 %620
    %v623 = vmul.f32 %v621, %v41
    %624 = vset.pattern.permute.xlu0 1
    %625 = vperm.xlu0 %624, %v617
    %v626 = vpop.permute.xlu0 %625
    %v628 = vmul.f32 %v626, %v42
    %v629 = vadd.f32 %v623, %v628
    %630 = vset.pattern.permute.xlu0 2
    %631 = vperm.xlu0 %630, %v617
    %v632 = vpop.permute.xlu0 %631
    %v634 = vadd.f32 %v629, %v632
    %635 = vset.pattern.permute.xlu0 3
    %636 = vperm.xlu0 %635, %v617
    %v637 = vpop.permute.xlu0 %636
    %v639 = vmul.f32 %v637, %v41
    %640 = vset.pattern.permute.xlu0 4
    %641 = vperm.xlu0 %640, %v617
    %v642 = vpop.permute.xlu0 %641
    %v644 = vmul.f32 %v642, %v42
    %v645 = vadd.f32 %v639, %v644
    %646 = vset.pattern.permute.xlu0 5
    %647 = vperm.xlu0 %646, %v617
    %v648 = vpop.permute.xlu0 %647
    %v650 = vadd.f32 %v645, %v648
    %651 = vset.pattern.permute.xlu0 6
    %652 = vperm.xlu0 %651, %v617
    %v653 = vpop.permute.xlu0 %652
    %v655 = vmul.f32 %v653, %v41
    %656 = vset.pattern.permute.xlu0 7
    %657 = vperm.xlu0 %656, %v617
    %v658 = vpop.permute.xlu0 %657
    %v660 = vmul.f32 %v658, %v42
    %v661 = vadd.f32 %v655, %v660
    %662 = vset.pattern.permute.xlu0 8
    %663 = vperm.xlu0 %662, %v617
    %v664 = vpop.permute.xlu0 %663
    %v666 = vadd.f32 %v661, %v664
    %vm667 = vcmp.ge.f32.partialorder %v634, 0.0
    %vm668 = vcmp.ge.f32.partialorder %v650, 0.0
    %vm669 = vmand %vm667, %vm668
    %vm670 = vcmp.ge.f32.partialorder %v666, 0.0
    %vm671 = vmand %vm669, %vm670
    %672 = vset.pattern.permute.xlu0 9
    %673 = vperm.xlu0 %672, %v617
    %v674 = vpop.permute.xlu0 %673
    %v676 = vmul.f32 %v634, %v674
    %677 = vset.pattern.permute.xlu0 10
    %678 = vperm.xlu0 %677, %v617
    %v679 = vpop.permute.xlu0 %678
    %v681 = vmul.f32 %v650, %v679
    %v682 = vadd.f32 %v676, %v681
    %683 = vset.pattern.permute.xlu0 11
    %684 = vperm.xlu0 %683, %v617
    %v685 = vpop.permute.xlu0 %684
    %v687 = vmul.f32 %v666, %v685
    %v688 = vadd.f32 %v682, %v687
    %vm689 = vcmp.gt.f32.partialorder %v688, 0.0
    %vm690 = vmand %vm671, %vm689
    %vm691 = vcmp.lt.f32.partialorder %v688, %v611
    %vm692 = vmand %vm690, %vm691
    %v693 = vsel %vm692, %v688, %v611
    %v694 = vsel %vm692, 7, %v612
    %v695 = vsel %vm692, %v634, %v613
    %v696 = vsel %vm692, %v650, %v614
    %v697 = vsel %vm692, %v666, %v615
    %vm698 = vcmp.ge.s32.totalorder %v694, 0
    %vm699 = vcmp.eq.s32.totalorder %v694, 0
    %700 = vset.pattern.permute.xlu0 12
    %701 = vperm.xlu0 %700, %v43
    %v702 = vpop.permute.xlu0 %701
    %v704 = vsel %vm699, %v702, 0.0
    %705 = vset.pattern.permute.xlu0 13
    %706 = vperm.xlu0 %705, %v43
    %v707 = vpop.permute.xlu0 %706
    %v709 = vsel %vm699, %v707, 0.0
    %710 = vset.pattern.permute.xlu0 14
    %711 = vperm.xlu0 %710, %v43
    %v712 = vpop.permute.xlu0 %711
    %v714 = vsel %vm699, %v712, 0.0
    %715 = vset.pattern.permute.xlu0 15
    %716 = vperm.xlu0 %715, %v43
    %v717 = vpop.permute.xlu0 %716
    %v719 = vsel %vm699, %v717, 0.0
    %720 = vset.pattern.permute.xlu0 16
    %721 = vperm.xlu0 %720, %v43
    %v722 = vpop.permute.xlu0 %721
    %v724 = vsel %vm699, %v722, 0.0
    %725 = vset.pattern.permute.xlu0 17
    %726 = vperm.xlu0 %725, %v43
    %v727 = vpop.permute.xlu0 %726
    %v729 = vsel %vm699, %v727, 0.0
    %730 = vset.pattern.permute.xlu0 18
    %731 = vperm.xlu0 %730, %v43
    %v732 = vpop.permute.xlu0 %731
    %v734 = vsel %vm699, %v732, 0.0
    %735 = vset.pattern.permute.xlu0 19
    %736 = vperm.xlu0 %735, %v43
    %v737 = vpop.permute.xlu0 %736
    %v739 = vsel %vm699, %v737, 0.0
    %740 = vset.pattern.permute.xlu0 20
    %741 = vperm.xlu0 %740, %v43
    %v742 = vpop.permute.xlu0 %741
    %v744 = vsel %vm699, %v742, 0.0
    %745 = vset.pattern.permute.xlu0 21
    %746 = vperm.xlu0 %745, %v43
    %v747 = vpop.permute.xlu0 %746
    %v749 = vsel %vm699, %v747, 0.0
    %750 = vset.pattern.permute.xlu0 22
    %751 = vperm.xlu0 %750, %v43
    %v752 = vpop.permute.xlu0 %751
    %v754 = vsel %vm699, %v752, 0.0
    %755 = vset.pattern.permute.xlu0 23
    %756 = vperm.xlu0 %755, %v43
    %v757 = vpop.permute.xlu0 %756
    %v759 = vsel %vm699, %v757, 0.0
    %vm760 = vcmp.eq.s32.totalorder %v694, 1
    %761 = vset.pattern.permute.xlu0 12
    %762 = vperm.xlu0 %761, %v125
    %v763 = vpop.permute.xlu0 %762
    %v765 = vsel %vm760, %v763, %v704
    %766 = vset.pattern.permute.xlu0 13
    %767 = vperm.xlu0 %766, %v125
    %v768 = vpop.permute.xlu0 %767
    %v770 = vsel %vm760, %v768, %v709
    %771 = vset.pattern.permute.xlu0 14
    %772 = vperm.xlu0 %771, %v125
    %v773 = vpop.permute.xlu0 %772
    %v775 = vsel %vm760, %v773, %v714
    %776 = vset.pattern.permute.xlu0 15
    %777 = vperm.xlu0 %776, %v125
    %v778 = vpop.permute.xlu0 %777
    %v780 = vsel %vm760, %v778, %v719
    %781 = vset.pattern.permute.xlu0 16
    %782 = vperm.xlu0 %781, %v125
    %v783 = vpop.permute.xlu0 %782
    %v785 = vsel %vm760, %v783, %v724
    %786 = vset.pattern.permute.xlu0 17
    %787 = vperm.xlu0 %786, %v125
    %v788 = vpop.permute.xlu0 %787
    %v790 = vsel %vm760, %v788, %v729
    %791 = vset.pattern.permute.xlu0 18
    %792 = vperm.xlu0 %791, %v125
    %v793 = vpop.permute.xlu0 %792
    %v795 = vsel %vm760, %v793, %v734
    %796 = vset.pattern.permute.xlu0 19
    %797 = vperm.xlu0 %796, %v125
    %v798 = vpop.permute.xlu0 %797
    %v800 = vsel %vm760, %v798, %v739
    %801 = vset.pattern.permute.xlu0 20
    %802 = vperm.xlu0 %801, %v125
    %v803 = vpop.permute.xlu0 %802
    %v805 = vsel %vm760, %v803, %v744
    %806 = vset.pattern.permute.xlu0 21
    %807 = vperm.xlu0 %806, %v125
    %v808 = vpop.permute.xlu0 %807
    %v810 = vsel %vm760, %v808, %v749
    %811 = vset.pattern.permute.xlu0 22
    %812 = vperm.xlu0 %811, %v125
    %v813 = vpop.permute.xlu0 %812
    %v815 = vsel %vm760, %v813, %v754
    %816 = vset.pattern.permute.xlu0 23
    %817 = vperm.xlu0 %816, %v125
    %v818 = vpop.permute.xlu0 %817
    %v820 = vsel %vm760, %v818, %v759
    %vm821 = vcmp.eq.s32.totalorder %v694, 2
    %822 = vset.pattern.permute.xlu0 12
    %823 = vperm.xlu0 %822, %v207
    %v824 = vpop.permute.xlu0 %823
    %v826 = vsel %vm821, %v824, %v765
    %827 = vset.pattern.permute.xlu0 13
    %828 = vperm.xlu0 %827, %v207
    %v829 = vpop.permute.xlu0 %828
    %v831 = vsel %vm821, %v829, %v770
    %832 = vset.pattern.permute.xlu0 14
    %833 = vperm.xlu0 %832, %v207
    %v834 = vpop.permute.xlu0 %833
    %v836 = vsel %vm821, %v834, %v775
    %837 = vset.pattern.permute.xlu0 15
    %838 = vperm.xlu0 %837, %v207
    %v839 = vpop.permute.xlu0 %838
    %v841 = vsel %vm821, %v839, %v780
    %842 = vset.pattern.permute.xlu0 16
    %843 = vperm.xlu0 %842, %v207
    %v844 = vpop.permute.xlu0 %843
    %v846 = vsel %vm821, %v844, %v785
    %847 = vset.pattern.permute.xlu0 17
    %848 = vperm.xlu0 %847, %v207
    %v849 = vpop.permute.xlu0 %848
    %v851 = vsel %vm821, %v849, %v790
    %852 = vset.pattern.permute.xlu0 18
    %853 = vperm.xlu0 %852, %v207
    %v854 = vpop.permute.xlu0 %853
    %v856 = vsel %vm821, %v854, %v795
    %857 = vset.pattern.permute.xlu0 19
    %858 = vperm.xlu0 %857, %v207
    %v859 = vpop.permute.xlu0 %858
    %v861 = vsel %vm821, %v859, %v800
    %862 = vset.pattern.permute.xlu0 20
    %863 = vperm.xlu0 %862, %v207
    %v864 = vpop.permute.xlu0 %863
    %v866 = vsel %vm821, %v864, %v805
    %867 = vset.pattern.permute.xlu0 21
    %868 = vperm.xlu0 %867, %v207
    %v869 = vpop.permute.xlu0 %868
    %v871 = vsel %vm821, %v869, %v810
    %872 = vset.pattern.permute.xlu0 22
    %873 = vperm.xlu0 %872, %v207
    %v874 = vpop.permute.xlu0 %873
    %v876 = vsel %vm821, %v874, %v815
    %877 = vset.pattern.permute.xlu0 23
    %878 = vperm.xlu0 %877, %v207
    %v879 = vpop.permute.xlu0 %878
    %v881 = vsel %vm821, %v879, %v820
    %vm882 = vcmp.eq.s32.totalorder %v694, 3
    %883 = vset.pattern.permute.xlu0 12
    %884 = vperm.xlu0 %883, %v289
    %v885 = vpop.permute.xlu0 %884
    %v887 = vsel %vm882, %v885, %v826
    %888 = vset.pattern.permute.xlu0 13
    %889 = vperm.xlu0 %888, %v289
    %v890 = vpop.permute.xlu0 %889
    %v892 = vsel %vm882, %v890, %v831
    %893 = vset.pattern.permute.xlu0 14
    %894 = vperm.xlu0 %893, %v289
    %v895 = vpop.permute.xlu0 %894
    %v897 = vsel %vm882, %v895, %v836
    %898 = vset.pattern.permute.xlu0 15
    %899 = vperm.xlu0 %898, %v289
    %v900 = vpop.permute.xlu0 %899
    %v902 = vsel %vm882, %v900, %v841
    %903 = vset.pattern.permute.xlu0 16
    %904 = vperm.xlu0 %903, %v289
    %v905 = vpop.permute.xlu0 %904
    %v907 = vsel %vm882, %v905, %v846
    %908 = vset.pattern.permute.xlu0 17
    %909 = vperm.xlu0 %908, %v289
    %v910 = vpop.permute.xlu0 %909
    %v912 = vsel %vm882, %v910, %v851
    %913 = vset.pattern.permute.xlu0 18
    %914 = vperm.xlu0 %913, %v289
    %v915 = vpop.permute.xlu0 %914
    %v917 = vsel %vm882, %v915, %v856
    %918 = vset.pattern.permute.xlu0 19
    %919 = vperm.xlu0 %918, %v289
    %v920 = vpop.permute.xlu0 %919
    %v922 = vsel %vm882, %v920, %v861
    %923 = vset.pattern.permute.xlu0 20
    %924 = vperm.xlu0 %923, %v289
    %v925 = vpop.permute.xlu0 %924
    %v927 = vsel %vm882, %v925, %v866
    %928 = vset.pattern.permute.xlu0 21
    %929 = vperm.xlu0 %928, %v289
    %v930 = vpop.permute.xlu0 %929
    %v932 = vsel %vm882, %v930, %v871
    %933 = vset.pattern.permute.xlu0 22
    %934 = vperm.xlu0 %933, %v289
    %v935 = vpop.permute.xlu0 %934
    %v937 = vsel %vm882, %v935, %v876
    %938 = vset.pattern.permute.xlu0 23
    %939 = vperm.xlu0 %938, %v289
    %v940 = vpop.permute.xlu0 %939
    %v942 = vsel %vm882, %v940, %v881
    %vm943 = vcmp.eq.s32.totalorder %v694, 4
    %944 = vset.pattern.permute.xlu0 12
    %945 = vperm.xlu0 %944, %v371
    %v946 = vpop.permute.xlu0 %945
    %v948 = vsel %vm943, %v946, %v887
    %949 = vset.pattern.permute.xlu0 13
    %950 = vperm.xlu0 %949, %v371
    %v951 = vpop.permute.xlu0 %950
    %v953 = vsel %vm943, %v951, %v892
    %954 = vset.pattern.permute.xlu0 14
    %955 = vperm.xlu0 %954, %v371
    %v956 = vpop.permute.xlu0 %955
    %v958 = vsel %vm943, %v956, %v897
    %959 = vset.pattern.permute.xlu0 15
    %960 = vperm.xlu0 %959, %v371
    %v961 = vpop.permute.xlu0 %960
    %v963 = vsel %vm943, %v961, %v902
    %964 = vset.pattern.permute.xlu0 16
    %965 = vperm.xlu0 %964, %v371
    %v966 = vpop.permute.xlu0 %965
    %v968 = vsel %vm943, %v966, %v907
    %969 = vset.pattern.permute.xlu0 17
    %970 = vperm.xlu0 %969, %v371
    %v971 = vpop.permute.xlu0 %970
    %v973 = vsel %vm943, %v971, %v912
    %974 = vset.pattern.permute.xlu0 18
    %975 = vperm.xlu0 %974, %v371
    %v976 = vpop.permute.xlu0 %975
    %v978 = vsel %vm943, %v976, %v917
    %979 = vset.pattern.permute.xlu0 19
    %980 = vperm.xlu0 %979, %v371
    %v981 = vpop.permute.xlu0 %980
    %v983 = vsel %vm943, %v981, %v922
    %984 = vset.pattern.permute.xlu0 20
    %985 = vperm.xlu0 %984, %v371
    %v986 = vpop.permute.xlu0 %985
    %v988 = vsel %vm943, %v986, %v927
    %989 = vset.pattern.permute.xlu0 21
    %990 = vperm.xlu0 %989, %v371
    %v991 = vpop.permute.xlu0 %990
    %v993 = vsel %vm943, %v991, %v932
    %994 = vset.pattern.permute.xlu0 22
    %995 = vperm.xlu0 %994, %v371
    %v996 = vpop.permute.xlu0 %995
    %v998 = vsel %vm943, %v996, %v937
    %999 = vset.pattern.permute.xlu0 23
    %1000 = vperm.xlu0 %999, %v371
    %v1001 = vpop.permute.xlu0 %1000
    %v1003 = vsel %vm943, %v1001, %v942
    %vm1004 = vcmp.eq.s32.totalorder %v694, 5
    %1005 = vset.pattern.permute.xlu0 12
    %1006 = vperm.xlu0 %1005, %v453
    %v1007 = vpop.permute.xlu0 %1006
    %v1009 = vsel %vm1004, %v1007, %v948
    %1010 = vset.pattern.permute.xlu0 13
    %1011 = vperm.xlu0 %1010, %v453
    %v1012 = vpop.permute.xlu0 %1011
    %v1014 = vsel %vm1004, %v1012, %v953
    %1015 = vset.pattern.permute.xlu0 14
    %1016 = vperm.xlu0 %1015, %v453
    %v1017 = vpop.permute.xlu0 %1016
    %v1019 = vsel %vm1004, %v1017, %v958
    %1020 = vset.pattern.permute.xlu0 15
    %1021 = vperm.xlu0 %1020, %v453
    %v1022 = vpop.permute.xlu0 %1021
    %v1024 = vsel %vm1004, %v1022, %v963
    %1025 = vset.pattern.permute.xlu0 16
    %1026 = vperm.xlu0 %1025, %v453
    %v1027 = vpop.permute.xlu0 %1026
    %v1029 = vsel %vm1004, %v1027, %v968
    %1030 = vset.pattern.permute.xlu0 17
    %1031 = vperm.xlu0 %1030, %v453
    %v1032 = vpop.permute.xlu0 %1031
    %v1034 = vsel %vm1004, %v1032, %v973
    %1035 = vset.pattern.permute.xlu0 18
    %1036 = vperm.xlu0 %1035, %v453
    %v1037 = vpop.permute.xlu0 %1036
    %v1039 = vsel %vm1004, %v1037, %v978
    %1040 = vset.pattern.permute.xlu0 19
    %1041 = vperm.xlu0 %1040, %v453
    %v1042 = vpop.permute.xlu0 %1041
    %v1044 = vsel %vm1004, %v1042, %v983
    %1045 = vset.pattern.permute.xlu0 20
    %1046 = vperm.xlu0 %1045, %v453
    %v1047 = vpop.permute.xlu0 %1046
    %v1049 = vsel %vm1004, %v1047, %v988
    %1050 = vset.pattern.permute.xlu0 21
    %1051 = vperm.xlu0 %1050, %v453
    %v1052 = vpop.permute.xlu0 %1051
    %v1054 = vsel %vm1004, %v1052, %v993
    %1055 = vset.pattern.permute.xlu0 22
    %1056 = vperm.xlu0 %1055, %v453
    %v1057 = vpop.permute.xlu0 %1056
    %v1059 = vsel %vm1004, %v1057, %v998
    %1060 = vset.pattern.permute.xlu0 23
    %1061 = vperm.xlu0 %1060, %v453
    %v1062 = vpop.permute.xlu0 %1061
    %v1064 = vsel %vm1004, %v1062, %v1003
    %vm1065 = vcmp.eq.s32.totalorder %v694, 6
    %1066 = vset.pattern.permute.xlu0 12
    %1067 = vperm.xlu0 %1066, %v535
    %v1068 = vpop.permute.xlu0 %1067
    %v1070 = vsel %vm1065, %v1068, %v1009
    %1071 = vset.pattern.permute.xlu0 13
    %1072 = vperm.xlu0 %1071, %v535
    %v1073 = vpop.permute.xlu0 %1072
    %v1075 = vsel %vm1065, %v1073, %v1014
    %1076 = vset.pattern.permute.xlu0 14
    %1077 = vperm.xlu0 %1076, %v535
    %v1078 = vpop.permute.xlu0 %1077
    %v1080 = vsel %vm1065, %v1078, %v1019
    %1081 = vset.pattern.permute.xlu0 15
    %1082 = vperm.xlu0 %1081, %v535
    %v1083 = vpop.permute.xlu0 %1082
    %v1085 = vsel %vm1065, %v1083, %v1024
    %1086 = vset.pattern.permute.xlu0 16
    %1087 = vperm.xlu0 %1086, %v535
    %v1088 = vpop.permute.xlu0 %1087
    %v1090 = vsel %vm1065, %v1088, %v1029
    %1091 = vset.pattern.permute.xlu0 17
    %1092 = vperm.xlu0 %1091, %v535
    %v1093 = vpop.permute.xlu0 %1092
    %v1095 = vsel %vm1065, %v1093, %v1034
    %1096 = vset.pattern.permute.xlu0 18
    %1097 = vperm.xlu0 %1096, %v535
    %v1098 = vpop.permute.xlu0 %1097
    %v1100 = vsel %vm1065, %v1098, %v1039
    %1101 = vset.pattern.permute.xlu0 19
    %1102 = vperm.xlu0 %1101, %v535
    %v1103 = vpop.permute.xlu0 %1102
    %v1105 = vsel %vm1065, %v1103, %v1044
    %1106 = vset.pattern.permute.xlu0 20
    %1107 = vperm.xlu0 %1106, %v535
    %v1108 = vpop.permute.xlu0 %1107
    %v1110 = vsel %vm1065, %v1108, %v1049
    %1111 = vset.pattern.permute.xlu0 21
    %1112 = vperm.xlu0 %1111, %v535
    %v1113 = vpop.permute.xlu0 %1112
    %v1115 = vsel %vm1065, %v1113, %v1054
    %1116 = vset.pattern.permute.xlu0 22
    %1117 = vperm.xlu0 %1116, %v535
    %v1118 = vpop.permute.xlu0 %1117
    %v1120 = vsel %vm1065, %v1118, %v1059
    %1121 = vset.pattern.permute.xlu0 23
    %1122 = vperm.xlu0 %1121, %v535
    %v1123 = vpop.permute.xlu0 %1122
    %v1125 = vsel %vm1065, %v1123, %v1064
    %vm1126 = vcmp.eq.s32.totalorder %v694, 7
    %1127 = vset.pattern.permute.xlu0 12
    %1128 = vperm.xlu0 %1127, %v617
    %v1129 = vpop.permute.xlu0 %1128
    %v1131 = vsel %vm1126, %v1129, %v1070
    %1132 = vset.pattern.permute.xlu0 13
    %1133 = vperm.xlu0 %1132, %v617
    %v1134 = vpop.permute.xlu0 %1133
    %v1136 = vsel %vm1126, %v1134, %v1075
    %1137 = vset.pattern.permute.xlu0 14
    %1138 = vperm.xlu0 %1137, %v617
    %v1139 = vpop.permute.xlu0 %1138
    %v1141 = vsel %vm1126, %v1139, %v1080
    %1142 = vset.pattern.permute.xlu0 15
    %1143 = vperm.xlu0 %1142, %v617
    %v1144 = vpop.permute.xlu0 %1143
    %v1146 = vsel %vm1126, %v1144, %v1085
    %1147 = vset.pattern.permute.xlu0 16
    %1148 = vperm.xlu0 %1147, %v617
    %v1149 = vpop.permute.xlu0 %1148
    %v1151 = vsel %vm1126, %v1149, %v1090
    %1152 = vset.pattern.permute.xlu0 17
    %1153 = vperm.xlu0 %1152, %v617
    %v1154 = vpop.permute.xlu0 %1153
    %v1156 = vsel %vm1126, %v1154, %v1095
    %1157 = vset.pattern.permute.xlu0 18
    %1158 = vperm.xlu0 %1157, %v617
    %v1159 = vpop.permute.xlu0 %1158
    %v1161 = vsel %vm1126, %v1159, %v1100
    %1162 = vset.pattern.permute.xlu0 19
    %1163 = vperm.xlu0 %1162, %v617
    %v1164 = vpop.permute.xlu0 %1163
    %v1166 = vsel %vm1126, %v1164, %v1105
    %1167 = vset.pattern.permute.xlu0 20
    %1168 = vperm.xlu0 %1167, %v617
    %v1169 = vpop.permute.xlu0 %1168
    %v1171 = vsel %vm1126, %v1169, %v1110
    %1172 = vset.pattern.permute.xlu0 21
    %1173 = vperm.xlu0 %1172, %v617
    %v1174 = vpop.permute.xlu0 %1173
    %v1176 = vsel %vm1126, %v1174, %v1115
    %1177 = vset.pattern.permute.xlu0 22
    %1178 = vperm.xlu0 %1177, %v617
    %v1179 = vpop.permute.xlu0 %1178
    %v1181 = vsel %vm1126, %v1179, %v1120
    %1182 = vset.pattern.permute.xlu0 23
    %1183 = vperm.xlu0 %1182, %v617
    %v1184 = vpop.permute.xlu0 %1183
    %v1186 = vsel %vm1126, %v1184, %v1125
    %v1187 = vmul.f32 %v695, %v1146
    %v1188 = vmul.f32 %v696, %v1161
    %v1189 = vadd.f32 %v1187, %v1188
    %v1190 = vmul.f32 %v697, %v1176
    %v1191 = vadd.f32 %v1189, %v1190
    %v1192 = vmul.f32 %v695, %v1151
    %v1193 = vmul.f32 %v696, %v1166
    %v1194 = vadd.f32 %v1192, %v1193
    %v1195 = vmul.f32 %v697, %v1181
    %v1196 = vadd.f32 %v1194, %v1195
    %v1197 = vmul.f32 %v695, %v1156
    %v1198 = vmul.f32 %v696, %v1171
    %v1199 = vadd.f32 %v1197, %v1198
    %v1200 = vmul.f32 %v697, %v1186
    %v1201 = vadd.f32 %v1199, %v1200
    %v1202 = vand.u32 2147483647, %v695
    %v1203 = vmul.f32 %v1202, %v1131
    %v1204 = vand.u32 2147483647, %v696
    %v1205 = vmul.f32 %v1204, %v1136
    %v1206 = vmin.f32 %v1203, %v1205
    %v1207 = vand.u32 2147483647, %v697
    %v1208 = vmul.f32 %v1207, %v1141
    %v1209 = vmin.f32 %v1206, %v1208
    %v1210 = vsel %vm698, 1, 0
    %v1211 = vcvt.s32.f32 %v1210
    %v1212 = vsel %vm698, %v1191, 1.0
    %v1213 = vsel %vm698, %v1196, 1.0
    %v1214 = vsel %vm698, %v1201, 1.0
    %v1215 = vmul.f32 %v1209, %v1209
    %v1216 = vsub.f32 0.0, %v1215
    %v1217 = vsel %vm698, %v1216, -1.0
    %v1218 = vsel %vm698, %v693, -1.0
    %1219 = vst [vmem:[#allocation7] sm:$0xf] %v1212
    %1220 = vst [vmem:[#allocation7 + $0x4] sm:$0xf] %v1213
    %1221 = vst [vmem:[#allocation7 + $0x8] sm:$0xf] %v1214
    %1222 = vst [vmem:[#allocation7 + $0xc] sm:$0xf] %v1211
    %1223 = vst [vmem:[#allocation7 + $0x10] sm:$0xf] %v695
    %1224 = vst [vmem:[#allocation7 + $0x14] sm:$0xf] %v696
    %1225 = vst [vmem:[#allocation7 + $0x18] sm:$0xf] %v697
    %1226 = vst [vmem:[#allocation7 + $0x1c] sm:$0xf] %v1218
    %1227 = vst [vmem:[#allocation7 + $0x20] sm:$0xf] %v1217
    %1228 = vst [vmem:[#allocation8] sm:$0xf] %v694
    // Predicated region
    $region18: #{tpu_custom_call.1} parent=1 // pred_check
      _
    $region19: #{tpu_custom_call.1} parent=1 // pred_check_branch
      %1230 = sbr.rel (0) target = $region21
    $region20: #{tpu_custom_call.1} parent=1 // pred_region
      %s1232 = ssub.s32 640, 640
      %1233 = vsyncadd [#allocation4], %s1232
      %s1234 = sshll.u32 [#allocation7], 4
      %s1235 = int_to_ptr.vmem [resolvable:$true] %s1234
      %1240 = dma.vmem_to_hbm [thread:$0]  %s1235, 640, %s2, [#allocation4], 128, 128, 8
    $region21: #{tpu_custom_call.1} parent=1 // pred_fallthru
      _
    // Predicated region
    $region22: #{tpu_custom_call.1} parent=1 // pred_check
      _
    $region23: #{tpu_custom_call.1} parent=1 // pred_check_branch
      %1242 = sbr.rel (0) target = $region25
    $region24: #{tpu_custom_call.1} parent=1 // pred_region
      %s1244 = ssub.s32 64, 64
      %1245 = vsyncadd [#allocation9], %s1244
      %s1247 = sshll.u32 [#allocation8], 4
      %s1248 = int_to_ptr.vmem [resolvable:$true] %s1247
      %1250 = dma.vmem_to_hbm [thread:$0]  %s1248, 64, %s3, [#allocation9]
    $region25: #{tpu_custom_call.1} parent=1 // pred_fallthru
      _
    // Predicated region
    $region26: #{tpu_custom_call.1} parent=1 // pred_check
      _
    $region27: #{tpu_custom_call.1} parent=1 // pred_check_branch
      %1252 = sbr.rel (0) target = $region29
    $region28: #{tpu_custom_call.1} parent=1 // pred_region
      %1253 = dma.done [#allocation4], 640
    $region29: #{tpu_custom_call.1} parent=1 // pred_fallthru
      _
    // Predicated region
    $region30: #{tpu_custom_call.1} parent=1 // pred_check
      _
    $region31: #{tpu_custom_call.1} parent=1 // pred_check_branch
      %1255 = sbr.rel (0) target = $region33
    $region32: #{tpu_custom_call.1} parent=1 // pred_region
      %1256 = dma.done [#allocation9], 64
    $region33: #{tpu_custom_call.1} parent=1 // pred_fallthru
      _
    %1257 = vsyncpa [#allocation3], 1
    %1258 = vsyncpa [#allocation6], 1
    %1259 = vsyncpa [#allocation4], 1
    %1260 = vsyncpa [#allocation9], 1

</llo_original>
